<compile_context>
chip_gen: v7x
topology: tpu7x:2x2x1
jax: 0.10.0
libtpu: 0.0.40
codegen_flags: <defaults>
</compile_context>

<pallas_src>
import jax
import jax.numpy as jnp
from jax import lax
from jax.experimental import pallas as pl
from jax.experimental.pallas import tpu as pltpu

INPUT_SIZE = 12
HIDDEN = 128
OUT_FEATURES = 4


def lstm_head_kernel(pre0_ref, whh0_ref, w1_ref, b1_ref, wout_ref, bout_ref,
                     out_ref):
    """Full 2-layer LSTM recurrence + final Linear in one kernel call.

    pre0_ref: (T, B, 4*H)  precomputed x @ W_ih_l0^T + (b_ih_l0 + b_hh_l0)
    whh0_ref: (H, 4*H)     W_hh_l0 transposed
    w1_ref:   (2*H, 4*H)   [W_ih_l1^T ; W_hh_l1^T] stacked (fused layer-1 weight)
    b1_ref:   (1, 4*H)     b_ih_l1 + b_hh_l1
    wout_ref: (H, OUT_FEATURES), bout_ref: (1, OUT_FEATURES)
    out_ref:  (B, OUT_FEATURES)
    """
    T, B, _ = pre0_ref.shape
    H = HIDDEN

    # Load weights once; hoist the b1 broadcast out of the loop
    # (JAX does not CSE broadcast_in_dim).
    whh0 = whh0_ref[...]                                   # (H, 4H)
    w1 = w1_ref[...]                                       # (2H, 4H)
    b1 = jnp.broadcast_to(b1_ref[...], (B, 4 * H))         # (B, 4H)

    def gates_to_hc(gates, c):
        i = jax.nn.sigmoid(gates[:, 0 * H:1 * H])
        f = jax.nn.sigmoid(gates[:, 1 * H:2 * H])
        g = jnp.tanh(gates[:, 2 * H:3 * H])
        o = jax.nn.sigmoid(gates[:, 3 * H:4 * H])
        c_new = f * c + i * g
        h_new = o * jnp.tanh(c_new)
        return h_new, c_new

    # PyTorch `self.rnn(x, None)` -> zero-initialized (h_0, c_0); kept in vregs.
    zeros = jnp.zeros((B, H), jnp.float32)
    h0, c0, h1, c1 = zeros, zeros, zeros, zeros

    # T is small and static -> full unroll gives the scheduler cross-iteration
    # visibility (layer-0 of step t+1 overlaps layer-1 of step t).
    for t in range(T):
        # Layer 0: input projection already precomputed -> only the recurrent matmul
        # sits on the serial dependency chain.
        g0 = pre0_ref[t] + jnp.dot(h0, whh0,
                                   preferred_element_type=jnp.float32)   # (B, 4H)
        h0, c0 = gates_to_hc(g0, c0)

        # Layer 1: single fused matmul over the concatenated [h0_new, h1] operand.
        hcat = jnp.concatenate([h0, h1], axis=1)                          # (B, 2H)
        g1 = jnp.dot(hcat, w1, preferred_element_type=jnp.float32) + b1   # (B, 4H)
        h1, c1 = gates_to_hc(g1, c1)

    # out = Linear(r_out[:, -1, :]) == Linear(h of layer 1 at last timestep)
    out_ref[...] = (jnp.dot(h1, wout_ref[...],
                            preferred_element_type=jnp.float32)
                    + bout_ref[...])


def rnn_forward(x, params):
    """x: (B, T, INPUT_SIZE) float32 (batch_first, matching the PyTorch module)."""
    B, T, I = x.shape
    assert I == INPUT_SIZE
    H = HIDDEN

    # --- weight / input prep (one-time, outside the serial recurrence) ---
    wih0_t = params["weight_ih_l0"].T                        # (I, 4H)
    whh0_t = params["weight_hh_l0"].T                        # (H, 4H)
    b0 = (params["bias_ih_l0"] + params["bias_hh_l0"]).reshape(1, 1, 4 * H)

    # Precompute layer-0 input projection for all timesteps, time-major.
    x_tbi = jnp.transpose(x, (1, 0, 2))                      # (T, B, I)
    pre0 = jnp.einsum("tbi,ig->tbg", x_tbi, wih0_t,
                      preferred_element_type=jnp.float32) + b0   # (T, B, 4H)

    # Fused layer-1 weight: [h0, h1] @ [Wih1^T ; Whh1^T] == h0@Wih1^T + h1@Whh1^T
    w1 = jnp.concatenate([params["weight_ih_l1"].T,
                          params["weight_hh_l1"].T], axis=0)  # (2H, 4H)
    b1 = (params["bias_ih_l1"] + params["bias_hh_l1"]).reshape(1, 4 * H)

    wout_t = params["out_weight"].T                           # (H, 4)
    bout = params["out_bias"].reshape(1, OUT_FEATURES)

    vmem = pl.BlockSpec(memory_space=pltpu.MemorySpace.VMEM)

    out = pl.pallas_call(
        lstm_head_kernel,
        out_shape=jax.ShapeDtypeStruct((B, OUT_FEATURES), jnp.float32),
        in_specs=[vmem] * 6,
        out_specs=vmem,
    )(pre0, whh0_t, w1, b1, wout_t, bout)
    return out


def rnn_reference(x, params):
    """Pure-JAX reference of the PyTorch forward for verification."""
    B, T, I = x.shape
    H = HIDDEN

    def cell(x_t, h, c, wih, whh, bih, bhh):
        gates = x_t @ wih.T + bih + h @ whh.T + bhh
        i = jax.nn.sigmoid(gates[:, 0 * H:1 * H])
        f = jax.nn.sigmoid(gates[:, 1 * H:2 * H])
        g = jnp.tanh(gates[:, 2 * H:3 * H])
        o = jax.nn.sigmoid(gates[:, 3 * H:4 * H])
        c_new = f * c + i * g
        return o * jnp.tanh(c_new), c_new

    def scan_step(carry, x_t):
        h0, c0, h1, c1 = carry
        h0, c0 = cell(x_t, h0, c0, params["weight_ih_l0"], params["weight_hh_l0"],
                      params["bias_ih_l0"], params["bias_hh_l0"])
        h1, c1 = cell(h0, h1, c1, params["weight_ih_l1"], params["weight_hh_l1"],
                      params["bias_ih_l1"], params["bias_hh_l1"])
        return (h0, c0, h1, c1), None

    z = jnp.zeros((B, H), jnp.float32)
    (h0, c0, h1, c1), _ = lax.scan(scan_step, (z, z, z, z),
                                   jnp.transpose(x, (1, 0, 2)))
    return h1 @ params["out_weight"].T + params["out_bias"]


def init_params(key):
    H = HIDDEN
    kbound = 1.0 / float(jnp.sqrt(jnp.float32(H)))
    keys = jax.random.split(key, 10)

    def u(k, shape):
        return jax.random.uniform(k, shape, jnp.float32, -kbound, kbound)

    return {
        "weight_ih_l0": u(keys[0], (4 * H, INPUT_SIZE)),
        "weight_hh_l0": u(keys[1], (4 * H, H)),
        "bias_ih_l0":   u(keys[2], (4 * H,)),
        "bias_hh_l0":   u(keys[3], (4 * H,)),
        "weight_ih_l1": u(keys[4], (4 * H, H)),
        "weight_hh_l1": u(keys[5], (4 * H, H)),
        "bias_ih_l1":   u(keys[6], (4 * H,)),
        "bias_hh_l1":   u(keys[7], (4 * H,)),
        "out_weight":   u(keys[8], (OUT_FEATURES, H)),
        "out_bias":     u(keys[9], (OUT_FEATURES,)),
    }


if __name__ == "__main__":
    key = jax.random.PRNGKey(0)
    pkey, xkey = jax.random.split(key)

    B, T = 2, 8
    params = init_params(pkey)
    x = jax.random.normal(xkey, (B, T, INPUT_SIZE), jnp.float32)

    out = jax.block_until_ready(rnn_forward(x, params))
    ref = jax.block_until_ready(rnn_reference(x, params))

    assert out.shape == (B, OUT_FEATURES)
    assert jnp.allclose(out, ref, atol=1e-4, rtol=1e-4), (out, ref)
    print("KERNEL_OK")
</pallas_src>

<mosaic_0001>
module attributes {stable_mosaic.version = 11 : i64} {
  func.func @lstm_head_kernel(%arg0: memref<8x2x512xf32, #tpu.memory_space<vmem>>, %arg1: memref<128x512xf32, #tpu.memory_space<vmem>>, %arg2: memref<256x512xf32, #tpu.memory_space<vmem>>, %arg3: memref<1x512xf32, #tpu.memory_space<vmem>>, %arg4: memref<128x4xf32, #tpu.memory_space<vmem>>, %arg5: memref<1x4xf32, #tpu.memory_space<vmem>>, %arg6: memref<2x4xf32, #tpu.memory_space<vmem>>) attributes {dimension_semantics = [], scalar_prefetch = 0 : i64, scratch_operands = 0 : i64, tpu.core_type = #tpu.core_type<tc>} {
    %c0 = arith.constant 0 : index
    %c0_0 = arith.constant 0 : index
    %0 = vector.load %arg1[%c0, %c0_0] : memref<128x512xf32, #tpu.memory_space<vmem>>, vector<128x512xf32>
    %c0_1 = arith.constant 0 : index
    %c0_2 = arith.constant 0 : index
    %1 = vector.load %arg2[%c0_1, %c0_2] : memref<256x512xf32, #tpu.memory_space<vmem>>, vector<256x512xf32>
    %c0_3 = arith.constant 0 : index
    %c0_4 = arith.constant 0 : index
    %2 = vector.load %arg3[%c0_3, %c0_4] : memref<1x512xf32, #tpu.memory_space<vmem>>, vector<1x512xf32>
    %3 = vector.shape_cast %2 : vector<1x512xf32> to vector<1x512xf32>
    %4 = vector.broadcast %3 : vector<1x512xf32> to vector<2x512xf32>
    %cst = arith.constant 0.000000e+00 : f32
    %5 = vector.broadcast %cst : f32 to vector<2x128xf32>
    %c0_5 = arith.constant 0 : index
    %c0_6 = arith.constant 0 : index
    %c0_7 = arith.constant 0 : index
    %6 = vector.load %arg0[%c0_5, %c0_6, %c0_7] : memref<8x2x512xf32, #tpu.memory_space<vmem>>, vector<1x2x512xf32>
    %7 = vector.shape_cast %6 : vector<1x2x512xf32> to vector<2x512xf32>
    %cst_8 = arith.constant dense<0.000000e+00> : vector<2x512xf32>
    %8 = tpu.matmul %5, %0, %cst_8 {dimension_numbers = #tpu.dot_dimension_numbers<[1], [0], [0], [1], [0, 0, 1, 1], [], []>} : vector<2x128xf32>, vector<128x512xf32>, vector<2x512xf32> -> vector<2x512xf32>
    %9 = arith.addf %7, %8 : vector<2x512xf32>
    %10 = vector.extract_strided_slice %9 {offsets = [0, 0], sizes = [2, 128], strides = [1, 1]} : vector<2x512xf32> to vector<2x128xf32>
    %11 = arith.negf %10 : vector<2x128xf32>
    %12 = math.exp %11 : vector<2x128xf32>
    %cst_9 = arith.constant 1.000000e+00 : f32
    %13 = vector.broadcast %cst_9 : f32 to vector<2x128xf32>
    %14 = arith.addf %13, %12 : vector<2x128xf32>
    %15 = arith.divf %13, %14 : vector<2x128xf32>
    %16 = vector.extract_strided_slice %9 {offsets = [0, 128], sizes = [2, 128], strides = [1, 1]} : vector<2x512xf32> to vector<2x128xf32>
    %17 = arith.negf %16 : vector<2x128xf32>
    %18 = math.exp %17 : vector<2x128xf32>
    %cst_10 = arith.constant 1.000000e+00 : f32
    %19 = vector.broadcast %cst_10 : f32 to vector<2x128xf32>
    %20 = arith.addf %19, %18 : vector<2x128xf32>
    %21 = arith.divf %19, %20 : vector<2x128xf32>
    %22 = vector.extract_strided_slice %9 {offsets = [0, 256], sizes = [2, 128], strides = [1, 1]} : vector<2x512xf32> to vector<2x128xf32>
    %23 = math.tanh %22 : vector<2x128xf32>
    %24 = vector.extract_strided_slice %9 {offsets = [0, 384], sizes = [2, 128], strides = [1, 1]} : vector<2x512xf32> to vector<2x128xf32>
    %25 = arith.negf %24 : vector<2x128xf32>
    %26 = math.exp %25 : vector<2x128xf32>
    %cst_11 = arith.constant 1.000000e+00 : f32
    %27 = vector.broadcast %cst_11 : f32 to vector<2x128xf32>
    %28 = arith.addf %27, %26 : vector<2x128xf32>
    %29 = arith.divf %27, %28 : vector<2x128xf32>
    %30 = arith.mulf %21, %5 : vector<2x128xf32>
    %31 = arith.mulf %15, %23 : vector<2x128xf32>
    %32 = arith.addf %30, %31 : vector<2x128xf32>
    %33 = math.tanh %32 : vector<2x128xf32>
    %34 = arith.mulf %29, %33 : vector<2x128xf32>
    %35 = tpu.concatenate %34, %5 in 1 : vector<2x128xf32>, vector<2x128xf32> -> vector<2x256xf32>
    %cst_12 = arith.constant dense<0.000000e+00> : vector<2x512xf32>
    %36 = tpu.matmul %35, %1, %cst_12 {dimension_numbers = #tpu.dot_dimension_numbers<[1], [0], [0], [1], [0, 0, 1, 1], [], []>} : vector<2x256xf32>, vector<256x512xf32>, vector<2x512xf32> -> vector<2x512xf32>
    %37 = arith.addf %36, %4 : vector<2x512xf32>
    %38 = vector.extract_strided_slice %37 {offsets = [0, 0], sizes = [2, 128], strides = [1, 1]} : vector<2x512xf32> to vector<2x128xf32>
    %39 = arith.negf %38 : vector<2x128xf32>
    %40 = math.exp %39 : vector<2x128xf32>
    %cst_13 = arith.constant 1.000000e+00 : f32
    %41 = vector.broadcast %cst_13 : f32 to vector<2x128xf32>
    %42 = arith.addf %41, %40 : vector<2x128xf32>
    %43 = arith.divf %41, %42 : vector<2x128xf32>
    %44 = vector.extract_strided_slice %37 {offsets = [0, 128], sizes = [2, 128], strides = [1, 1]} : vector<2x512xf32> to vector<2x128xf32>
    %45 = arith.negf %44 : vector<2x128xf32>
    %46 = math.exp %45 : vector<2x128xf32>
    %cst_14 = arith.constant 1.000000e+00 : f32
    %47 = vector.broadcast %cst_14 : f32 to vector<2x128xf32>
    %48 = arith.addf %47, %46 : vector<2x128xf32>
    %49 = arith.divf %47, %48 : vector<2x128xf32>
    %50 = vector.extract_strided_slice %37 {offsets = [0, 256], sizes = [2, 128], strides = [1, 1]} : vector<2x512xf32> to vector<2x128xf32>
    %51 = math.tanh %50 : vector<2x128xf32>
    %52 = vector.extract_strided_slice %37 {offsets = [0, 384], sizes = [2, 128], strides = [1, 1]} : vector<2x512xf32> to vector<2x128xf32>
    %53 = arith.negf %52 : vector<2x128xf32>
    %54 = math.exp %53 : vector<2x128xf32>
    %cst_15 = arith.constant 1.000000e+00 : f32
    %55 = vector.broadcast %cst_15 : f32 to vector<2x128xf32>
    %56 = arith.addf %55, %54 : vector<2x128xf32>
    %57 = arith.divf %55, %56 : vector<2x128xf32>
    %58 = arith.mulf %49, %5 : vector<2x128xf32>
    %59 = arith.mulf %43, %51 : vector<2x128xf32>
    %60 = arith.addf %58, %59 : vector<2x128xf32>
    %61 = math.tanh %60 : vector<2x128xf32>
    %62 = arith.mulf %57, %61 : vector<2x128xf32>
    %c1 = arith.constant 1 : index
    %c0_16 = arith.constant 0 : index
    %c0_17 = arith.constant 0 : index
    %63 = vector.load %arg0[%c1, %c0_16, %c0_17] : memref<8x2x512xf32, #tpu.memory_space<vmem>>, vector<1x2x512xf32>
    %64 = vector.shape_cast %63 : vector<1x2x512xf32> to vector<2x512xf32>
    %cst_18 = arith.constant dense<0.000000e+00> : vector<2x512xf32>
    %65 = tpu.matmul %34, %0, %cst_18 {dimension_numbers = #tpu.dot_dimension_numbers<[1], [0], [0], [1], [0, 0, 1, 1], [], []>} : vector<2x128xf32>, vector<128x512xf32>, vector<2x512xf32> -> vector<2x512xf32>
    %66 = arith.addf %64, %65 : vector<2x512xf32>
    %67 = vector.extract_strided_slice %66 {offsets = [0, 0], sizes = [2, 128], strides = [1, 1]} : vector<2x512xf32> to vector<2x128xf32>
    %68 = arith.negf %67 : vector<2x128xf32>
    %69 = math.exp %68 : vector<2x128xf32>
    %cst_19 = arith.constant 1.000000e+00 : f32
    %70 = vector.broadcast %cst_19 : f32 to vector<2x128xf32>
    %71 = arith.addf %70, %69 : vector<2x128xf32>
    %72 = arith.divf %70, %71 : vector<2x128xf32>
    %73 = vector.extract_strided_slice %66 {offsets = [0, 128], sizes = [2, 128], strides = [1, 1]} : vector<2x512xf32> to vector<2x128xf32>
    %74 = arith.negf %73 : vector<2x128xf32>
    %75 = math.exp %74 : vector<2x128xf32>
    %cst_20 = arith.constant 1.000000e+00 : f32
    %76 = vector.broadcast %cst_20 : f32 to vector<2x128xf32>
    %77 = arith.addf %76, %75 : vector<2x128xf32>
    %78 = arith.divf %76, %77 : vector<2x128xf32>
    %79 = vector.extract_strided_slice %66 {offsets = [0, 256], sizes = [2, 128], strides = [1, 1]} : vector<2x512xf32> to vector<2x128xf32>
    %80 = math.tanh %79 : vector<2x128xf32>
    %81 = vector.extract_strided_slice %66 {offsets = [0, 384], sizes = [2, 128], strides = [1, 1]} : vector<2x512xf32> to vector<2x128xf32>
    %82 = arith.negf %81 : vector<2x128xf32>
    %83 = math.exp %82 : vector<2x128xf32>
    %cst_21 = arith.constant 1.000000e+00 : f32
    %84 = vector.broadcast %cst_21 : f32 to vector<2x128xf32>
    %85 = arith.addf %84, %83 : vector<2x128xf32>
    %86 = arith.divf %84, %85 : vector<2x128xf32>
    %87 = arith.mulf %78, %32 : vector<2x128xf32>
    %88 = arith.mulf %72, %80 : vector<2x128xf32>
    %89 = arith.addf %87, %88 : vector<2x128xf32>
    %90 = math.tanh %89 : vector<2x128xf32>
    %91 = arith.mulf %86, %90 : vector<2x128xf32>
    %92 = tpu.concatenate %91, %62 in 1 : vector<2x128xf32>, vector<2x128xf32> -> vector<2x256xf32>
    %cst_22 = arith.constant dense<0.000000e+00> : vector<2x512xf32>
    %93 = tpu.matmul %92, %1, %cst_22 {dimension_numbers = #tpu.dot_dimension_numbers<[1], [0], [0], [1], [0, 0, 1, 1], [], []>} : vector<2x256xf32>, vector<256x512xf32>, vector<2x512xf32> -> vector<2x512xf32>
    %94 = arith.addf %93, %4 : vector<2x512xf32>
    %95 = vector.extract_strided_slice %94 {offsets = [0, 0], sizes = [2, 128], strides = [1, 1]} : vector<2x512xf32> to vector<2x128xf32>
    %96 = arith.negf %95 : vector<2x128xf32>
    %97 = math.exp %96 : vector<2x128xf32>
    %cst_23 = arith.constant 1.000000e+00 : f32
    %98 = vector.broadcast %cst_23 : f32 to vector<2x128xf32>
    %99 = arith.addf %98, %97 : vector<2x128xf32>
    %100 = arith.divf %98, %99 : vector<2x128xf32>
    %101 = vector.extract_strided_slice %94 {offsets = [0, 128], sizes = [2, 128], strides = [1, 1]} : vector<2x512xf32> to vector<2x128xf32>
    %102 = arith.negf %101 : vector<2x128xf32>
    %103 = math.exp %102 : vector<2x128xf32>
    %cst_24 = arith.constant 1.000000e+00 : f32
    %104 = vector.broadcast %cst_24 : f32 to vector<2x128xf32>
    %105 = arith.addf %104, %103 : vector<2x128xf32>
    %106 = arith.divf %104, %105 : vector<2x128xf32>
    %107 = vector.extract_strided_slice %94 {offsets = [0, 256], sizes = [2, 128], strides = [1, 1]} : vector<2x512xf32> to vector<2x128xf32>
    %108 = math.tanh %107 : vector<2x128xf32>
    %109 = vector.extract_strided_slice %94 {offsets = [0, 384], sizes = [2, 128], strides = [1, 1]} : vector<2x512xf32> to vector<2x128xf32>
    %110 = arith.negf %109 : vector<2x128xf32>
    %111 = math.exp %110 : vector<2x128xf32>
    %cst_25 = arith.constant 1.000000e+00 : f32
    %112 = vector.broadcast %cst_25 : f32 to vector<2x128xf32>
    %113 = arith.addf %112, %111 : vector<2x128xf32>
    %114 = arith.divf %112, %113 : vector<2x128xf32>
    %115 = arith.mulf %106, %60 : vector<2x128xf32>
    %116 = arith.mulf %100, %108 : vector<2x128xf32>
    %117 = arith.addf %115, %116 : vector<2x128xf32>
    %118 = math.tanh %117 : vector<2x128xf32>
    %119 = arith.mulf %114, %118 : vector<2x128xf32>
    %c2 = arith.constant 2 : index
    %c0_26 = arith.constant 0 : index
    %c0_27 = arith.constant 0 : index
    %120 = vector.load %arg0[%c2, %c0_26, %c0_27] : memref<8x2x512xf32, #tpu.memory_space<vmem>>, vector<1x2x512xf32>
    %121 = vector.shape_cast %120 : vector<1x2x512xf32> to vector<2x512xf32>
    %cst_28 = arith.constant dense<0.000000e+00> : vector<2x512xf32>
    %122 = tpu.matmul %91, %0, %cst_28 {dimension_numbers = #tpu.dot_dimension_numbers<[1], [0], [0], [1], [0, 0, 1, 1], [], []>} : vector<2x128xf32>, vector<128x512xf32>, vector<2x512xf32> -> vector<2x512xf32>
    %123 = arith.addf %121, %122 : vector<2x512xf32>
    %124 = vector.extract_strided_slice %123 {offsets = [0, 0], sizes = [2, 128], strides = [1, 1]} : vector<2x512xf32> to vector<2x128xf32>
    %125 = arith.negf %124 : vector<2x128xf32>
    %126 = math.exp %125 : vector<2x128xf32>
    %cst_29 = arith.constant 1.000000e+00 : f32
    %127 = vector.broadcast %cst_29 : f32 to vector<2x128xf32>
    %128 = arith.addf %127, %126 : vector<2x128xf32>
    %129 = arith.divf %127, %128 : vector<2x128xf32>
    %130 = vector.extract_strided_slice %123 {offsets = [0, 128], sizes = [2, 128], strides = [1, 1]} : vector<2x512xf32> to vector<2x128xf32>
    %131 = arith.negf %130 : vector<2x128xf32>
    %132 = math.exp %131 : vector<2x128xf32>
    %cst_30 = arith.constant 1.000000e+00 : f32
    %133 = vector.broadcast %cst_30 : f32 to vector<2x128xf32>
    %134 = arith.addf %133, %132 : vector<2x128xf32>
    %135 = arith.divf %133, %134 : vector<2x128xf32>
    %136 = vector.extract_strided_slice %123 {offsets = [0, 256], sizes = [2, 128], strides = [1, 1]} : vector<2x512xf32> to vector<2x128xf32>
    %137 = math.tanh %136 : vector<2x128xf32>
    %138 = vector.extract_strided_slice %123 {offsets = [0, 384], sizes = [2, 128], strides = [1, 1]} : vector<2x512xf32> to vector<2x128xf32>
    %139 = arith.negf %138 : vector<2x128xf32>
    %140 = math.exp %139 : vector<2x128xf32>
    %cst_31 = arith.constant 1.000000e+00 : f32
    %141 = vector.broadcast %cst_31 : f32 to vector<2x128xf32>
    %142 = arith.addf %141, %140 : vector<2x128xf32>
    %143 = arith.divf %141, %142 : vector<2x128xf32>
    %144 = arith.mulf %135, %89 : vector<2x128xf32>
    %145 = arith.mulf %129, %137 : vector<2x128xf32>
    %146 = arith.addf %144, %145 : vector<2x128xf32>
    %147 = math.tanh %146 : vector<2x128xf32>
    %148 = arith.mulf %143, %147 : vector<2x128xf32>
    %149 = tpu.concatenate %148, %119 in 1 : vector<2x128xf32>, vector<2x128xf32> -> vector<2x256xf32>
    %cst_32 = arith.constant dense<0.000000e+00> : vector<2x512xf32>
    %150 = tpu.matmul %149, %1, %cst_32 {dimension_numbers = #tpu.dot_dimension_numbers<[1], [0], [0], [1], [0, 0, 1, 1], [], []>} : vector<2x256xf32>, vector<256x512xf32>, vector<2x512xf32> -> vector<2x512xf32>
    %151 = arith.addf %150, %4 : vector<2x512xf32>
    %152 = vector.extract_strided_slice %151 {offsets = [0, 0], sizes = [2, 128], strides = [1, 1]} : vector<2x512xf32> to vector<2x128xf32>
    %153 = arith.negf %152 : vector<2x128xf32>
    %154 = math.exp %153 : vector<2x128xf32>
    %cst_33 = arith.constant 1.000000e+00 : f32
    %155 = vector.broadcast %cst_33 : f32 to vector<2x128xf32>
    %156 = arith.addf %155, %154 : vector<2x128xf32>
    %157 = arith.divf %155, %156 : vector<2x128xf32>
    %158 = vector.extract_strided_slice %151 {offsets = [0, 128], sizes = [2, 128], strides = [1, 1]} : vector<2x512xf32> to vector<2x128xf32>
    %159 = arith.negf %158 : vector<2x128xf32>
    %160 = math.exp %159 : vector<2x128xf32>
    %cst_34 = arith.constant 1.000000e+00 : f32
    %161 = vector.broadcast %cst_34 : f32 to vector<2x128xf32>
    %162 = arith.addf %161, %160 : vector<2x128xf32>
    %163 = arith.divf %161, %162 : vector<2x128xf32>
    %164 = vector.extract_strided_slice %151 {offsets = [0, 256], sizes = [2, 128], strides = [1, 1]} : vector<2x512xf32> to vector<2x128xf32>
    %165 = math.tanh %164 : vector<2x128xf32>
    %166 = vector.extract_strided_slice %151 {offsets = [0, 384], sizes = [2, 128], strides = [1, 1]} : vector<2x512xf32> to vector<2x128xf32>
    %167 = arith.negf %166 : vector<2x128xf32>
    %168 = math.exp %167 : vector<2x128xf32>
    %cst_35 = arith.constant 1.000000e+00 : f32
    %169 = vector.broadcast %cst_35 : f32 to vector<2x128xf32>
    %170 = arith.addf %169, %168 : vector<2x128xf32>
    %171 = arith.divf %169, %170 : vector<2x128xf32>
    %172 = arith.mulf %163, %117 : vector<2x128xf32>
    %173 = arith.mulf %157, %165 : vector<2x128xf32>
    %174 = arith.addf %172, %173 : vector<2x128xf32>
    %175 = math.tanh %174 : vector<2x128xf32>
    %176 = arith.mulf %171, %175 : vector<2x128xf32>
    %c3 = arith.constant 3 : index
    %c0_36 = arith.constant 0 : index
    %c0_37 = arith.constant 0 : index
    %177 = vector.load %arg0[%c3, %c0_36, %c0_37] : memref<8x2x512xf32, #tpu.memory_space<vmem>>, vector<1x2x512xf32>
    %178 = vector.shape_cast %177 : vector<1x2x512xf32> to vector<2x512xf32>
    %cst_38 = arith.constant dense<0.000000e+00> : vector<2x512xf32>
    %179 = tpu.matmul %148, %0, %cst_38 {dimension_numbers = #tpu.dot_dimension_numbers<[1], [0], [0], [1], [0, 0, 1, 1], [], []>} : vector<2x128xf32>, vector<128x512xf32>, vector<2x512xf32> -> vector<2x512xf32>
    %180 = arith.addf %178, %179 : vector<2x512xf32>
    %181 = vector.extract_strided_slice %180 {offsets = [0, 0], sizes = [2, 128], strides = [1, 1]} : vector<2x512xf32> to vector<2x128xf32>
    %182 = arith.negf %181 : vector<2x128xf32>
    %183 = math.exp %182 : vector<2x128xf32>
    %cst_39 = arith.constant 1.000000e+00 : f32
    %184 = vector.broadcast %cst_39 : f32 to vector<2x128xf32>
    %185 = arith.addf %184, %183 : vector<2x128xf32>
    %186 = arith.divf %184, %185 : vector<2x128xf32>
    %187 = vector.extract_strided_slice %180 {offsets = [0, 128], sizes = [2, 128], strides = [1, 1]} : vector<2x512xf32> to vector<2x128xf32>
    %188 = arith.negf %187 : vector<2x128xf32>
    %189 = math.exp %188 : vector<2x128xf32>
    %cst_40 = arith.constant 1.000000e+00 : f32
    %190 = vector.broadcast %cst_40 : f32 to vector<2x128xf32>
    %191 = arith.addf %190, %189 : vector<2x128xf32>
    %192 = arith.divf %190, %191 : vector<2x128xf32>
    %193 = vector.extract_strided_slice %180 {offsets = [0, 256], sizes = [2, 128], strides = [1, 1]} : vector<2x512xf32> to vector<2x128xf32>
    %194 = math.tanh %193 : vector<2x128xf32>
    %195 = vector.extract_strided_slice %180 {offsets = [0, 384], sizes = [2, 128], strides = [1, 1]} : vector<2x512xf32> to vector<2x128xf32>
    %196 = arith.negf %195 : vector<2x128xf32>
    %197 = math.exp %196 : vector<2x128xf32>
    %cst_41 = arith.constant 1.000000e+00 : f32
    %198 = vector.broadcast %cst_41 : f32 to vector<2x128xf32>
    %199 = arith.addf %198, %197 : vector<2x128xf32>
    %200 = arith.divf %198, %199 : vector<2x128xf32>
    %201 = arith.mulf %192, %146 : vector<2x128xf32>
    %202 = arith.mulf %186, %194 : vector<2x128xf32>
    %203 = arith.addf %201, %202 : vector<2x128xf32>
    %204 = math.tanh %203 : vector<2x128xf32>
    %205 = arith.mulf %200, %204 : vector<2x128xf32>
    %206 = tpu.concatenate %205, %176 in 1 : vector<2x128xf32>, vector<2x128xf32> -> vector<2x256xf32>
    %cst_42 = arith.constant dense<0.000000e+00> : vector<2x512xf32>
    %207 = tpu.matmul %206, %1, %cst_42 {dimension_numbers = #tpu.dot_dimension_numbers<[1], [0], [0], [1], [0, 0, 1, 1], [], []>} : vector<2x256xf32>, vector<256x512xf32>, vector<2x512xf32> -> vector<2x512xf32>
    %208 = arith.addf %207, %4 : vector<2x512xf32>
    %209 = vector.extract_strided_slice %208 {offsets = [0, 0], sizes = [2, 128], strides = [1, 1]} : vector<2x512xf32> to vector<2x128xf32>
    %210 = arith.negf %209 : vector<2x128xf32>
    %211 = math.exp %210 : vector<2x128xf32>
    %cst_43 = arith.constant 1.000000e+00 : f32
    %212 = vector.broadcast %cst_43 : f32 to vector<2x128xf32>
    %213 = arith.addf %212, %211 : vector<2x128xf32>
    %214 = arith.divf %212, %213 : vector<2x128xf32>
    %215 = vector.extract_strided_slice %208 {offsets = [0, 128], sizes = [2, 128], strides = [1, 1]} : vector<2x512xf32> to vector<2x128xf32>
    %216 = arith.negf %215 : vector<2x128xf32>
    %217 = math.exp %216 : vector<2x128xf32>
    %cst_44 = arith.constant 1.000000e+00 : f32
    %218 = vector.broadcast %cst_44 : f32 to vector<2x128xf32>
    %219 = arith.addf %218, %217 : vector<2x128xf32>
    %220 = arith.divf %218, %219 : vector<2x128xf32>
    %221 = vector.extract_strided_slice %208 {offsets = [0, 256], sizes = [2, 128], strides = [1, 1]} : vector<2x512xf32> to vector<2x128xf32>
    %222 = math.tanh %221 : vector<2x128xf32>
    %223 = vector.extract_strided_slice %208 {offsets = [0, 384], sizes = [2, 128], strides = [1, 1]} : vector<2x512xf32> to vector<2x128xf32>
    %224 = arith.negf %223 : vector<2x128xf32>
    %225 = math.exp %224 : vector<2x128xf32>
    %cst_45 = arith.constant 1.000000e+00 : f32
    %226 = vector.broadcast %cst_45 : f32 to vector<2x128xf32>
    %227 = arith.addf %226, %225 : vector<2x128xf32>
    %228 = arith.divf %226, %227 : vector<2x128xf32>
    %229 = arith.mulf %220, %174 : vector<2x128xf32>
    %230 = arith.mulf %214, %222 : vector<2x128xf32>
    %231 = arith.addf %229, %230 : vector<2x128xf32>
    %232 = math.tanh %231 : vector<2x128xf32>
    %233 = arith.mulf %228, %232 : vector<2x128xf32>
    %c4 = arith.constant 4 : index
    %c0_46 = arith.constant 0 : index
    %c0_47 = arith.constant 0 : index
    %234 = vector.load %arg0[%c4, %c0_46, %c0_47] : memref<8x2x512xf32, #tpu.memory_space<vmem>>, vector<1x2x512xf32>
    %235 = vector.shape_cast %234 : vector<1x2x512xf32> to vector<2x512xf32>
    %cst_48 = arith.constant dense<0.000000e+00> : vector<2x512xf32>
    %236 = tpu.matmul %205, %0, %cst_48 {dimension_numbers = #tpu.dot_dimension_numbers<[1], [0], [0], [1], [0, 0, 1, 1], [], []>} : vector<2x128xf32>, vector<128x512xf32>, vector<2x512xf32> -> vector<2x512xf32>
    %237 = arith.addf %235, %236 : vector<2x512xf32>
    %238 = vector.extract_strided_slice %237 {offsets = [0, 0], sizes = [2, 128], strides = [1, 1]} : vector<2x512xf32> to vector<2x128xf32>
    %239 = arith.negf %238 : vector<2x128xf32>
    %240 = math.exp %239 : vector<2x128xf32>
    %cst_49 = arith.constant 1.000000e+00 : f32
    %241 = vector.broadcast %cst_49 : f32 to vector<2x128xf32>
    %242 = arith.addf %241, %240 : vector<2x128xf32>
    %243 = arith.divf %241, %242 : vector<2x128xf32>
    %244 = vector.extract_strided_slice %237 {offsets = [0, 128], sizes = [2, 128], strides = [1, 1]} : vector<2x512xf32> to vector<2x128xf32>
    %245 = arith.negf %244 : vector<2x128xf32>
    %246 = math.exp %245 : vector<2x128xf32>
    %cst_50 = arith.constant 1.000000e+00 : f32
    %247 = vector.broadcast %cst_50 : f32 to vector<2x128xf32>
    %248 = arith.addf %247, %246 : vector<2x128xf32>
    %249 = arith.divf %247, %248 : vector<2x128xf32>
    %250 = vector.extract_strided_slice %237 {offsets = [0, 256], sizes = [2, 128], strides = [1, 1]} : vector<2x512xf32> to vector<2x128xf32>
    %251 = math.tanh %250 : vector<2x128xf32>
    %252 = vector.extract_strided_slice %237 {offsets = [0, 384], sizes = [2, 128], strides = [1, 1]} : vector<2x512xf32> to vector<2x128xf32>
    %253 = arith.negf %252 : vector<2x128xf32>
    %254 = math.exp %253 : vector<2x128xf32>
    %cst_51 = arith.constant 1.000000e+00 : f32
    %255 = vector.broadcast %cst_51 : f32 to vector<2x128xf32>
    %256 = arith.addf %255, %254 : vector<2x128xf32>
    %257 = arith.divf %255, %256 : vector<2x128xf32>
    %258 = arith.mulf %249, %203 : vector<2x128xf32>
    %259 = arith.mulf %243, %251 : vector<2x128xf32>
    %260 = arith.addf %258, %259 : vector<2x128xf32>
    %261 = math.tanh %260 : vector<2x128xf32>
    %262 = arith.mulf %257, %261 : vector<2x128xf32>
    %263 = tpu.concatenate %262, %233 in 1 : vector<2x128xf32>, vector<2x128xf32> -> vector<2x256xf32>
    %cst_52 = arith.constant dense<0.000000e+00> : vector<2x512xf32>
    %264 = tpu.matmul %263, %1, %cst_52 {dimension_numbers = #tpu.dot_dimension_numbers<[1], [0], [0], [1], [0, 0, 1, 1], [], []>} : vector<2x256xf32>, vector<256x512xf32>, vector<2x512xf32> -> vector<2x512xf32>
    %265 = arith.addf %264, %4 : vector<2x512xf32>
    %266 = vector.extract_strided_slice %265 {offsets = [0, 0], sizes = [2, 128], strides = [1, 1]} : vector<2x512xf32> to vector<2x128xf32>
    %267 = arith.negf %266 : vector<2x128xf32>
    %268 = math.exp %267 : vector<2x128xf32>
    %cst_53 = arith.constant 1.000000e+00 : f32
    %269 = vector.broadcast %cst_53 : f32 to vector<2x128xf32>
    %270 = arith.addf %269, %268 : vector<2x128xf32>
    %271 = arith.divf %269, %270 : vector<2x128xf32>
    %272 = vector.extract_strided_slice %265 {offsets = [0, 128], sizes = [2, 128], strides = [1, 1]} : vector<2x512xf32> to vector<2x128xf32>
    %273 = arith.negf %272 : vector<2x128xf32>
    %274 = math.exp %273 : vector<2x128xf32>
    %cst_54 = arith.constant 1.000000e+00 : f32
    %275 = vector.broadcast %cst_54 : f32 to vector<2x128xf32>
    %276 = arith.addf %275, %274 : vector<2x128xf32>
    %277 = arith.divf %275, %276 : vector<2x128xf32>
    %278 = vector.extract_strided_slice %265 {offsets = [0, 256], sizes = [2, 128], strides = [1, 1]} : vector<2x512xf32> to vector<2x128xf32>
    %279 = math.tanh %278 : vector<2x128xf32>
    %280 = vector.extract_strided_slice %265 {offsets = [0, 384], sizes = [2, 128], strides = [1, 1]} : vector<2x512xf32> to vector<2x128xf32>
    %281 = arith.negf %280 : vector<2x128xf32>
    %282 = math.exp %281 : vector<2x128xf32>
    %cst_55 = arith.constant 1.000000e+00 : f32
    %283 = vector.broadcast %cst_55 : f32 to vector<2x128xf32>
    %284 = arith.addf %283, %282 : vector<2x128xf32>
    %285 = arith.divf %283, %284 : vector<2x128xf32>
    %286 = arith.mulf %277, %231 : vector<2x128xf32>
    %287 = arith.mulf %271, %279 : vector<2x128xf32>
    %288 = arith.addf %286, %287 : vector<2x128xf32>
    %289 = math.tanh %288 : vector<2x128xf32>
    %290 = arith.mulf %285, %289 : vector<2x128xf32>
    %c5 = arith.constant 5 : index
    %c0_56 = arith.constant 0 : index
    %c0_57 = arith.constant 0 : index
    %291 = vector.load %arg0[%c5, %c0_56, %c0_57] : memref<8x2x512xf32, #tpu.memory_space<vmem>>, vector<1x2x512xf32>
    %292 = vector.shape_cast %291 : vector<1x2x512xf32> to vector<2x512xf32>
    %cst_58 = arith.constant dense<0.000000e+00> : vector<2x512xf32>
    %293 = tpu.matmul %262, %0, %cst_58 {dimension_numbers = #tpu.dot_dimension_numbers<[1], [0], [0], [1], [0, 0, 1, 1], [], []>} : vector<2x128xf32>, vector<128x512xf32>, vector<2x512xf32> -> vector<2x512xf32>
    %294 = arith.addf %292, %293 : vector<2x512xf32>
    %295 = vector.extract_strided_slice %294 {offsets = [0, 0], sizes = [2, 128], strides = [1, 1]} : vector<2x512xf32> to vector<2x128xf32>
    %296 = arith.negf %295 : vector<2x128xf32>
    %297 = math.exp %296 : vector<2x128xf32>
    %cst_59 = arith.constant 1.000000e+00 : f32
    %298 = vector.broadcast %cst_59 : f32 to vector<2x128xf32>
    %299 = arith.addf %298, %297 : vector<2x128xf32>
    %300 = arith.divf %298, %299 : vector<2x128xf32>
    %301 = vector.extract_strided_slice %294 {offsets = [0, 128], sizes = [2, 128], strides = [1, 1]} : vector<2x512xf32> to vector<2x128xf32>
    %302 = arith.negf %301 : vector<2x128xf32>
    %303 = math.exp %302 : vector<2x128xf32>
    %cst_60 = arith.constant 1.000000e+00 : f32
    %304 = vector.broadcast %cst_60 : f32 to vector<2x128xf32>
    %305 = arith.addf %304, %303 : vector<2x128xf32>
    %306 = arith.divf %304, %305 : vector<2x128xf32>
    %307 = vector.extract_strided_slice %294 {offsets = [0, 256], sizes = [2, 128], strides = [1, 1]} : vector<2x512xf32> to vector<2x128xf32>
    %308 = math.tanh %307 : vector<2x128xf32>
    %309 = vector.extract_strided_slice %294 {offsets = [0, 384], sizes = [2, 128], strides = [1, 1]} : vector<2x512xf32> to vector<2x128xf32>
    %310 = arith.negf %309 : vector<2x128xf32>
    %311 = math.exp %310 : vector<2x128xf32>
    %cst_61 = arith.constant 1.000000e+00 : f32
    %312 = vector.broadcast %cst_61 : f32 to vector<2x128xf32>
    %313 = arith.addf %312, %311 : vector<2x128xf32>
    %314 = arith.divf %312, %313 : vector<2x128xf32>
    %315 = arith.mulf %306, %260 : vector<2x128xf32>
    %316 = arith.mulf %300, %308 : vector<2x128xf32>
    %317 = arith.addf %315, %316 : vector<2x128xf32>
    %318 = math.tanh %317 : vector<2x128xf32>
    %319 = arith.mulf %314, %318 : vector<2x128xf32>
    %320 = tpu.concatenate %319, %290 in 1 : vector<2x128xf32>, vector<2x128xf32> -> vector<2x256xf32>
    %cst_62 = arith.constant dense<0.000000e+00> : vector<2x512xf32>
    %321 = tpu.matmul %320, %1, %cst_62 {dimension_numbers = #tpu.dot_dimension_numbers<[1], [0], [0], [1], [0, 0, 1, 1], [], []>} : vector<2x256xf32>, vector<256x512xf32>, vector<2x512xf32> -> vector<2x512xf32>
    %322 = arith.addf %321, %4 : vector<2x512xf32>
    %323 = vector.extract_strided_slice %322 {offsets = [0, 0], sizes = [2, 128], strides = [1, 1]} : vector<2x512xf32> to vector<2x128xf32>
    %324 = arith.negf %323 : vector<2x128xf32>
    %325 = math.exp %324 : vector<2x128xf32>
    %cst_63 = arith.constant 1.000000e+00 : f32
    %326 = vector.broadcast %cst_63 : f32 to vector<2x128xf32>
    %327 = arith.addf %326, %325 : vector<2x128xf32>
    %328 = arith.divf %326, %327 : vector<2x128xf32>
    %329 = vector.extract_strided_slice %322 {offsets = [0, 128], sizes = [2, 128], strides = [1, 1]} : vector<2x512xf32> to vector<2x128xf32>
    %330 = arith.negf %329 : vector<2x128xf32>
    %331 = math.exp %330 : vector<2x128xf32>
    %cst_64 = arith.constant 1.000000e+00 : f32
    %332 = vector.broadcast %cst_64 : f32 to vector<2x128xf32>
    %333 = arith.addf %332, %331 : vector<2x128xf32>
    %334 = arith.divf %332, %333 : vector<2x128xf32>
    %335 = vector.extract_strided_slice %322 {offsets = [0, 256], sizes = [2, 128], strides = [1, 1]} : vector<2x512xf32> to vector<2x128xf32>
    %336 = math.tanh %335 : vector<2x128xf32>
    %337 = vector.extract_strided_slice %322 {offsets = [0, 384], sizes = [2, 128], strides = [1, 1]} : vector<2x512xf32> to vector<2x128xf32>
    %338 = arith.negf %337 : vector<2x128xf32>
    %339 = math.exp %338 : vector<2x128xf32>
    %cst_65 = arith.constant 1.000000e+00 : f32
    %340 = vector.broadcast %cst_65 : f32 to vector<2x128xf32>
    %341 = arith.addf %340, %339 : vector<2x128xf32>
    %342 = arith.divf %340, %341 : vector<2x128xf32>
    %343 = arith.mulf %334, %288 : vector<2x128xf32>
    %344 = arith.mulf %328, %336 : vector<2x128xf32>
    %345 = arith.addf %343, %344 : vector<2x128xf32>
    %346 = math.tanh %345 : vector<2x128xf32>
    %347 = arith.mulf %342, %346 : vector<2x128xf32>
    %c6 = arith.constant 6 : index
    %c0_66 = arith.constant 0 : index
    %c0_67 = arith.constant 0 : index
    %348 = vector.load %arg0[%c6, %c0_66, %c0_67] : memref<8x2x512xf32, #tpu.memory_space<vmem>>, vector<1x2x512xf32>
    %349 = vector.shape_cast %348 : vector<1x2x512xf32> to vector<2x512xf32>
    %cst_68 = arith.constant dense<0.000000e+00> : vector<2x512xf32>
    %350 = tpu.matmul %319, %0, %cst_68 {dimension_numbers = #tpu.dot_dimension_numbers<[1], [0], [0], [1], [0, 0, 1, 1], [], []>} : vector<2x128xf32>, vector<128x512xf32>, vector<2x512xf32> -> vector<2x512xf32>
    %351 = arith.addf %349, %350 : vector<2x512xf32>
    %352 = vector.extract_strided_slice %351 {offsets = [0, 0], sizes = [2, 128], strides = [1, 1]} : vector<2x512xf32> to vector<2x128xf32>
    %353 = arith.negf %352 : vector<2x128xf32>
    %354 = math.exp %353 : vector<2x128xf32>
    %cst_69 = arith.constant 1.000000e+00 : f32
    %355 = vector.broadcast %cst_69 : f32 to vector<2x128xf32>
    %356 = arith.addf %355, %354 : vector<2x128xf32>
    %357 = arith.divf %355, %356 : vector<2x128xf32>
    %358 = vector.extract_strided_slice %351 {offsets = [0, 128], sizes = [2, 128], strides = [1, 1]} : vector<2x512xf32> to vector<2x128xf32>
    %359 = arith.negf %358 : vector<2x128xf32>
    %360 = math.exp %359 : vector<2x128xf32>
    %cst_70 = arith.constant 1.000000e+00 : f32
    %361 = vector.broadcast %cst_70 : f32 to vector<2x128xf32>
    %362 = arith.addf %361, %360 : vector<2x128xf32>
    %363 = arith.divf %361, %362 : vector<2x128xf32>
    %364 = vector.extract_strided_slice %351 {offsets = [0, 256], sizes = [2, 128], strides = [1, 1]} : vector<2x512xf32> to vector<2x128xf32>
    %365 = math.tanh %364 : vector<2x128xf32>
    %366 = vector.extract_strided_slice %351 {offsets = [0, 384], sizes = [2, 128], strides = [1, 1]} : vector<2x512xf32> to vector<2x128xf32>
    %367 = arith.negf %366 : vector<2x128xf32>
    %368 = math.exp %367 : vector<2x128xf32>
    %cst_71 = arith.constant 1.000000e+00 : f32
    %369 = vector.broadcast %cst_71 : f32 to vector<2x128xf32>
    %370 = arith.addf %369, %368 : vector<2x128xf32>
    %371 = arith.divf %369, %370 : vector<2x128xf32>
    %372 = arith.mulf %363, %317 : vector<2x128xf32>
    %373 = arith.mulf %357, %365 : vector<2x128xf32>
    %374 = arith.addf %372, %373 : vector<2x128xf32>
    %375 = math.tanh %374 : vector<2x128xf32>
    %376 = arith.mulf %371, %375 : vector<2x128xf32>
    %377 = tpu.concatenate %376, %347 in 1 : vector<2x128xf32>, vector<2x128xf32> -> vector<2x256xf32>
    %cst_72 = arith.constant dense<0.000000e+00> : vector<2x512xf32>
    %378 = tpu.matmul %377, %1, %cst_72 {dimension_numbers = #tpu.dot_dimension_numbers<[1], [0], [0], [1], [0, 0, 1, 1], [], []>} : vector<2x256xf32>, vector<256x512xf32>, vector<2x512xf32> -> vector<2x512xf32>
    %379 = arith.addf %378, %4 : vector<2x512xf32>
    %380 = vector.extract_strided_slice %379 {offsets = [0, 0], sizes = [2, 128], strides = [1, 1]} : vector<2x512xf32> to vector<2x128xf32>
    %381 = arith.negf %380 : vector<2x128xf32>
    %382 = math.exp %381 : vector<2x128xf32>
    %cst_73 = arith.constant 1.000000e+00 : f32
    %383 = vector.broadcast %cst_73 : f32 to vector<2x128xf32>
    %384 = arith.addf %383, %382 : vector<2x128xf32>
    %385 = arith.divf %383, %384 : vector<2x128xf32>
    %386 = vector.extract_strided_slice %379 {offsets = [0, 128], sizes = [2, 128], strides = [1, 1]} : vector<2x512xf32> to vector<2x128xf32>
    %387 = arith.negf %386 : vector<2x128xf32>
    %388 = math.exp %387 : vector<2x128xf32>
    %cst_74 = arith.constant 1.000000e+00 : f32
    %389 = vector.broadcast %cst_74 : f32 to vector<2x128xf32>
    %390 = arith.addf %389, %388 : vector<2x128xf32>
    %391 = arith.divf %389, %390 : vector<2x128xf32>
    %392 = vector.extract_strided_slice %379 {offsets = [0, 256], sizes = [2, 128], strides = [1, 1]} : vector<2x512xf32> to vector<2x128xf32>
    %393 = math.tanh %392 : vector<2x128xf32>
    %394 = vector.extract_strided_slice %379 {offsets = [0, 384], sizes = [2, 128], strides = [1, 1]} : vector<2x512xf32> to vector<2x128xf32>
    %395 = arith.negf %394 : vector<2x128xf32>
    %396 = math.exp %395 : vector<2x128xf32>
    %cst_75 = arith.constant 1.000000e+00 : f32
    %397 = vector.broadcast %cst_75 : f32 to vector<2x128xf32>
    %398 = arith.addf %397, %396 : vector<2x128xf32>
    %399 = arith.divf %397, %398 : vector<2x128xf32>
    %400 = arith.mulf %391, %345 : vector<2x128xf32>
    %401 = arith.mulf %385, %393 : vector<2x128xf32>
    %402 = arith.addf %400, %401 : vector<2x128xf32>
    %403 = math.tanh %402 : vector<2x128xf32>
    %404 = arith.mulf %399, %403 : vector<2x128xf32>
    %c7 = arith.constant 7 : index
    %c0_76 = arith.constant 0 : index
    %c0_77 = arith.constant 0 : index
    %405 = vector.load %arg0[%c7, %c0_76, %c0_77] : memref<8x2x512xf32, #tpu.memory_space<vmem>>, vector<1x2x512xf32>
    %406 = vector.shape_cast %405 : vector<1x2x512xf32> to vector<2x512xf32>
    %cst_78 = arith.constant dense<0.000000e+00> : vector<2x512xf32>
    %407 = tpu.matmul %376, %0, %cst_78 {dimension_numbers = #tpu.dot_dimension_numbers<[1], [0], [0], [1], [0, 0, 1, 1], [], []>} : vector<2x128xf32>, vector<128x512xf32>, vector<2x512xf32> -> vector<2x512xf32>
    %408 = arith.addf %406, %407 : vector<2x512xf32>
    %409 = vector.extract_strided_slice %408 {offsets = [0, 0], sizes = [2, 128], strides = [1, 1]} : vector<2x512xf32> to vector<2x128xf32>
    %410 = arith.negf %409 : vector<2x128xf32>
    %411 = math.exp %410 : vector<2x128xf32>
    %cst_79 = arith.constant 1.000000e+00 : f32
    %412 = vector.broadcast %cst_79 : f32 to vector<2x128xf32>
    %413 = arith.addf %412, %411 : vector<2x128xf32>
    %414 = arith.divf %412, %413 : vector<2x128xf32>
    %415 = vector.extract_strided_slice %408 {offsets = [0, 128], sizes = [2, 128], strides = [1, 1]} : vector<2x512xf32> to vector<2x128xf32>
    %416 = arith.negf %415 : vector<2x128xf32>
    %417 = math.exp %416 : vector<2x128xf32>
    %cst_80 = arith.constant 1.000000e+00 : f32
    %418 = vector.broadcast %cst_80 : f32 to vector<2x128xf32>
    %419 = arith.addf %418, %417 : vector<2x128xf32>
    %420 = arith.divf %418, %419 : vector<2x128xf32>
    %421 = vector.extract_strided_slice %408 {offsets = [0, 256], sizes = [2, 128], strides = [1, 1]} : vector<2x512xf32> to vector<2x128xf32>
    %422 = math.tanh %421 : vector<2x128xf32>
    %423 = vector.extract_strided_slice %408 {offsets = [0, 384], sizes = [2, 128], strides = [1, 1]} : vector<2x512xf32> to vector<2x128xf32>
    %424 = arith.negf %423 : vector<2x128xf32>
    %425 = math.exp %424 : vector<2x128xf32>
    %cst_81 = arith.constant 1.000000e+00 : f32
    %426 = vector.broadcast %cst_81 : f32 to vector<2x128xf32>
    %427 = arith.addf %426, %425 : vector<2x128xf32>
    %428 = arith.divf %426, %427 : vector<2x128xf32>
    %429 = arith.mulf %420, %374 : vector<2x128xf32>
    %430 = arith.mulf %414, %422 : vector<2x128xf32>
    %431 = arith.addf %429, %430 : vector<2x128xf32>
    %432 = math.tanh %431 : vector<2x128xf32>
    %433 = arith.mulf %428, %432 : vector<2x128xf32>
    %434 = tpu.concatenate %433, %404 in 1 : vector<2x128xf32>, vector<2x128xf32> -> vector<2x256xf32>
    %cst_82 = arith.constant dense<0.000000e+00> : vector<2x512xf32>
    %435 = tpu.matmul %434, %1, %cst_82 {dimension_numbers = #tpu.dot_dimension_numbers<[1], [0], [0], [1], [0, 0, 1, 1], [], []>} : vector<2x256xf32>, vector<256x512xf32>, vector<2x512xf32> -> vector<2x512xf32>
    %436 = arith.addf %435, %4 : vector<2x512xf32>
    %437 = vector.extract_strided_slice %436 {offsets = [0, 0], sizes = [2, 128], strides = [1, 1]} : vector<2x512xf32> to vector<2x128xf32>
    %438 = arith.negf %437 : vector<2x128xf32>
    %439 = math.exp %438 : vector<2x128xf32>
    %cst_83 = arith.constant 1.000000e+00 : f32
    %440 = vector.broadcast %cst_83 : f32 to vector<2x128xf32>
    %441 = arith.addf %440, %439 : vector<2x128xf32>
    %442 = arith.divf %440, %441 : vector<2x128xf32>
    %443 = vector.extract_strided_slice %436 {offsets = [0, 128], sizes = [2, 128], strides = [1, 1]} : vector<2x512xf32> to vector<2x128xf32>
    %444 = arith.negf %443 : vector<2x128xf32>
    %445 = math.exp %444 : vector<2x128xf32>
    %cst_84 = arith.constant 1.000000e+00 : f32
    %446 = vector.broadcast %cst_84 : f32 to vector<2x128xf32>
    %447 = arith.addf %446, %445 : vector<2x128xf32>
    %448 = arith.divf %446, %447 : vector<2x128xf32>
    %449 = vector.extract_strided_slice %436 {offsets = [0, 256], sizes = [2, 128], strides = [1, 1]} : vector<2x512xf32> to vector<2x128xf32>
    %450 = math.tanh %449 : vector<2x128xf32>
    %451 = vector.extract_strided_slice %436 {offsets = [0, 384], sizes = [2, 128], strides = [1, 1]} : vector<2x512xf32> to vector<2x128xf32>
    %452 = arith.negf %451 : vector<2x128xf32>
    %453 = math.exp %452 : vector<2x128xf32>
    %cst_85 = arith.constant 1.000000e+00 : f32
    %454 = vector.broadcast %cst_85 : f32 to vector<2x128xf32>
    %455 = arith.addf %454, %453 : vector<2x128xf32>
    %456 = arith.divf %454, %455 : vector<2x128xf32>
    %457 = arith.mulf %448, %402 : vector<2x128xf32>
    %458 = arith.mulf %442, %450 : vector<2x128xf32>
    %459 = arith.addf %457, %458 : vector<2x128xf32>
    %460 = math.tanh %459 : vector<2x128xf32>
    %461 = arith.mulf %456, %460 : vector<2x128xf32>
    %c0_86 = arith.constant 0 : index
    %c0_87 = arith.constant 0 : index
    %462 = vector.load %arg4[%c0_86, %c0_87] : memref<128x4xf32, #tpu.memory_space<vmem>>, vector<128x4xf32>
    %cst_88 = arith.constant dense<0.000000e+00> : vector<2x4xf32>
    %463 = tpu.matmul %461, %462, %cst_88 {dimension_numbers = #tpu.dot_dimension_numbers<[1], [0], [0], [1], [0, 0, 1, 1], [], []>} : vector<2x128xf32>, vector<128x4xf32>, vector<2x4xf32> -> vector<2x4xf32>
    %c0_89 = arith.constant 0 : index
    %c0_90 = arith.constant 0 : index
    %464 = vector.load %arg5[%c0_89, %c0_90] : memref<1x4xf32, #tpu.memory_space<vmem>>, vector<1x4xf32>
    %465 = vector.broadcast %464 : vector<1x4xf32> to vector<2x4xf32>
    %466 = arith.addf %463, %465 : vector<2x4xf32>
    %c0_91 = arith.constant 0 : index
    %c0_92 = arith.constant 0 : index
    %467 = vector.load %arg6[%c0_91, %c0_92] : memref<2x4xf32, #tpu.memory_space<vmem>>, vector<2x4xf32>
    tpu.vector_store %arg6[%c0_91, %c0_92], %466 {strides = array<i32>} : memref<2x4xf32, #tpu.memory_space<vmem>>, vector<2x4xf32>,
    return
  }
}

</mosaic_0001>

<llo_original>
// kernel: tpu_custom_call.1
$region0: #{tpu_custom_call.1}
  #allocation0 [shape = 'u32[]', space=smem, size = 0x4, offset = 0x4, fixed_abs, tag = 'smem constant byte address 0x4 - core index']
  #allocation1 [shape = 'u32[144,128]{1,0:T(1,128)}', space=vmem, size = 0x12000, scoped, tag = 'internal scratch']
  %s0 = inlined_call_operand.vmem [shape: f32[8,2,512], index: 0, kind: input, shape index: {}]
  %s1 = inlined_call_operand.hbm [shape: f32[128,512], index: 1, kind: input, shape index: {}]
  %s2 = inlined_call_operand.hbm [shape: f32[256,512], index: 2, kind: input, shape index: {}]
  %s3 = inlined_call_operand.vmem [shape: f32[1,512], index: 3, kind: input, shape index: {}]
  %s4 = inlined_call_operand.vmem [shape: f32[128,4], index: 4, kind: input, shape index: {}]
  %s5 = inlined_call_operand.vmem [shape: f32[1,4], index: 5, kind: input, shape index: {}]
  %s6 = inlined_call_operand.hbm [shape: f32[2,4], index: 6, kind: output, shape index: {}]
  %s7 = sld [smem:[#allocation0]]
  $region42: #{tpu_custom_call.1} parent=0
    _
  %s9 = ssub.s32 1, %s7
  %s10 = scalar_select 0, %s9, %s7
  $region1: #{tpu_custom_call.1} parent=0
    #allocation2 [shape = 'u8[262144]{0}', space=vmem, size = 0x40000, scoped, tag = 'input window, operand 1, single buffered']
    #allocation3 [shape = 's32[1]{0}', space=sflag, size = 0x4, scoped, tag = 'scoped memory for tpu_custom_call.1']
    #allocation4 [shape = 's32[1]{0}', space=sflag, size = 0x4, scoped, tag = 'scoped memory for tpu_custom_call.1']
    #allocation5 [shape = 'u8[524288]{0}', space=vmem, size = 0x80000, scoped, tag = 'input window, operand 2, single buffered']
    #allocation6 [shape = 's32[1]{0}', space=sflag, size = 0x4, scoped, tag = 'scoped memory for tpu_custom_call.1']
    #allocation7 [shape = 'u8[1024]{0}', space=vmem, size = 0x400, scoped, tag = 'output window, operand 0, single buffered']
    %11 = vsyncpa [#allocation3], 0
    %12 = vsyncpa [#allocation6], 0
    %13 = vsyncpa [#allocation4], 0
    // Predicated region
    $region2: #{tpu_custom_call.1} parent=1 // pred_check
      _
    $region3: #{tpu_custom_call.1} parent=1 // pred_check_branch
      %15 = sbr.rel (0) target = $region5
    $region4: #{tpu_custom_call.1} parent=1 // pred_region
      _
    $region5: #{tpu_custom_call.1} parent=1 // pred_fallthru
      _
    // Predicated region
    $region6: #{tpu_custom_call.1} parent=1 // pred_check
      _
    $region7: #{tpu_custom_call.1} parent=1 // pred_check_branch
      %17 = sbr.rel (0) target = $region9
    $region8: #{tpu_custom_call.1} parent=1 // pred_region
      %s19 = ssub.s32 8192, 8192
      %20 = vsyncadd [#allocation3], %s19
      %s21 = sshll.u32 [#allocation2], 4
      %s22 = int_to_ptr.vmem [resolvable:$true] %s21
      %27 = dma.hbm_to_vmem [thread:$0]  %s1, 8192, %s22, [#allocation3], 512, 512, 32
    $region9: #{tpu_custom_call.1} parent=1 // pred_fallthru
      _
    // Predicated region
    $region10: #{tpu_custom_call.1} parent=1 // pred_check
      _
    $region11: #{tpu_custom_call.1} parent=1 // pred_check_branch
      %29 = sbr.rel (0) target = $region13
    $region12: #{tpu_custom_call.1} parent=1 // pred_region
      %s31 = ssub.s32 16384, 16384
      %32 = vsyncadd [#allocation6], %s31
      %s33 = sshll.u32 [#allocation5], 4
      %s34 = int_to_ptr.vmem [resolvable:$true] %s33
      %39 = dma.hbm_to_vmem [thread:$0]  %s2, 16384, %s34, [#allocation6], 512, 512, 32
    $region13: #{tpu_custom_call.1} parent=1 // pred_fallthru
      _
    // Predicated region
    $region14: #{tpu_custom_call.1} parent=1 // pred_check
      _
    $region15: #{tpu_custom_call.1} parent=1 // pred_check_branch
      %41 = sbr.rel (0) target = $region17
    $region16: #{tpu_custom_call.1} parent=1 // pred_region
      _
    $region17: #{tpu_custom_call.1} parent=1 // pred_fallthru
      _
    // Predicated region
    $region18: #{tpu_custom_call.1} parent=1 // pred_check
      _
    $region19: #{tpu_custom_call.1} parent=1 // pred_check_branch
      %43 = sbr.rel (0) target = $region21
    $region20: #{tpu_custom_call.1} parent=1 // pred_region
      _
    $region21: #{tpu_custom_call.1} parent=1 // pred_fallthru
      _
    // Predicated region
    $region22: #{tpu_custom_call.1} parent=1 // pred_check
      _
    $region23: #{tpu_custom_call.1} parent=1 // pred_check_branch
      %45 = sbr.rel (0) target = $region25
    $region24: #{tpu_custom_call.1} parent=1 // pred_region
      _
    $region25: #{tpu_custom_call.1} parent=1 // pred_fallthru
      _
    // Predicated region
    $region26: #{tpu_custom_call.1} parent=1 // pred_check
      _
    $region27: #{tpu_custom_call.1} parent=1 // pred_check_branch
      %47 = sbr.rel (0) target = $region29
    $region28: #{tpu_custom_call.1} parent=1 // pred_region
      %48 = dma.done [#allocation3], 8192
    $region29: #{tpu_custom_call.1} parent=1 // pred_fallthru
      _
    // Predicated region
    $region30: #{tpu_custom_call.1} parent=1 // pred_check
      _
    $region31: #{tpu_custom_call.1} parent=1 // pred_check_branch
      %50 = sbr.rel (0) target = $region33
    $region32: #{tpu_custom_call.1} parent=1 // pred_region
      %51 = dma.done [#allocation6], 16384
    $region33: #{tpu_custom_call.1} parent=1 // pred_fallthru
      _
    %v52 = vld [vmem:[#allocation2] sm:$0xff]
    %v53 = vld [vmem:[#allocation2 + $0x8] sm:$0xff]
    %v54 = vld [vmem:[#allocation2 + $0x10] sm:$0xff]
    %v55 = vld [vmem:[#allocation2 + $0x18] sm:$0xff]
    %v56 = vld [vmem:[#allocation2 + $0x20] sm:$0xff]
    %v57 = vld [vmem:[#allocation2 + $0x28] sm:$0xff]
    %v58 = vld [vmem:[#allocation2 + $0x30] sm:$0xff]
    %v59 = vld [vmem:[#allocation2 + $0x38] sm:$0xff]
    %v60 = vld [vmem:[#allocation2 + $0x40] sm:$0xff]
    %v61 = vld [vmem:[#allocation2 + $0x48] sm:$0xff]
    %v62 = vld [vmem:[#allocation2 + $0x50] sm:$0xff]
    %v63 = vld [vmem:[#allocation2 + $0x58] sm:$0xff]
    %v64 = vld [vmem:[#allocation2 + $0x60] sm:$0xff]
    %v65 = vld [vmem:[#allocation2 + $0x68] sm:$0xff]
    %v66 = vld [vmem:[#allocation2 + $0x70] sm:$0xff]
    %v67 = vld [vmem:[#allocation2 + $0x78] sm:$0xff]
    %v68 = vld [vmem:[#allocation2 + $0x80] sm:$0xff]
    %v69 = vld [vmem:[#allocation2 + $0x88] sm:$0xff]
    %v70 = vld [vmem:[#allocation2 + $0x90] sm:$0xff]
    %v71 = vld [vmem:[#allocation2 + $0x98] sm:$0xff]
    %v72 = vld [vmem:[#allocation2 + $0xa0] sm:$0xff]
    %v73 = vld [vmem:[#allocation2 + $0xa8] sm:$0xff]
    %v74 = vld [vmem:[#allocation2 + $0xb0] sm:$0xff]
    %v75 = vld [vmem:[#allocation2 + $0xb8] sm:$0xff]
    %v76 = vld [vmem:[#allocation2 + $0xc0] sm:$0xff]
    %v77 = vld [vmem:[#allocation2 + $0xc8] sm:$0xff]
    %v78 = vld [vmem:[#allocation2 + $0xd0] sm:$0xff]
    %v79 = vld [vmem:[#allocation2 + $0xd8] sm:$0xff]
    %v80 = vld [vmem:[#allocation2 + $0xe0] sm:$0xff]
    %v81 = vld [vmem:[#allocation2 + $0xe8] sm:$0xff]
    %v82 = vld [vmem:[#allocation2 + $0xf0] sm:$0xff]
    %v83 = vld [vmem:[#allocation2 + $0xf8] sm:$0xff]
    %v84 = vld [vmem:[#allocation2 + $0x100] sm:$0xff]
    %v85 = vld [vmem:[#allocation2 + $0x108] sm:$0xff]
    %v86 = vld [vmem:[#allocation2 + $0x110] sm:$0xff]
    %v87 = vld [vmem:[#allocation2 + $0x118] sm:$0xff]
    %v88 = vld [vmem:[#allocation2 + $0x120] sm:$0xff]
    %v89 = vld [vmem:[#allocation2 + $0x128] sm:$0xff]
    %v90 = vld [vmem:[#allocation2 + $0x130] sm:$0xff]
    %v91 = vld [vmem:[#allocation2 + $0x138] sm:$0xff]
    %v92 = vld [vmem:[#allocation2 + $0x140] sm:$0xff]
    %v93 = vld [vmem:[#allocation2 + $0x148] sm:$0xff]
    %v94 = vld [vmem:[#allocation2 + $0x150] sm:$0xff]
    %v95 = vld [vmem:[#allocation2 + $0x158] sm:$0xff]
    %v96 = vld [vmem:[#allocation2 + $0x160] sm:$0xff]
    %v97 = vld [vmem:[#allocation2 + $0x168] sm:$0xff]
    %v98 = vld [vmem:[#allocation2 + $0x170] sm:$0xff]
    %v99 = vld [vmem:[#allocation2 + $0x178] sm:$0xff]
    %v100 = vld [vmem:[#allocation2 + $0x180] sm:$0xff]
    %v101 = vld [vmem:[#allocation2 + $0x188] sm:$0xff]
    %v102 = vld [vmem:[#allocation2 + $0x190] sm:$0xff]
    %v103 = vld [vmem:[#allocation2 + $0x198] sm:$0xff]
    %v104 = vld [vmem:[#allocation2 + $0x1a0] sm:$0xff]
    %v105 = vld [vmem:[#allocation2 + $0x1a8] sm:$0xff]
    %v106 = vld [vmem:[#allocation2 + $0x1b0] sm:$0xff]
    %v107 = vld [vmem:[#allocation2 + $0x1b8] sm:$0xff]
    %v108 = vld [vmem:[#allocation2 + $0x1c0] sm:$0xff]
    %v109 = vld [vmem:[#allocation2 + $0x1c8] sm:$0xff]
    %v110 = vld [vmem:[#allocation2 + $0x1d0] sm:$0xff]
    %v111 = vld [vmem:[#allocation2 + $0x1d8] sm:$0xff]
    %v112 = vld [vmem:[#allocation2 + $0x1e0] sm:$0xff]
    %v113 = vld [vmem:[#allocation2 + $0x1e8] sm:$0xff]
    %v114 = vld [vmem:[#allocation2 + $0x1f0] sm:$0xff]
    %v115 = vld [vmem:[#allocation2 + $0x1f8] sm:$0xff]
    %v116 = vld [vmem:[#allocation5] sm:$0xff]
    %v117 = vld [vmem:[#allocation5 + $0x8] sm:$0xff]
    %v118 = vld [vmem:[#allocation5 + $0x10] sm:$0xff]
    %v119 = vld [vmem:[#allocation5 + $0x18] sm:$0xff]
    %v120 = vld [vmem:[#allocation5 + $0x20] sm:$0xff]
    %v121 = vld [vmem:[#allocation5 + $0x28] sm:$0xff]
    %v122 = vld [vmem:[#allocation5 + $0x30] sm:$0xff]
    %v123 = vld [vmem:[#allocation5 + $0x38] sm:$0xff]
    %v124 = vld [vmem:[#allocation5 + $0x40] sm:$0xff]
    %v125 = vld [vmem:[#allocation5 + $0x48] sm:$0xff]
    %v126 = vld [vmem:[#allocation5 + $0x50] sm:$0xff]
    %v127 = vld [vmem:[#allocation5 + $0x58] sm:$0xff]
    %v128 = vld [vmem:[#allocation5 + $0x60] sm:$0xff]
    %v129 = vld [vmem:[#allocation5 + $0x68] sm:$0xff]
    %v130 = vld [vmem:[#allocation5 + $0x70] sm:$0xff]
    %v131 = vld [vmem:[#allocation5 + $0x78] sm:$0xff]
    %v132 = vld [vmem:[#allocation5 + $0x80] sm:$0xff]
    %v133 = vld [vmem:[#allocation5 + $0x88] sm:$0xff]
    %v134 = vld [vmem:[#allocation5 + $0x90] sm:$0xff]
    %v135 = vld [vmem:[#allocation5 + $0x98] sm:$0xff]
    %v136 = vld [vmem:[#allocation5 + $0xa0] sm:$0xff]
    %v137 = vld [vmem:[#allocation5 + $0xa8] sm:$0xff]
    %v138 = vld [vmem:[#allocation5 + $0xb0] sm:$0xff]
    %v139 = vld [vmem:[#allocation5 + $0xb8] sm:$0xff]
    %v140 = vld [vmem:[#allocation5 + $0xc0] sm:$0xff]
    %v141 = vld [vmem:[#allocation5 + $0xc8] sm:$0xff]
    %v142 = vld [vmem:[#allocation5 + $0xd0] sm:$0xff]
    %v143 = vld [vmem:[#allocation5 + $0xd8] sm:$0xff]
    %v144 = vld [vmem:[#allocation5 + $0xe0] sm:$0xff]
    %v145 = vld [vmem:[#allocation5 + $0xe8] sm:$0xff]
    %v146 = vld [vmem:[#allocation5 + $0xf0] sm:$0xff]
    %v147 = vld [vmem:[#allocation5 + $0xf8] sm:$0xff]
    %v148 = vld [vmem:[#allocation5 + $0x100] sm:$0xff]
    %v149 = vld [vmem:[#allocation5 + $0x108] sm:$0xff]
    %v150 = vld [vmem:[#allocation5 + $0x110] sm:$0xff]
    %v151 = vld [vmem:[#allocation5 + $0x118] sm:$0xff]
    %v152 = vld [vmem:[#allocation5 + $0x120] sm:$0xff]
    %v153 = vld [vmem:[#allocation5 + $0x128] sm:$0xff]
    %v154 = vld [vmem:[#allocation5 + $0x130] sm:$0xff]
    %v155 = vld [vmem:[#allocation5 + $0x138] sm:$0xff]
    %v156 = vld [vmem:[#allocation5 + $0x140] sm:$0xff]
    %v157 = vld [vmem:[#allocation5 + $0x148] sm:$0xff]
    %v158 = vld [vmem:[#allocation5 + $0x150] sm:$0xff]
    %v159 = vld [vmem:[#allocation5 + $0x158] sm:$0xff]
    %v160 = vld [vmem:[#allocation5 + $0x160] sm:$0xff]
    %v161 = vld [vmem:[#allocation5 + $0x168] sm:$0xff]
    %v162 = vld [vmem:[#allocation5 + $0x170] sm:$0xff]
    %v163 = vld [vmem:[#allocation5 + $0x178] sm:$0xff]
    %v164 = vld [vmem:[#allocation5 + $0x180] sm:$0xff]
    %v165 = vld [vmem:[#allocation5 + $0x188] sm:$0xff]
    %v166 = vld [vmem:[#allocation5 + $0x190] sm:$0xff]
    %v167 = vld [vmem:[#allocation5 + $0x198] sm:$0xff]
    %v168 = vld [vmem:[#allocation5 + $0x1a0] sm:$0xff]
    %v169 = vld [vmem:[#allocation5 + $0x1a8] sm:$0xff]
    %v170 = vld [vmem:[#allocation5 + $0x1b0] sm:$0xff]
    %v171 = vld [vmem:[#allocation5 + $0x1b8] sm:$0xff]
    %v172 = vld [vmem:[#allocation5 + $0x1c0] sm:$0xff]
    %v173 = vld [vmem:[#allocation5 + $0x1c8] sm:$0xff]
    %v174 = vld [vmem:[#allocation5 + $0x1d0] sm:$0xff]
    %v175 = vld [vmem:[#allocation5 + $0x1d8] sm:$0xff]
    %v176 = vld [vmem:[#allocation5 + $0x1e0] sm:$0xff]
    %v177 = vld [vmem:[#allocation5 + $0x1e8] sm:$0xff]
    %v178 = vld [vmem:[#allocation5 + $0x1f0] sm:$0xff]
    %v179 = vld [vmem:[#allocation5 + $0x1f8] sm:$0xff]
    %v180 = vld [vmem:[#allocation5 + $0x200] sm:$0xff]
    %v181 = vld [vmem:[#allocation5 + $0x208] sm:$0xff]
    %v182 = vld [vmem:[#allocation5 + $0x210] sm:$0xff]
    %v183 = vld [vmem:[#allocation5 + $0x218] sm:$0xff]
    %v184 = vld [vmem:[#allocation5 + $0x220] sm:$0xff]
    %v185 = vld [vmem:[#allocation5 + $0x228] sm:$0xff]
    %v186 = vld [vmem:[#allocation5 + $0x230] sm:$0xff]
    %v187 = vld [vmem:[#allocation5 + $0x238] sm:$0xff]
    %v188 = vld [vmem:[#allocation5 + $0x240] sm:$0xff]
    %v189 = vld [vmem:[#allocation5 + $0x248] sm:$0xff]
    %v190 = vld [vmem:[#allocation5 + $0x250] sm:$0xff]
    %v191 = vld [vmem:[#allocation5 + $0x258] sm:$0xff]
    %v192 = vld [vmem:[#allocation5 + $0x260] sm:$0xff]
    %v193 = vld [vmem:[#allocation5 + $0x268] sm:$0xff]
    %v194 = vld [vmem:[#allocation5 + $0x270] sm:$0xff]
    %v195 = vld [vmem:[#allocation5 + $0x278] sm:$0xff]
    %v196 = vld [vmem:[#allocation5 + $0x280] sm:$0xff]
    %v197 = vld [vmem:[#allocation5 + $0x288] sm:$0xff]
    %v198 = vld [vmem:[#allocation5 + $0x290] sm:$0xff]
    %v199 = vld [vmem:[#allocation5 + $0x298] sm:$0xff]
    %v200 = vld [vmem:[#allocation5 + $0x2a0] sm:$0xff]
    %v201 = vld [vmem:[#allocation5 + $0x2a8] sm:$0xff]
    %v202 = vld [vmem:[#allocation5 + $0x2b0] sm:$0xff]
    %v203 = vld [vmem:[#allocation5 + $0x2b8] sm:$0xff]
    %v204 = vld [vmem:[#allocation5 + $0x2c0] sm:$0xff]
    %v205 = vld [vmem:[#allocation5 + $0x2c8] sm:$0xff]
    %v206 = vld [vmem:[#allocation5 + $0x2d0] sm:$0xff]
    %v207 = vld [vmem:[#allocation5 + $0x2d8] sm:$0xff]
    %v208 = vld [vmem:[#allocation5 + $0x2e0] sm:$0xff]
    %v209 = vld [vmem:[#allocation5 + $0x2e8] sm:$0xff]
    %v210 = vld [vmem:[#allocation5 + $0x2f0] sm:$0xff]
    %v211 = vld [vmem:[#allocation5 + $0x2f8] sm:$0xff]
    %v212 = vld [vmem:[#allocation5 + $0x300] sm:$0xff]
    %v213 = vld [vmem:[#allocation5 + $0x308] sm:$0xff]
    %v214 = vld [vmem:[#allocation5 + $0x310] sm:$0xff]
    %v215 = vld [vmem:[#allocation5 + $0x318] sm:$0xff]
    %v216 = vld [vmem:[#allocation5 + $0x320] sm:$0xff]
    %v217 = vld [vmem:[#allocation5 + $0x328] sm:$0xff]
    %v218 = vld [vmem:[#allocation5 + $0x330] sm:$0xff]
    %v219 = vld [vmem:[#allocation5 + $0x338] sm:$0xff]
    %v220 = vld [vmem:[#allocation5 + $0x340] sm:$0xff]
    %v221 = vld [vmem:[#allocation5 + $0x348] sm:$0xff]
    %v222 = vld [vmem:[#allocation5 + $0x350] sm:$0xff]
    %v223 = vld [vmem:[#allocation5 + $0x358] sm:$0xff]
    %v224 = vld [vmem:[#allocation5 + $0x360] sm:$0xff]
    %v225 = vld [vmem:[#allocation5 + $0x368] sm:$0xff]
    %v226 = vld [vmem:[#allocation5 + $0x370] sm:$0xff]
    %v227 = vld [vmem:[#allocation5 + $0x378] sm:$0xff]
    %v228 = vld [vmem:[#allocation5 + $0x380] sm:$0xff]
    %v229 = vld [vmem:[#allocation5 + $0x388] sm:$0xff]
    %v230 = vld [vmem:[#allocation5 + $0x390] sm:$0xff]
    %v231 = vld [vmem:[#allocation5 + $0x398] sm:$0xff]
    %v232 = vld [vmem:[#allocation5 + $0x3a0] sm:$0xff]
    %v233 = vld [vmem:[#allocation5 + $0x3a8] sm:$0xff]
    %v234 = vld [vmem:[#allocation5 + $0x3b0] sm:$0xff]
    %v235 = vld [vmem:[#allocation5 + $0x3b8] sm:$0xff]
    %v236 = vld [vmem:[#allocation5 + $0x3c0] sm:$0xff]
    %v237 = vld [vmem:[#allocation5 + $0x3c8] sm:$0xff]
    %v238 = vld [vmem:[#allocation5 + $0x3d0] sm:$0xff]
    %v239 = vld [vmem:[#allocation5 + $0x3d8] sm:$0xff]
    %v240 = vld [vmem:[#allocation5 + $0x3e0] sm:$0xff]
    %v241 = vld [vmem:[#allocation5 + $0x3e8] sm:$0xff]
    %v242 = vld [vmem:[#allocation5 + $0x3f0] sm:$0xff]
    %v243 = vld [vmem:[#allocation5 + $0x3f8] sm:$0xff]
    %v244 = vld [vmem:[%s3] sm:$0xf]
    %v246 = vlaneseq
    %v247 = vshrl.u32 %v246, 7
    %v248 = vsub.s32 0, %v247
    %v249 = vrot.slane %v244, %v248
    %v250 = vlaneseq
    %v251 = vshrl.u32 %v250, 7
    %v252 = vsub.s32 1, %v251
    %v253 = vrot.slane %v244, %v252
    %v254 = vlaneseq
    %v255 = vshrl.u32 %v254, 7
    %v256 = vsub.s32 2, %v255
    %v257 = vrot.slane %v244, %v256
    %v258 = vlaneseq
    %v259 = vshrl.u32 %v258, 7
    %v260 = vsub.s32 3, %v259
    %v261 = vrot.slane %v244, %v260
    %v266 = vld [vmem:[%s0] sm:$0xff]
    %267 = vmatprep.subr.mxu0 %v53
    %268 = vmatpush1.msra.mxu0 %v52
    %269 = vmatprep.subr.mxu0 %v57
    %270 = vmatpush1.msra.mxu0 %v56
    %271 = vmatprep.subr.mxu0 %v61
    %272 = vmatpush1.msra.mxu0 %v60
    %273 = vmatprep.subr.mxu0 %v65
    %274 = vmatpush1.msra.mxu0 %v64
    %275 = vmatprep.subr.mxu0 %v69
    %276 = vmatpush1.msra.mxu0 %v68
    %277 = vmatprep.subr.mxu0 %v73
    %278 = vmatpush1.msra.mxu0 %v72
    %279 = vmatprep.subr.mxu0 %v77
    %280 = vmatpush1.msra.mxu0 %v76
    %281 = vmatprep.subr.mxu0 %v81
    %282 = vmatpush1.msra.mxu0 %v80
    %283 = vmatprep.subr.mxu0 %v85
    %284 = vmatpush1.msra.mxu0 %v84
    %285 = vmatprep.subr.mxu0 %v89
    %286 = vmatpush1.msra.mxu0 %v88
    %287 = vmatprep.subr.mxu0 %v93
    %288 = vmatpush1.msra.mxu0 %v92
    %289 = vmatprep.subr.mxu0 %v97
    %290 = vmatpush1.msra.mxu0 %v96
    %291 = vmatprep.subr.mxu0 %v101
    %292 = vmatpush1.msra.mxu0 %v100
    %293 = vmatprep.subr.mxu0 %v105
    %294 = vmatpush1.msra.mxu0 %v104
    %295 = vmatprep.subr.mxu0 %v109
    %296 = vmatpush1.msra.mxu0 %v108
    %297 = vmatprep.subr.mxu0 %v113
    %298 = vmatpush1.msra.mxu0 %v112
    %299 = vmatprep.subr.mxu0 0.0
    %300 = vmatpush1.msra.mxu0 0.0
    %301 = vmatprep.subr.mxu0 0.0
    %302 = vmatpush1.msra.mxu0 0.0
    %303 = vmatprep.subr.mxu0 0.0
    %304 = vmatpush1.msra.mxu0 0.0
    %305 = vmatprep.subr.mxu0 0.0
    %306 = vmatpush1.msra.mxu0 0.0
    %307 = vmatprep.subr.mxu0 0.0
    %308 = vmatpush1.msra.mxu0 0.0
    %309 = vmatprep.subr.mxu0 0.0
    %310 = vmatpush1.msra.mxu0 0.0
    %311 = vmatprep.subr.mxu0 0.0
    %312 = vmatpush1.msra.mxu0 0.0
    %313 = vmatprep.subr.mxu0 0.0
    %314 = vmatpush1.msra.mxu0 0.0
    %315 = vmatprep.subr.mxu0 0.0
    %316 = vmatpush1.msra.mxu0 0.0
    %317 = vmatprep.subr.mxu0 0.0
    %318 = vmatpush1.msra.mxu0 0.0
    %319 = vmatprep.subr.mxu0 0.0
    %320 = vmatpush1.msra.mxu0 0.0
    %321 = vmatprep.subr.mxu0 0.0
    %322 = vmatpush1.msra.mxu0 0.0
    %323 = vmatprep.subr.mxu0 0.0
    %324 = vmatpush1.msra.mxu0 0.0
    %325 = vmatprep.subr.mxu0 0.0
    %326 = vmatpush1.msra.mxu0 0.0
    %327 = vmatprep.subr.mxu0 0.0
    %328 = vmatpush1.msra.mxu0 0.0
    %329 = vmatprep.subr.mxu0 0.0
    %330 = vmatpush1.msra.mxu0 0.0
    %331 = vmatprep.mubr.f32.mxu0 0.0
    %332 = vmatmul.mubr.f32.gmra.mrb[0].mxu0 0.0
    %v333 = vpop.f32.mrb[0].mxu0
    %v334 = vadd.f32 0.0, %v333
    %v335 = vpop.f32.mrb[0].mxu0
    %v336 = vadd.f32 0.0, %v335
    %337 = vdwg.mxu0
    %338 = vmatprep.subr.mxu0 %v55
    %339 = vmatpush1.msra.mxu0 %v54
    %340 = vmatprep.subr.mxu0 %v59
    %341 = vmatpush1.msra.mxu0 %v58
    %342 = vmatprep.subr.mxu0 %v63
    %343 = vmatpush1.msra.mxu0 %v62
    %344 = vmatprep.subr.mxu0 %v67
    %345 = vmatpush1.msra.mxu0 %v66
    %346 = vmatprep.subr.mxu0 %v71
    %347 = vmatpush1.msra.mxu0 %v70
    %348 = vmatprep.subr.mxu0 %v75
    %349 = vmatpush1.msra.mxu0 %v74
    %350 = vmatprep.subr.mxu0 %v79
    %351 = vmatpush1.msra.mxu0 %v78
    %352 = vmatprep.subr.mxu0 %v83
    %353 = vmatpush1.msra.mxu0 %v82
    %354 = vmatprep.subr.mxu0 %v87
    %355 = vmatpush1.msra.mxu0 %v86
    %356 = vmatprep.subr.mxu0 %v91
    %357 = vmatpush1.msra.mxu0 %v90
    %358 = vmatprep.subr.mxu0 %v95
    %359 = vmatpush1.msra.mxu0 %v94
    %360 = vmatprep.subr.mxu0 %v99
    %361 = vmatpush1.msra.mxu0 %v98
    %362 = vmatprep.subr.mxu0 %v103
    %363 = vmatpush1.msra.mxu0 %v102
    %364 = vmatprep.subr.mxu0 %v107
    %365 = vmatpush1.msra.mxu0 %v106
    %366 = vmatprep.subr.mxu0 %v111
    %367 = vmatpush1.msra.mxu0 %v110
    %368 = vmatprep.subr.mxu0 %v115
    %369 = vmatpush1.msra.mxu0 %v114
    %370 = vmatprep.subr.mxu0 0.0
    %371 = vmatpush1.msra.mxu0 0.0
    %372 = vmatprep.subr.mxu0 0.0
    %373 = vmatpush1.msra.mxu0 0.0
    %374 = vmatprep.subr.mxu0 0.0
    %375 = vmatpush1.msra.mxu0 0.0
    %376 = vmatprep.subr.mxu0 0.0
    %377 = vmatpush1.msra.mxu0 0.0
    %378 = vmatprep.subr.mxu0 0.0
    %379 = vmatpush1.msra.mxu0 0.0
    %380 = vmatprep.subr.mxu0 0.0
    %381 = vmatpush1.msra.mxu0 0.0
    %382 = vmatprep.subr.mxu0 0.0
    %383 = vmatpush1.msra.mxu0 0.0
    %384 = vmatprep.subr.mxu0 0.0
    %385 = vmatpush1.msra.mxu0 0.0
    %386 = vmatprep.subr.mxu0 0.0
    %387 = vmatpush1.msra.mxu0 0.0
    %388 = vmatprep.subr.mxu0 0.0
    %389 = vmatpush1.msra.mxu0 0.0
    %390 = vmatprep.subr.mxu0 0.0
    %391 = vmatpush1.msra.mxu0 0.0
    %392 = vmatprep.subr.mxu0 0.0
    %393 = vmatpush1.msra.mxu0 0.0
    %394 = vmatprep.subr.mxu0 0.0
    %395 = vmatpush1.msra.mxu0 0.0
    %396 = vmatprep.subr.mxu0 0.0
    %397 = vmatpush1.msra.mxu0 0.0
    %398 = vmatprep.subr.mxu0 0.0
    %399 = vmatpush1.msra.mxu0 0.0
    %400 = vmatprep.subr.mxu0 0.0
    %401 = vmatpush1.msra.mxu0 0.0
    %402 = vmatprep.mubr.f32.mxu0 0.0
    %403 = vmatmul.mubr.f32.gmra.mrb[0].mxu0 0.0
    %v404 = vpop.f32.mrb[0].mxu0
    %v405 = vadd.f32 0.0, %v404
    %v406 = vpop.f32.mrb[0].mxu0
    %v407 = vadd.f32 0.0, %v406
    %408 = vdwg.mxu0
    %v413 = vcombine.low %v334, %v336
    %v414 = vcombine.low %v405, %v407
    %v416 = vunpack.c.l.s4 1983009808
    %v417 = vunpack.c.0.s8 %v416
    %v418 = vlaneseq
    %v419 = vshrl.u32 %v418, 7
    %v420 = vsub.s32 %v417, %v419
    %v421 = vrot.slane %v413, %v420
    %v423 = vunpack.c.l.s4 1983009808
    %v424 = vunpack.c.0.s8 %v423
    %v425 = vlaneseq
    %v426 = vshrl.u32 %v425, 7
    %v427 = vsub.s32 %v424, %v426
    %v428 = vrot.slane %v414, %v427
    %v429 = vcombine.low %v421, %v428
    %v431 = vadd.f32 %v266, %v429
    %v432 = vxor.u32 %v431, 2147483648
    %v433 = vmul.f32 %v432, 1.442695
    %v434 = vpow.pop %v433
    %v435 = vadd.f32 %v434, 1.0
    %v436 = vrcp.pop %v435
    %v437 = vmul.f32 1.0, %v436
    %v439 = vrot.slane %v431, 2
    %v441 = vxor.u32 %v439, 2147483648
    %v442 = vmul.f32 %v441, 1.442695
    %v443 = vpow.pop %v442
    %v444 = vadd.f32 %v443, 1.0
    %v445 = vrcp.pop %v444
    %v446 = vmul.f32 1.0, %v445
    %v447 = vrot.slane %v431, 4
    %v449 = vtanh.pop %v447
    %v450 = vrot.slane %v431, 6
    %v452 = vxor.u32 %v450, 2147483648
    %v453 = vmul.f32 %v452, 1.442695
    %v454 = vpow.pop %v453
    %v455 = vadd.f32 %v454, 1.0
    %v456 = vrcp.pop %v455
    %v457 = vmul.f32 1.0, %v456
    %v458 = vmul.f32 %v446, 0.0
    %v459 = vmul.f32 %v437, %v449
    %v460 = vadd.f32 %v458, %v459
    %v461 = vtanh.pop %v460
    %v462 = vmul.f32 %v457, %v461
    %463 = vmatprep.subr.mxu0 %v117
    %464 = vmatpush1.msra.mxu0 %v116
    %465 = vmatprep.subr.mxu0 %v121
    %466 = vmatpush1.msra.mxu0 %v120
    %467 = vmatprep.subr.mxu0 %v125
    %468 = vmatpush1.msra.mxu0 %v124
    %469 = vmatprep.subr.mxu0 %v129
    %470 = vmatpush1.msra.mxu0 %v128
    %471 = vmatprep.subr.mxu0 %v133
    %472 = vmatpush1.msra.mxu0 %v132
    %473 = vmatprep.subr.mxu0 %v137
    %474 = vmatpush1.msra.mxu0 %v136
    %475 = vmatprep.subr.mxu0 %v141
    %476 = vmatpush1.msra.mxu0 %v140
    %477 = vmatprep.subr.mxu0 %v145
    %478 = vmatpush1.msra.mxu0 %v144
    %479 = vmatprep.subr.mxu0 %v149
    %480 = vmatpush1.msra.mxu0 %v148
    %481 = vmatprep.subr.mxu0 %v153
    %482 = vmatpush1.msra.mxu0 %v152
    %483 = vmatprep.subr.mxu0 %v157
    %484 = vmatpush1.msra.mxu0 %v156
    %485 = vmatprep.subr.mxu0 %v161
    %486 = vmatpush1.msra.mxu0 %v160
    %487 = vmatprep.subr.mxu0 %v165
    %488 = vmatpush1.msra.mxu0 %v164
    %489 = vmatprep.subr.mxu0 %v169
    %490 = vmatpush1.msra.mxu0 %v168
    %491 = vmatprep.subr.mxu0 %v173
    %492 = vmatpush1.msra.mxu0 %v172
    %493 = vmatprep.subr.mxu0 %v177
    %494 = vmatpush1.msra.mxu0 %v176
    %495 = vmatprep.subr.mxu0 %v181
    %496 = vmatpush1.msra.mxu0 %v180
    %497 = vmatprep.subr.mxu0 %v185
    %498 = vmatpush1.msra.mxu0 %v184
    %499 = vmatprep.subr.mxu0 %v189
    %500 = vmatpush1.msra.mxu0 %v188
    %501 = vmatprep.subr.mxu0 %v193
    %502 = vmatpush1.msra.mxu0 %v192
    %503 = vmatprep.subr.mxu0 %v197
    %504 = vmatpush1.msra.mxu0 %v196
    %505 = vmatprep.subr.mxu0 %v201
    %506 = vmatpush1.msra.mxu0 %v200
    %507 = vmatprep.subr.mxu0 %v205
    %508 = vmatpush1.msra.mxu0 %v204
    %509 = vmatprep.subr.mxu0 %v209
    %510 = vmatpush1.msra.mxu0 %v208
    %511 = vmatprep.subr.mxu0 %v213
    %512 = vmatpush1.msra.mxu0 %v212
    %513 = vmatprep.subr.mxu0 %v217
    %514 = vmatpush1.msra.mxu0 %v216
    %515 = vmatprep.subr.mxu0 %v221
    %516 = vmatpush1.msra.mxu0 %v220
    %517 = vmatprep.subr.mxu0 %v225
    %518 = vmatpush1.msra.mxu0 %v224
    %519 = vmatprep.subr.mxu0 %v229
    %520 = vmatpush1.msra.mxu0 %v228
    %521 = vmatprep.subr.mxu0 %v233
    %522 = vmatpush1.msra.mxu0 %v232
    %523 = vmatprep.subr.mxu0 %v237
    %524 = vmatpush1.msra.mxu0 %v236
    %525 = vmatprep.subr.mxu0 %v241
    %526 = vmatpush1.msra.mxu0 %v240
    %527 = vmatprep.mubr.f32.mxu0 0.0
    %528 = vmatmul.mubr.f32.gmra.mrb[0].mxu0 %v462
    %v529 = vpop.f32.mrb[0].mxu0
    %v530 = vadd.f32 %v249, %v529
    %v531 = vpop.f32.mrb[0].mxu0
    %v532 = vadd.f32 %v253, %v531
    %533 = vdwg.mxu0
    %534 = vmatprep.subr.mxu0 %v119
    %535 = vmatpush1.msra.mxu0 %v118
    %536 = vmatprep.subr.mxu0 %v123
    %537 = vmatpush1.msra.mxu0 %v122
    %538 = vmatprep.subr.mxu0 %v127
    %539 = vmatpush1.msra.mxu0 %v126
    %540 = vmatprep.subr.mxu0 %v131
    %541 = vmatpush1.msra.mxu0 %v130
    %542 = vmatprep.subr.mxu0 %v135
    %543 = vmatpush1.msra.mxu0 %v134
    %544 = vmatprep.subr.mxu0 %v139
    %545 = vmatpush1.msra.mxu0 %v138
    %546 = vmatprep.subr.mxu0 %v143
    %547 = vmatpush1.msra.mxu0 %v142
    %548 = vmatprep.subr.mxu0 %v147
    %549 = vmatpush1.msra.mxu0 %v146
    %550 = vmatprep.subr.mxu0 %v151
    %551 = vmatpush1.msra.mxu0 %v150
    %552 = vmatprep.subr.mxu0 %v155
    %553 = vmatpush1.msra.mxu0 %v154
    %554 = vmatprep.subr.mxu0 %v159
    %555 = vmatpush1.msra.mxu0 %v158
    %556 = vmatprep.subr.mxu0 %v163
    %557 = vmatpush1.msra.mxu0 %v162
    %558 = vmatprep.subr.mxu0 %v167
    %559 = vmatpush1.msra.mxu0 %v166
    %560 = vmatprep.subr.mxu0 %v171
    %561 = vmatpush1.msra.mxu0 %v170
    %562 = vmatprep.subr.mxu0 %v175
    %563 = vmatpush1.msra.mxu0 %v174
    %564 = vmatprep.subr.mxu0 %v179
    %565 = vmatpush1.msra.mxu0 %v178
    %566 = vmatprep.subr.mxu0 %v183
    %567 = vmatpush1.msra.mxu0 %v182
    %568 = vmatprep.subr.mxu0 %v187
    %569 = vmatpush1.msra.mxu0 %v186
    %570 = vmatprep.subr.mxu0 %v191
    %571 = vmatpush1.msra.mxu0 %v190
    %572 = vmatprep.subr.mxu0 %v195
    %573 = vmatpush1.msra.mxu0 %v194
    %574 = vmatprep.subr.mxu0 %v199
    %575 = vmatpush1.msra.mxu0 %v198
    %576 = vmatprep.subr.mxu0 %v203
    %577 = vmatpush1.msra.mxu0 %v202
    %578 = vmatprep.subr.mxu0 %v207
    %579 = vmatpush1.msra.mxu0 %v206
    %580 = vmatprep.subr.mxu0 %v211
    %581 = vmatpush1.msra.mxu0 %v210
    %582 = vmatprep.subr.mxu0 %v215
    %583 = vmatpush1.msra.mxu0 %v214
    %584 = vmatprep.subr.mxu0 %v219
    %585 = vmatpush1.msra.mxu0 %v218
    %586 = vmatprep.subr.mxu0 %v223
    %587 = vmatpush1.msra.mxu0 %v222
    %588 = vmatprep.subr.mxu0 %v227
    %589 = vmatpush1.msra.mxu0 %v226
    %590 = vmatprep.subr.mxu0 %v231
    %591 = vmatpush1.msra.mxu0 %v230
    %592 = vmatprep.subr.mxu0 %v235
    %593 = vmatpush1.msra.mxu0 %v234
    %594 = vmatprep.subr.mxu0 %v239
    %595 = vmatpush1.msra.mxu0 %v238
    %596 = vmatprep.subr.mxu0 %v243
    %597 = vmatpush1.msra.mxu0 %v242
    %598 = vmatprep.mubr.f32.mxu0 0.0
    %599 = vmatmul.mubr.f32.gmra.mrb[0].mxu0 %v462
    %v600 = vpop.f32.mrb[0].mxu0
    %v601 = vadd.f32 %v257, %v600
    %v602 = vpop.f32.mrb[0].mxu0
    %v603 = vadd.f32 %v261, %v602
    %604 = vdwg.mxu0
    %v605 = vxor.u32 %v530, 2147483648
    %v606 = vmul.f32 %v605, 1.442695
    %v607 = vpow.pop %v606
    %v608 = vadd.f32 %v607, 1.0
    %v609 = vrcp.pop %v608
    %v610 = vmul.f32 1.0, %v609
    %v611 = vxor.u32 %v532, 2147483648
    %v612 = vmul.f32 %v611, 1.442695
    %v613 = vpow.pop %v612
    %v614 = vadd.f32 %v613, 1.0
    %v615 = vrcp.pop %v614
    %v616 = vmul.f32 1.0, %v615
    %v617 = vtanh.pop %v601
    %v618 = vxor.u32 %v603, 2147483648
    %v619 = vmul.f32 %v618, 1.442695
    %v620 = vpow.pop %v619
    %v621 = vadd.f32 %v620, 1.0
    %v622 = vrcp.pop %v621
    %v623 = vmul.f32 1.0, %v622
    %v624 = vmul.f32 %v616, 0.0
    %v625 = vmul.f32 %v610, %v617
    %v626 = vadd.f32 %v624, %v625
    %v627 = vtanh.pop %v626
    %v628 = vmul.f32 %v623, %v627
    %s629 = scalar_lea.vmem %s0, 8
    %v630 = vld [vmem:[%s629] sm:$0xff]
    %631 = vmatprep.subr.mxu0 %v53
    %632 = vmatpush1.msra.mxu0 %v52
    %633 = vmatprep.subr.mxu0 %v57
    %634 = vmatpush1.msra.mxu0 %v56
    %635 = vmatprep.subr.mxu0 %v61
    %636 = vmatpush1.msra.mxu0 %v60
    %637 = vmatprep.subr.mxu0 %v65
    %638 = vmatpush1.msra.mxu0 %v64
    %639 = vmatprep.subr.mxu0 %v69
    %640 = vmatpush1.msra.mxu0 %v68
    %641 = vmatprep.subr.mxu0 %v73
    %642 = vmatpush1.msra.mxu0 %v72
    %643 = vmatprep.subr.mxu0 %v77
    %644 = vmatpush1.msra.mxu0 %v76
    %645 = vmatprep.subr.mxu0 %v81
    %646 = vmatpush1.msra.mxu0 %v80
    %647 = vmatprep.subr.mxu0 %v85
    %648 = vmatpush1.msra.mxu0 %v84
    %649 = vmatprep.subr.mxu0 %v89
    %650 = vmatpush1.msra.mxu0 %v88
    %651 = vmatprep.subr.mxu0 %v93
    %652 = vmatpush1.msra.mxu0 %v92
    %653 = vmatprep.subr.mxu0 %v97
    %654 = vmatpush1.msra.mxu0 %v96
    %655 = vmatprep.subr.mxu0 %v101
    %656 = vmatpush1.msra.mxu0 %v100
    %657 = vmatprep.subr.mxu0 %v105
    %658 = vmatpush1.msra.mxu0 %v104
    %659 = vmatprep.subr.mxu0 %v109
    %660 = vmatpush1.msra.mxu0 %v108
    %661 = vmatprep.subr.mxu0 %v113
    %662 = vmatpush1.msra.mxu0 %v112
    %663 = vmatprep.subr.mxu0 0.0
    %664 = vmatpush1.msra.mxu0 0.0
    %665 = vmatprep.subr.mxu0 0.0
    %666 = vmatpush1.msra.mxu0 0.0
    %667 = vmatprep.subr.mxu0 0.0
    %668 = vmatpush1.msra.mxu0 0.0
    %669 = vmatprep.subr.mxu0 0.0
    %670 = vmatpush1.msra.mxu0 0.0
    %671 = vmatprep.subr.mxu0 0.0
    %672 = vmatpush1.msra.mxu0 0.0
    %673 = vmatprep.subr.mxu0 0.0
    %674 = vmatpush1.msra.mxu0 0.0
    %675 = vmatprep.subr.mxu0 0.0
    %676 = vmatpush1.msra.mxu0 0.0
    %677 = vmatprep.subr.mxu0 0.0
    %678 = vmatpush1.msra.mxu0 0.0
    %679 = vmatprep.subr.mxu0 0.0
    %680 = vmatpush1.msra.mxu0 0.0
    %681 = vmatprep.subr.mxu0 0.0
    %682 = vmatpush1.msra.mxu0 0.0
    %683 = vmatprep.subr.mxu0 0.0
    %684 = vmatpush1.msra.mxu0 0.0
    %685 = vmatprep.subr.mxu0 0.0
    %686 = vmatpush1.msra.mxu0 0.0
    %687 = vmatprep.subr.mxu0 0.0
    %688 = vmatpush1.msra.mxu0 0.0
    %689 = vmatprep.subr.mxu0 0.0
    %690 = vmatpush1.msra.mxu0 0.0
    %691 = vmatprep.subr.mxu0 0.0
    %692 = vmatpush1.msra.mxu0 0.0
    %693 = vmatprep.subr.mxu0 0.0
    %694 = vmatpush1.msra.mxu0 0.0
    %695 = vmatprep.mubr.f32.mxu0 0.0
    %696 = vmatmul.mubr.f32.gmra.mrb[0].mxu0 %v462
    %v697 = vpop.f32.mrb[0].mxu0
    %v698 = vadd.f32 0.0, %v697
    %v699 = vpop.f32.mrb[0].mxu0
    %v700 = vadd.f32 0.0, %v699
    %701 = vdwg.mxu0
    %702 = vmatprep.subr.mxu0 %v55
    %703 = vmatpush1.msra.mxu0 %v54
    %704 = vmatprep.subr.mxu0 %v59
    %705 = vmatpush1.msra.mxu0 %v58
    %706 = vmatprep.subr.mxu0 %v63
    %707 = vmatpush1.msra.mxu0 %v62
    %708 = vmatprep.subr.mxu0 %v67
    %709 = vmatpush1.msra.mxu0 %v66
    %710 = vmatprep.subr.mxu0 %v71
    %711 = vmatpush1.msra.mxu0 %v70
    %712 = vmatprep.subr.mxu0 %v75
    %713 = vmatpush1.msra.mxu0 %v74
    %714 = vmatprep.subr.mxu0 %v79
    %715 = vmatpush1.msra.mxu0 %v78
    %716 = vmatprep.subr.mxu0 %v83
    %717 = vmatpush1.msra.mxu0 %v82
    %718 = vmatprep.subr.mxu0 %v87
    %719 = vmatpush1.msra.mxu0 %v86
    %720 = vmatprep.subr.mxu0 %v91
    %721 = vmatpush1.msra.mxu0 %v90
    %722 = vmatprep.subr.mxu0 %v95
    %723 = vmatpush1.msra.mxu0 %v94
    %724 = vmatprep.subr.mxu0 %v99
    %725 = vmatpush1.msra.mxu0 %v98
    %726 = vmatprep.subr.mxu0 %v103
    %727 = vmatpush1.msra.mxu0 %v102
    %728 = vmatprep.subr.mxu0 %v107
    %729 = vmatpush1.msra.mxu0 %v106
    %730 = vmatprep.subr.mxu0 %v111
    %731 = vmatpush1.msra.mxu0 %v110
    %732 = vmatprep.subr.mxu0 %v115
    %733 = vmatpush1.msra.mxu0 %v114
    %734 = vmatprep.subr.mxu0 0.0
    %735 = vmatpush1.msra.mxu0 0.0
    %736 = vmatprep.subr.mxu0 0.0
    %737 = vmatpush1.msra.mxu0 0.0
    %738 = vmatprep.subr.mxu0 0.0
    %739 = vmatpush1.msra.mxu0 0.0
    %740 = vmatprep.subr.mxu0 0.0
    %741 = vmatpush1.msra.mxu0 0.0
    %742 = vmatprep.subr.mxu0 0.0
    %743 = vmatpush1.msra.mxu0 0.0
    %744 = vmatprep.subr.mxu0 0.0
    %745 = vmatpush1.msra.mxu0 0.0
    %746 = vmatprep.subr.mxu0 0.0
    %747 = vmatpush1.msra.mxu0 0.0
    %748 = vmatprep.subr.mxu0 0.0
    %749 = vmatpush1.msra.mxu0 0.0
    %750 = vmatprep.subr.mxu0 0.0
    %751 = vmatpush1.msra.mxu0 0.0
    %752 = vmatprep.subr.mxu0 0.0
    %753 = vmatpush1.msra.mxu0 0.0
    %754 = vmatprep.subr.mxu0 0.0
    %755 = vmatpush1.msra.mxu0 0.0
    %756 = vmatprep.subr.mxu0 0.0
    %757 = vmatpush1.msra.mxu0 0.0
    %758 = vmatprep.subr.mxu0 0.0
    %759 = vmatpush1.msra.mxu0 0.0
    %760 = vmatprep.subr.mxu0 0.0
    %761 = vmatpush1.msra.mxu0 0.0
    %762 = vmatprep.subr.mxu0 0.0
    %763 = vmatpush1.msra.mxu0 0.0
    %764 = vmatprep.subr.mxu0 0.0
    %765 = vmatpush1.msra.mxu0 0.0
    %766 = vmatprep.mubr.f32.mxu0 0.0
    %767 = vmatmul.mubr.f32.gmra.mrb[0].mxu0 %v462
    %v768 = vpop.f32.mrb[0].mxu0
    %v769 = vadd.f32 0.0, %v768
    %v770 = vpop.f32.mrb[0].mxu0
    %v771 = vadd.f32 0.0, %v770
    %772 = vdwg.mxu0
    %v777 = vcombine.low %v698, %v700
    %v778 = vcombine.low %v769, %v771
    %v780 = vunpack.c.l.s4 1983009808
    %v781 = vunpack.c.0.s8 %v780
    %v782 = vlaneseq
    %v783 = vshrl.u32 %v782, 7
    %v784 = vsub.s32 %v781, %v783
    %v785 = vrot.slane %v777, %v784
    %v787 = vunpack.c.l.s4 1983009808
    %v788 = vunpack.c.0.s8 %v787
    %v789 = vlaneseq
    %v790 = vshrl.u32 %v789, 7
    %v791 = vsub.s32 %v788, %v790
    %v792 = vrot.slane %v778, %v791
    %v793 = vcombine.low %v785, %v792
    %v795 = vadd.f32 %v630, %v793
    %v796 = vxor.u32 %v795, 2147483648
    %v797 = vmul.f32 %v796, 1.442695
    %v798 = vpow.pop %v797
    %v799 = vadd.f32 %v798, 1.0
    %v800 = vrcp.pop %v799
    %v801 = vmul.f32 1.0, %v800
    %v803 = vrot.slane %v795, 2
    %v805 = vxor.u32 %v803, 2147483648
    %v806 = vmul.f32 %v805, 1.442695
    %v807 = vpow.pop %v806
    %v808 = vadd.f32 %v807, 1.0
    %v809 = vrcp.pop %v808
    %v810 = vmul.f32 1.0, %v809
    %v811 = vrot.slane %v795, 4
    %v813 = vtanh.pop %v811
    %v814 = vrot.slane %v795, 6
    %v816 = vxor.u32 %v814, 2147483648
    %v817 = vmul.f32 %v816, 1.442695
    %v818 = vpow.pop %v817
    %v819 = vadd.f32 %v818, 1.0
    %v820 = vrcp.pop %v819
    %v821 = vmul.f32 1.0, %v820
    %v822 = vmul.f32 %v810, %v460
    %v823 = vmul.f32 %v801, %v813
    %v824 = vadd.f32 %v822, %v823
    %v825 = vtanh.pop %v824
    %v826 = vmul.f32 %v821, %v825
    %827 = vmatprep.subr.mxu0 %v117
    %828 = vmatpush1.msra.mxu0 %v116
    %829 = vmatprep.subr.mxu0 %v121
    %830 = vmatpush1.msra.mxu0 %v120
    %831 = vmatprep.subr.mxu0 %v125
    %832 = vmatpush1.msra.mxu0 %v124
    %833 = vmatprep.subr.mxu0 %v129
    %834 = vmatpush1.msra.mxu0 %v128
    %835 = vmatprep.subr.mxu0 %v133
    %836 = vmatpush1.msra.mxu0 %v132
    %837 = vmatprep.subr.mxu0 %v137
    %838 = vmatpush1.msra.mxu0 %v136
    %839 = vmatprep.subr.mxu0 %v141
    %840 = vmatpush1.msra.mxu0 %v140
    %841 = vmatprep.subr.mxu0 %v145
    %842 = vmatpush1.msra.mxu0 %v144
    %843 = vmatprep.subr.mxu0 %v149
    %844 = vmatpush1.msra.mxu0 %v148
    %845 = vmatprep.subr.mxu0 %v153
    %846 = vmatpush1.msra.mxu0 %v152
    %847 = vmatprep.subr.mxu0 %v157
    %848 = vmatpush1.msra.mxu0 %v156
    %849 = vmatprep.subr.mxu0 %v161
    %850 = vmatpush1.msra.mxu0 %v160
    %851 = vmatprep.subr.mxu0 %v165
    %852 = vmatpush1.msra.mxu0 %v164
    %853 = vmatprep.subr.mxu0 %v169
    %854 = vmatpush1.msra.mxu0 %v168
    %855 = vmatprep.subr.mxu0 %v173
    %856 = vmatpush1.msra.mxu0 %v172
    %857 = vmatprep.subr.mxu0 %v177
    %858 = vmatpush1.msra.mxu0 %v176
    %859 = vmatprep.subr.mxu0 %v181
    %860 = vmatpush1.msra.mxu0 %v180
    %861 = vmatprep.subr.mxu0 %v185
    %862 = vmatpush1.msra.mxu0 %v184
    %863 = vmatprep.subr.mxu0 %v189
    %864 = vmatpush1.msra.mxu0 %v188
    %865 = vmatprep.subr.mxu0 %v193
    %866 = vmatpush1.msra.mxu0 %v192
    %867 = vmatprep.subr.mxu0 %v197
    %868 = vmatpush1.msra.mxu0 %v196
    %869 = vmatprep.subr.mxu0 %v201
    %870 = vmatpush1.msra.mxu0 %v200
    %871 = vmatprep.subr.mxu0 %v205
    %872 = vmatpush1.msra.mxu0 %v204
    %873 = vmatprep.subr.mxu0 %v209
    %874 = vmatpush1.msra.mxu0 %v208
    %875 = vmatprep.subr.mxu0 %v213
    %876 = vmatpush1.msra.mxu0 %v212
    %877 = vmatprep.subr.mxu0 %v217
    %878 = vmatpush1.msra.mxu0 %v216
    %879 = vmatprep.subr.mxu0 %v221
    %880 = vmatpush1.msra.mxu0 %v220
    %881 = vmatprep.subr.mxu0 %v225
    %882 = vmatpush1.msra.mxu0 %v224
    %883 = vmatprep.subr.mxu0 %v229
    %884 = vmatpush1.msra.mxu0 %v228
    %885 = vmatprep.subr.mxu0 %v233
    %886 = vmatpush1.msra.mxu0 %v232
    %887 = vmatprep.subr.mxu0 %v237
    %888 = vmatpush1.msra.mxu0 %v236
    %889 = vmatprep.subr.mxu0 %v241
    %890 = vmatpush1.msra.mxu0 %v240
    %891 = vmatprep.mubr.f32.mxu0 %v628
    %892 = vmatmul.mubr.f32.gmra.mrb[0].mxu0 %v826
    %v893 = vpop.f32.mrb[0].mxu0
    %v894 = vadd.f32 %v249, %v893
    %v895 = vpop.f32.mrb[0].mxu0
    %v896 = vadd.f32 %v253, %v895
    %897 = vdwg.mxu0
    %898 = vmatprep.subr.mxu0 %v119
    %899 = vmatpush1.msra.mxu0 %v118
    %900 = vmatprep.subr.mxu0 %v123
    %901 = vmatpush1.msra.mxu0 %v122
    %902 = vmatprep.subr.mxu0 %v127
    %903 = vmatpush1.msra.mxu0 %v126
    %904 = vmatprep.subr.mxu0 %v131
    %905 = vmatpush1.msra.mxu0 %v130
    %906 = vmatprep.subr.mxu0 %v135
    %907 = vmatpush1.msra.mxu0 %v134
    %908 = vmatprep.subr.mxu0 %v139
    %909 = vmatpush1.msra.mxu0 %v138
    %910 = vmatprep.subr.mxu0 %v143
    %911 = vmatpush1.msra.mxu0 %v142
    %912 = vmatprep.subr.mxu0 %v147
    %913 = vmatpush1.msra.mxu0 %v146
    %914 = vmatprep.subr.mxu0 %v151
    %915 = vmatpush1.msra.mxu0 %v150
    %916 = vmatprep.subr.mxu0 %v155
    %917 = vmatpush1.msra.mxu0 %v154
    %918 = vmatprep.subr.mxu0 %v159
    %919 = vmatpush1.msra.mxu0 %v158
    %920 = vmatprep.subr.mxu0 %v163
    %921 = vmatpush1.msra.mxu0 %v162
    %922 = vmatprep.subr.mxu0 %v167
    %923 = vmatpush1.msra.mxu0 %v166
    %924 = vmatprep.subr.mxu0 %v171
    %925 = vmatpush1.msra.mxu0 %v170
    %926 = vmatprep.subr.mxu0 %v175
    %927 = vmatpush1.msra.mxu0 %v174
    %928 = vmatprep.subr.mxu0 %v179
    %929 = vmatpush1.msra.mxu0 %v178
    %930 = vmatprep.subr.mxu0 %v183
    %931 = vmatpush1.msra.mxu0 %v182
    %932 = vmatprep.subr.mxu0 %v187
    %933 = vmatpush1.msra.mxu0 %v186
    %934 = vmatprep.subr.mxu0 %v191
    %935 = vmatpush1.msra.mxu0 %v190
    %936 = vmatprep.subr.mxu0 %v195
    %937 = vmatpush1.msra.mxu0 %v194
    %938 = vmatprep.subr.mxu0 %v199
    %939 = vmatpush1.msra.mxu0 %v198
    %940 = vmatprep.subr.mxu0 %v203
    %941 = vmatpush1.msra.mxu0 %v202
    %942 = vmatprep.subr.mxu0 %v207
    %943 = vmatpush1.msra.mxu0 %v206
    %944 = vmatprep.subr.mxu0 %v211
    %945 = vmatpush1.msra.mxu0 %v210
    %946 = vmatprep.subr.mxu0 %v215
    %947 = vmatpush1.msra.mxu0 %v214
    %948 = vmatprep.subr.mxu0 %v219
    %949 = vmatpush1.msra.mxu0 %v218
    %950 = vmatprep.subr.mxu0 %v223
    %951 = vmatpush1.msra.mxu0 %v222
    %952 = vmatprep.subr.mxu0 %v227
    %953 = vmatpush1.msra.mxu0 %v226
    %954 = vmatprep.subr.mxu0 %v231
    %955 = vmatpush1.msra.mxu0 %v230
    %956 = vmatprep.subr.mxu0 %v235
    %957 = vmatpush1.msra.mxu0 %v234
    %958 = vmatprep.subr.mxu0 %v239
    %959 = vmatpush1.msra.mxu0 %v238
    %960 = vmatprep.subr.mxu0 %v243
    %961 = vmatpush1.msra.mxu0 %v242
    %962 = vmatprep.mubr.f32.mxu0 %v628
    %963 = vmatmul.mubr.f32.gmra.mrb[0].mxu0 %v826
    %v964 = vpop.f32.mrb[0].mxu0
    %v965 = vadd.f32 %v257, %v964
    %v966 = vpop.f32.mrb[0].mxu0
    %v967 = vadd.f32 %v261, %v966
    %968 = vdwg.mxu0
    %v969 = vxor.u32 %v894, 2147483648
    %v970 = vmul.f32 %v969, 1.442695
    %v971 = vpow.pop %v970
    %v972 = vadd.f32 %v971, 1.0
    %v973 = vrcp.pop %v972
    %v974 = vmul.f32 1.0, %v973
    %v975 = vxor.u32 %v896, 2147483648
    %v976 = vmul.f32 %v975, 1.442695
    %v977 = vpow.pop %v976
    %v978 = vadd.f32 %v977, 1.0
    %v979 = vrcp.pop %v978
    %v980 = vmul.f32 1.0, %v979
    %v981 = vtanh.pop %v965
    %v982 = vxor.u32 %v967, 2147483648
    %v983 = vmul.f32 %v982, 1.442695
    %v984 = vpow.pop %v983
    %v985 = vadd.f32 %v984, 1.0
    %v986 = vrcp.pop %v985
    %v987 = vmul.f32 1.0, %v986
    %v988 = vmul.f32 %v980, %v626
    %v989 = vmul.f32 %v974, %v981
    %v990 = vadd.f32 %v988, %v989
    %v991 = vtanh.pop %v990
    %v992 = vmul.f32 %v987, %v991
    %s993 = scalar_lea.vmem %s0, 16
    %v994 = vld [vmem:[%s993] sm:$0xff]
    %995 = vmatprep.subr.mxu0 %v53
    %996 = vmatpush1.msra.mxu0 %v52
    %997 = vmatprep.subr.mxu0 %v57
    %998 = vmatpush1.msra.mxu0 %v56
    %999 = vmatprep.subr.mxu0 %v61
    %1000 = vmatpush1.msra.mxu0 %v60
    %1001 = vmatprep.subr.mxu0 %v65
    %1002 = vmatpush1.msra.mxu0 %v64
    %1003 = vmatprep.subr.mxu0 %v69
    %1004 = vmatpush1.msra.mxu0 %v68
    %1005 = vmatprep.subr.mxu0 %v73
    %1006 = vmatpush1.msra.mxu0 %v72
    %1007 = vmatprep.subr.mxu0 %v77
    %1008 = vmatpush1.msra.mxu0 %v76
    %1009 = vmatprep.subr.mxu0 %v81
    %1010 = vmatpush1.msra.mxu0 %v80
    %1011 = vmatprep.subr.mxu0 %v85
    %1012 = vmatpush1.msra.mxu0 %v84
    %1013 = vmatprep.subr.mxu0 %v89
    %1014 = vmatpush1.msra.mxu0 %v88
    %1015 = vmatprep.subr.mxu0 %v93
    %1016 = vmatpush1.msra.mxu0 %v92
    %1017 = vmatprep.subr.mxu0 %v97
    %1018 = vmatpush1.msra.mxu0 %v96
    %1019 = vmatprep.subr.mxu0 %v101
    %1020 = vmatpush1.msra.mxu0 %v100
    %1021 = vmatprep.subr.mxu0 %v105
    %1022 = vmatpush1.msra.mxu0 %v104
    %1023 = vmatprep.subr.mxu0 %v109
    %1024 = vmatpush1.msra.mxu0 %v108
    %1025 = vmatprep.subr.mxu0 %v113
    %1026 = vmatpush1.msra.mxu0 %v112
    %1027 = vmatprep.subr.mxu0 0.0
    %1028 = vmatpush1.msra.mxu0 0.0
    %1029 = vmatprep.subr.mxu0 0.0
    %1030 = vmatpush1.msra.mxu0 0.0
    %1031 = vmatprep.subr.mxu0 0.0
    %1032 = vmatpush1.msra.mxu0 0.0
    %1033 = vmatprep.subr.mxu0 0.0
    %1034 = vmatpush1.msra.mxu0 0.0
    %1035 = vmatprep.subr.mxu0 0.0
    %1036 = vmatpush1.msra.mxu0 0.0
    %1037 = vmatprep.subr.mxu0 0.0
    %1038 = vmatpush1.msra.mxu0 0.0
    %1039 = vmatprep.subr.mxu0 0.0
    %1040 = vmatpush1.msra.mxu0 0.0
    %1041 = vmatprep.subr.mxu0 0.0
    %1042 = vmatpush1.msra.mxu0 0.0
    %1043 = vmatprep.subr.mxu0 0.0
    %1044 = vmatpush1.msra.mxu0 0.0
    %1045 = vmatprep.subr.mxu0 0.0
    %1046 = vmatpush1.msra.mxu0 0.0
    %1047 = vmatprep.subr.mxu0 0.0
    %1048 = vmatpush1.msra.mxu0 0.0
    %1049 = vmatprep.subr.mxu0 0.0
    %1050 = vmatpush1.msra.mxu0 0.0
    %1051 = vmatprep.subr.mxu0 0.0
    %1052 = vmatpush1.msra.mxu0 0.0
    %1053 = vmatprep.subr.mxu0 0.0
    %1054 = vmatpush1.msra.mxu0 0.0
    %1055 = vmatprep.subr.mxu0 0.0
    %1056 = vmatpush1.msra.mxu0 0.0
    %1057 = vmatprep.subr.mxu0 0.0
    %1058 = vmatpush1.msra.mxu0 0.0
    %1059 = vmatprep.mubr.f32.mxu0 0.0
    %1060 = vmatmul.mubr.f32.gmra.mrb[0].mxu0 %v826
    %v1061 = vpop.f32.mrb[0].mxu0
    %v1062 = vadd.f32 0.0, %v1061
    %v1063 = vpop.f32.mrb[0].mxu0
    %v1064 = vadd.f32 0.0, %v1063
    %1065 = vdwg.mxu0
    %1066 = vmatprep.subr.mxu0 %v55
    %1067 = vmatpush1.msra.mxu0 %v54
    %1068 = vmatprep.subr.mxu0 %v59
    %1069 = vmatpush1.msra.mxu0 %v58
    %1070 = vmatprep.subr.mxu0 %v63
    %1071 = vmatpush1.msra.mxu0 %v62
    %1072 = vmatprep.subr.mxu0 %v67
    %1073 = vmatpush1.msra.mxu0 %v66
    %1074 = vmatprep.subr.mxu0 %v71
    %1075 = vmatpush1.msra.mxu0 %v70
    %1076 = vmatprep.subr.mxu0 %v75
    %1077 = vmatpush1.msra.mxu0 %v74
    %1078 = vmatprep.subr.mxu0 %v79
    %1079 = vmatpush1.msra.mxu0 %v78
    %1080 = vmatprep.subr.mxu0 %v83
    %1081 = vmatpush1.msra.mxu0 %v82
    %1082 = vmatprep.subr.mxu0 %v87
    %1083 = vmatpush1.msra.mxu0 %v86
    %1084 = vmatprep.subr.mxu0 %v91
    %1085 = vmatpush1.msra.mxu0 %v90
    %1086 = vmatprep.subr.mxu0 %v95
    %1087 = vmatpush1.msra.mxu0 %v94
    %1088 = vmatprep.subr.mxu0 %v99
    %1089 = vmatpush1.msra.mxu0 %v98
    %1090 = vmatprep.subr.mxu0 %v103
    %1091 = vmatpush1.msra.mxu0 %v102
    %1092 = vmatprep.subr.mxu0 %v107
    %1093 = vmatpush1.msra.mxu0 %v106
    %1094 = vmatprep.subr.mxu0 %v111
    %1095 = vmatpush1.msra.mxu0 %v110
    %1096 = vmatprep.subr.mxu0 %v115
    %1097 = vmatpush1.msra.mxu0 %v114
    %1098 = vmatprep.subr.mxu0 0.0
    %1099 = vmatpush1.msra.mxu0 0.0
    %1100 = vmatprep.subr.mxu0 0.0
    %1101 = vmatpush1.msra.mxu0 0.0
    %1102 = vmatprep.subr.mxu0 0.0
    %1103 = vmatpush1.msra.mxu0 0.0
    %1104 = vmatprep.subr.mxu0 0.0
    %1105 = vmatpush1.msra.mxu0 0.0
    %1106 = vmatprep.subr.mxu0 0.0
    %1107 = vmatpush1.msra.mxu0 0.0
    %1108 = vmatprep.subr.mxu0 0.0
    %1109 = vmatpush1.msra.mxu0 0.0
    %1110 = vmatprep.subr.mxu0 0.0
    %1111 = vmatpush1.msra.mxu0 0.0
    %1112 = vmatprep.subr.mxu0 0.0
    %1113 = vmatpush1.msra.mxu0 0.0
    %1114 = vmatprep.subr.mxu0 0.0
    %1115 = vmatpush1.msra.mxu0 0.0
    %1116 = vmatprep.subr.mxu0 0.0
    %1117 = vmatpush1.msra.mxu0 0.0
    %1118 = vmatprep.subr.mxu0 0.0
    %1119 = vmatpush1.msra.mxu0 0.0
    %1120 = vmatprep.subr.mxu0 0.0
    %1121 = vmatpush1.msra.mxu0 0.0
    %1122 = vmatprep.subr.mxu0 0.0
    %1123 = vmatpush1.msra.mxu0 0.0
    %1124 = vmatprep.subr.mxu0 0.0
    %1125 = vmatpush1.msra.mxu0 0.0
    %1126 = vmatprep.subr.mxu0 0.0
    %1127 = vmatpush1.msra.mxu0 0.0
    %1128 = vmatprep.subr.mxu0 0.0
    %1129 = vmatpush1.msra.mxu0 0.0
    %1130 = vmatprep.mubr.f32.mxu0 0.0
    %1131 = vmatmul.mubr.f32.gmra.mrb[0].mxu0 %v826
    %v1132 = vpop.f32.mrb[0].mxu0
    %v1133 = vadd.f32 0.0, %v1132
    %v1134 = vpop.f32.mrb[0].mxu0
    %v1135 = vadd.f32 0.0, %v1134
    %1136 = vdwg.mxu0
    %v1141 = vcombine.low %v1062, %v1064
    %v1142 = vcombine.low %v1133, %v1135
    %v1144 = vunpack.c.l.s4 1983009808
    %v1145 = vunpack.c.0.s8 %v1144
    %v1146 = vlaneseq
    %v1147 = vshrl.u32 %v1146, 7
    %v1148 = vsub.s32 %v1145, %v1147
    %v1149 = vrot.slane %v1141, %v1148
    %v1151 = vunpack.c.l.s4 1983009808
    %v1152 = vunpack.c.0.s8 %v1151
    %v1153 = vlaneseq
    %v1154 = vshrl.u32 %v1153, 7
    %v1155 = vsub.s32 %v1152, %v1154
    %v1156 = vrot.slane %v1142, %v1155
    %v1157 = vcombine.low %v1149, %v1156
    %v1159 = vadd.f32 %v994, %v1157
    %v1160 = vxor.u32 %v1159, 2147483648
    %v1161 = vmul.f32 %v1160, 1.442695
    %v1162 = vpow.pop %v1161
    %v1163 = vadd.f32 %v1162, 1.0
    %v1164 = vrcp.pop %v1163
    %v1165 = vmul.f32 1.0, %v1164
    %v1167 = vrot.slane %v1159, 2
    %v1169 = vxor.u32 %v1167, 2147483648
    %v1170 = vmul.f32 %v1169, 1.442695
    %v1171 = vpow.pop %v1170
    %v1172 = vadd.f32 %v1171, 1.0
    %v1173 = vrcp.pop %v1172
    %v1174 = vmul.f32 1.0, %v1173
    %v1175 = vrot.slane %v1159, 4
    %v1177 = vtanh.pop %v1175
    %v1178 = vrot.slane %v1159, 6
    %v1180 = vxor.u32 %v1178, 2147483648
    %v1181 = vmul.f32 %v1180, 1.442695
    %v1182 = vpow.pop %v1181
    %v1183 = vadd.f32 %v1182, 1.0
    %v1184 = vrcp.pop %v1183
    %v1185 = vmul.f32 1.0, %v1184
    %v1186 = vmul.f32 %v1174, %v824
    %v1187 = vmul.f32 %v1165, %v1177
    %v1188 = vadd.f32 %v1186, %v1187
    %v1189 = vtanh.pop %v1188
    %v1190 = vmul.f32 %v1185, %v1189
    %1191 = vmatprep.subr.mxu0 %v117
    %1192 = vmatpush1.msra.mxu0 %v116
    %1193 = vmatprep.subr.mxu0 %v121
    %1194 = vmatpush1.msra.mxu0 %v120
    %1195 = vmatprep.subr.mxu0 %v125
    %1196 = vmatpush1.msra.mxu0 %v124
    %1197 = vmatprep.subr.mxu0 %v129
    %1198 = vmatpush1.msra.mxu0 %v128
    %1199 = vmatprep.subr.mxu0 %v133
    %1200 = vmatpush1.msra.mxu0 %v132
    %1201 = vmatprep.subr.mxu0 %v137
    %1202 = vmatpush1.msra.mxu0 %v136
    %1203 = vmatprep.subr.mxu0 %v141
    %1204 = vmatpush1.msra.mxu0 %v140
    %1205 = vmatprep.subr.mxu0 %v145
    %1206 = vmatpush1.msra.mxu0 %v144
    %1207 = vmatprep.subr.mxu0 %v149
    %1208 = vmatpush1.msra.mxu0 %v148
    %1209 = vmatprep.subr.mxu0 %v153
    %1210 = vmatpush1.msra.mxu0 %v152
    %1211 = vmatprep.subr.mxu0 %v157
    %1212 = vmatpush1.msra.mxu0 %v156
    %1213 = vmatprep.subr.mxu0 %v161
    %1214 = vmatpush1.msra.mxu0 %v160
    %1215 = vmatprep.subr.mxu0 %v165
    %1216 = vmatpush1.msra.mxu0 %v164
    %1217 = vmatprep.subr.mxu0 %v169
    %1218 = vmatpush1.msra.mxu0 %v168
    %1219 = vmatprep.subr.mxu0 %v173
    %1220 = vmatpush1.msra.mxu0 %v172
    %1221 = vmatprep.subr.mxu0 %v177
    %1222 = vmatpush1.msra.mxu0 %v176
    %1223 = vmatprep.subr.mxu0 %v181
    %1224 = vmatpush1.msra.mxu0 %v180
    %1225 = vmatprep.subr.mxu0 %v185
    %1226 = vmatpush1.msra.mxu0 %v184
    %1227 = vmatprep.subr.mxu0 %v189
    %1228 = vmatpush1.msra.mxu0 %v188
    %1229 = vmatprep.subr.mxu0 %v193
    %1230 = vmatpush1.msra.mxu0 %v192
    %1231 = vmatprep.subr.mxu0 %v197
    %1232 = vmatpush1.msra.mxu0 %v196
    %1233 = vmatprep.subr.mxu0 %v201
    %1234 = vmatpush1.msra.mxu0 %v200
    %1235 = vmatprep.subr.mxu0 %v205
    %1236 = vmatpush1.msra.mxu0 %v204
    %1237 = vmatprep.subr.mxu0 %v209
    %1238 = vmatpush1.msra.mxu0 %v208
    %1239 = vmatprep.subr.mxu0 %v213
    %1240 = vmatpush1.msra.mxu0 %v212
    %1241 = vmatprep.subr.mxu0 %v217
    %1242 = vmatpush1.msra.mxu0 %v216
    %1243 = vmatprep.subr.mxu0 %v221
    %1244 = vmatpush1.msra.mxu0 %v220
    %1245 = vmatprep.subr.mxu0 %v225
    %1246 = vmatpush1.msra.mxu0 %v224
    %1247 = vmatprep.subr.mxu0 %v229
    %1248 = vmatpush1.msra.mxu0 %v228
    %1249 = vmatprep.subr.mxu0 %v233
    %1250 = vmatpush1.msra.mxu0 %v232
    %1251 = vmatprep.subr.mxu0 %v237
    %1252 = vmatpush1.msra.mxu0 %v236
    %1253 = vmatprep.subr.mxu0 %v241
    %1254 = vmatpush1.msra.mxu0 %v240
    %1255 = vmatprep.mubr.f32.mxu0 %v992
    %1256 = vmatmul.mubr.f32.gmra.mrb[0].mxu0 %v1190
    %v1257 = vpop.f32.mrb[0].mxu0
    %v1258 = vadd.f32 %v249, %v1257
    %v1259 = vpop.f32.mrb[0].mxu0
    %v1260 = vadd.f32 %v253, %v1259
    %1261 = vdwg.mxu0
    %1262 = vmatprep.subr.mxu0 %v119
    %1263 = vmatpush1.msra.mxu0 %v118
    %1264 = vmatprep.subr.mxu0 %v123
    %1265 = vmatpush1.msra.mxu0 %v122
    %1266 = vmatprep.subr.mxu0 %v127
    %1267 = vmatpush1.msra.mxu0 %v126
    %1268 = vmatprep.subr.mxu0 %v131
    %1269 = vmatpush1.msra.mxu0 %v130
    %1270 = vmatprep.subr.mxu0 %v135
    %1271 = vmatpush1.msra.mxu0 %v134
    %1272 = vmatprep.subr.mxu0 %v139
    %1273 = vmatpush1.msra.mxu0 %v138
    %1274 = vmatprep.subr.mxu0 %v143
    %1275 = vmatpush1.msra.mxu0 %v142
    %1276 = vmatprep.subr.mxu0 %v147
    %1277 = vmatpush1.msra.mxu0 %v146
    %1278 = vmatprep.subr.mxu0 %v151
    %1279 = vmatpush1.msra.mxu0 %v150
    %1280 = vmatprep.subr.mxu0 %v155
    %1281 = vmatpush1.msra.mxu0 %v154
    %1282 = vmatprep.subr.mxu0 %v159
    %1283 = vmatpush1.msra.mxu0 %v158
    %1284 = vmatprep.subr.mxu0 %v163
    %1285 = vmatpush1.msra.mxu0 %v162
    %1286 = vmatprep.subr.mxu0 %v167
    %1287 = vmatpush1.msra.mxu0 %v166
    %1288 = vmatprep.subr.mxu0 %v171
    %1289 = vmatpush1.msra.mxu0 %v170
    %1290 = vmatprep.subr.mxu0 %v175
    %1291 = vmatpush1.msra.mxu0 %v174
    %1292 = vmatprep.subr.mxu0 %v179
    %1293 = vmatpush1.msra.mxu0 %v178
    %1294 = vmatprep.subr.mxu0 %v183
    %1295 = vmatpush1.msra.mxu0 %v182
    %1296 = vmatprep.subr.mxu0 %v187
    %1297 = vmatpush1.msra.mxu0 %v186
    %1298 = vmatprep.subr.mxu0 %v191
    %1299 = vmatpush1.msra.mxu0 %v190
    %1300 = vmatprep.subr.mxu0 %v195
    %1301 = vmatpush1.msra.mxu0 %v194
    %1302 = vmatprep.subr.mxu0 %v199
    %1303 = vmatpush1.msra.mxu0 %v198
    %1304 = vmatprep.subr.mxu0 %v203
    %1305 = vmatpush1.msra.mxu0 %v202
    %1306 = vmatprep.subr.mxu0 %v207
    %1307 = vmatpush1.msra.mxu0 %v206
    %1308 = vmatprep.subr.mxu0 %v211
    %1309 = vmatpush1.msra.mxu0 %v210
    %1310 = vmatprep.subr.mxu0 %v215
    %1311 = vmatpush1.msra.mxu0 %v214
    %1312 = vmatprep.subr.mxu0 %v219
    %1313 = vmatpush1.msra.mxu0 %v218
    %1314 = vmatprep.subr.mxu0 %v223
    %1315 = vmatpush1.msra.mxu0 %v222
    %1316 = vmatprep.subr.mxu0 %v227
    %1317 = vmatpush1.msra.mxu0 %v226
    %1318 = vmatprep.subr.mxu0 %v231
    %1319 = vmatpush1.msra.mxu0 %v230
    %1320 = vmatprep.subr.mxu0 %v235
    %1321 = vmatpush1.msra.mxu0 %v234
    %1322 = vmatprep.subr.mxu0 %v239
    %1323 = vmatpush1.msra.mxu0 %v238
    %1324 = vmatprep.subr.mxu0 %v243
    %1325 = vmatpush1.msra.mxu0 %v242
    %1326 = vmatprep.mubr.f32.mxu0 %v992
    %1327 = vmatmul.mubr.f32.gmra.mrb[0].mxu0 %v1190
    %v1328 = vpop.f32.mrb[0].mxu0
    %v1329 = vadd.f32 %v257, %v1328
    %v1330 = vpop.f32.mrb[0].mxu0
    %v1331 = vadd.f32 %v261, %v1330
    %1332 = vdwg.mxu0
    %v1333 = vxor.u32 %v1258, 2147483648
    %v1334 = vmul.f32 %v1333, 1.442695
    %v1335 = vpow.pop %v1334
    %v1336 = vadd.f32 %v1335, 1.0
    %v1337 = vrcp.pop %v1336
    %v1338 = vmul.f32 1.0, %v1337
    %v1339 = vxor.u32 %v1260, 2147483648
    %v1340 = vmul.f32 %v1339, 1.442695
    %v1341 = vpow.pop %v1340
    %v1342 = vadd.f32 %v1341, 1.0
    %v1343 = vrcp.pop %v1342
    %v1344 = vmul.f32 1.0, %v1343
    %v1345 = vtanh.pop %v1329
    %v1346 = vxor.u32 %v1331, 2147483648
    %v1347 = vmul.f32 %v1346, 1.442695
    %v1348 = vpow.pop %v1347
    %v1349 = vadd.f32 %v1348, 1.0
    %v1350 = vrcp.pop %v1349
    %v1351 = vmul.f32 1.0, %v1350
    %v1352 = vmul.f32 %v1344, %v990
    %v1353 = vmul.f32 %v1338, %v1345
    %v1354 = vadd.f32 %v1352, %v1353
    %v1355 = vtanh.pop %v1354
    %v1356 = vmul.f32 %v1351, %v1355
    %s1357 = scalar_lea.vmem %s0, 24
    %v1358 = vld [vmem:[%s1357] sm:$0xff]
    %1359 = vmatprep.subr.mxu0 %v53
    %1360 = vmatpush1.msra.mxu0 %v52
    %1361 = vmatprep.subr.mxu0 %v57
    %1362 = vmatpush1.msra.mxu0 %v56
    %1363 = vmatprep.subr.mxu0 %v61
    %1364 = vmatpush1.msra.mxu0 %v60
    %1365 = vmatprep.subr.mxu0 %v65
    %1366 = vmatpush1.msra.mxu0 %v64
    %1367 = vmatprep.subr.mxu0 %v69
    %1368 = vmatpush1.msra.mxu0 %v68
    %1369 = vmatprep.subr.mxu0 %v73
    %1370 = vmatpush1.msra.mxu0 %v72
    %1371 = vmatprep.subr.mxu0 %v77
    %1372 = vmatpush1.msra.mxu0 %v76
    %1373 = vmatprep.subr.mxu0 %v81
    %1374 = vmatpush1.msra.mxu0 %v80
    %1375 = vmatprep.subr.mxu0 %v85
    %1376 = vmatpush1.msra.mxu0 %v84
    %1377 = vmatprep.subr.mxu0 %v89
    %1378 = vmatpush1.msra.mxu0 %v88
    %1379 = vmatprep.subr.mxu0 %v93
    %1380 = vmatpush1.msra.mxu0 %v92
    %1381 = vmatprep.subr.mxu0 %v97
    %1382 = vmatpush1.msra.mxu0 %v96
    %1383 = vmatprep.subr.mxu0 %v101
    %1384 = vmatpush1.msra.mxu0 %v100
    %1385 = vmatprep.subr.mxu0 %v105
    %1386 = vmatpush1.msra.mxu0 %v104
    %1387 = vmatprep.subr.mxu0 %v109
    %1388 = vmatpush1.msra.mxu0 %v108
    %1389 = vmatprep.subr.mxu0 %v113
    %1390 = vmatpush1.msra.mxu0 %v112
    %1391 = vmatprep.subr.mxu0 0.0
    %1392 = vmatpush1.msra.mxu0 0.0
    %1393 = vmatprep.subr.mxu0 0.0
    %1394 = vmatpush1.msra.mxu0 0.0
    %1395 = vmatprep.subr.mxu0 0.0
    %1396 = vmatpush1.msra.mxu0 0.0
    %1397 = vmatprep.subr.mxu0 0.0
    %1398 = vmatpush1.msra.mxu0 0.0
    %1399 = vmatprep.subr.mxu0 0.0
    %1400 = vmatpush1.msra.mxu0 0.0
    %1401 = vmatprep.subr.mxu0 0.0
    %1402 = vmatpush1.msra.mxu0 0.0
    %1403 = vmatprep.subr.mxu0 0.0
    %1404 = vmatpush1.msra.mxu0 0.0
    %1405 = vmatprep.subr.mxu0 0.0
    %1406 = vmatpush1.msra.mxu0 0.0
    %1407 = vmatprep.subr.mxu0 0.0
    %1408 = vmatpush1.msra.mxu0 0.0
    %1409 = vmatprep.subr.mxu0 0.0
    %1410 = vmatpush1.msra.mxu0 0.0
    %1411 = vmatprep.subr.mxu0 0.0
    %1412 = vmatpush1.msra.mxu0 0.0
    %1413 = vmatprep.subr.mxu0 0.0
    %1414 = vmatpush1.msra.mxu0 0.0
    %1415 = vmatprep.subr.mxu0 0.0
    %1416 = vmatpush1.msra.mxu0 0.0
    %1417 = vmatprep.subr.mxu0 0.0
    %1418 = vmatpush1.msra.mxu0 0.0
    %1419 = vmatprep.subr.mxu0 0.0
    %1420 = vmatpush1.msra.mxu0 0.0
    %1421 = vmatprep.subr.mxu0 0.0
    %1422 = vmatpush1.msra.mxu0 0.0
    %1423 = vmatprep.mubr.f32.mxu0 0.0
    %1424 = vmatmul.mubr.f32.gmra.mrb[0].mxu0 %v1190
    %v1425 = vpop.f32.mrb[0].mxu0
    %v1426 = vadd.f32 0.0, %v1425
    %v1427 = vpop.f32.mrb[0].mxu0
    %v1428 = vadd.f32 0.0, %v1427
    %1429 = vdwg.mxu0
    %1430 = vmatprep.subr.mxu0 %v55
    %1431 = vmatpush1.msra.mxu0 %v54
    %1432 = vmatprep.subr.mxu0 %v59
    %1433 = vmatpush1.msra.mxu0 %v58
    %1434 = vmatprep.subr.mxu0 %v63
    %1435 = vmatpush1.msra.mxu0 %v62
    %1436 = vmatprep.subr.mxu0 %v67
    %1437 = vmatpush1.msra.mxu0 %v66
    %1438 = vmatprep.subr.mxu0 %v71
    %1439 = vmatpush1.msra.mxu0 %v70
    %1440 = vmatprep.subr.mxu0 %v75
    %1441 = vmatpush1.msra.mxu0 %v74
    %1442 = vmatprep.subr.mxu0 %v79
    %1443 = vmatpush1.msra.mxu0 %v78
    %1444 = vmatprep.subr.mxu0 %v83
    %1445 = vmatpush1.msra.mxu0 %v82
    %1446 = vmatprep.subr.mxu0 %v87
    %1447 = vmatpush1.msra.mxu0 %v86
    %1448 = vmatprep.subr.mxu0 %v91
    %1449 = vmatpush1.msra.mxu0 %v90
    %1450 = vmatprep.subr.mxu0 %v95
    %1451 = vmatpush1.msra.mxu0 %v94
    %1452 = vmatprep.subr.mxu0 %v99
    %1453 = vmatpush1.msra.mxu0 %v98
    %1454 = vmatprep.subr.mxu0 %v103
    %1455 = vmatpush1.msra.mxu0 %v102
    %1456 = vmatprep.subr.mxu0 %v107
    %1457 = vmatpush1.msra.mxu0 %v106
    %1458 = vmatprep.subr.mxu0 %v111
    %1459 = vmatpush1.msra.mxu0 %v110
    %1460 = vmatprep.subr.mxu0 %v115
    %1461 = vmatpush1.msra.mxu0 %v114
    %1462 = vmatprep.subr.mxu0 0.0
    %1463 = vmatpush1.msra.mxu0 0.0
    %1464 = vmatprep.subr.mxu0 0.0
    %1465 = vmatpush1.msra.mxu0 0.0
    %1466 = vmatprep.subr.mxu0 0.0
    %1467 = vmatpush1.msra.mxu0 0.0
    %1468 = vmatprep.subr.mxu0 0.0
    %1469 = vmatpush1.msra.mxu0 0.0
    %1470 = vmatprep.subr.mxu0 0.0
    %1471 = vmatpush1.msra.mxu0 0.0
    %1472 = vmatprep.subr.mxu0 0.0
    %1473 = vmatpush1.msra.mxu0 0.0
    %1474 = vmatprep.subr.mxu0 0.0
    %1475 = vmatpush1.msra.mxu0 0.0
    %1476 = vmatprep.subr.mxu0 0.0
    %1477 = vmatpush1.msra.mxu0 0.0
    %1478 = vmatprep.subr.mxu0 0.0
    %1479 = vmatpush1.msra.mxu0 0.0
    %1480 = vmatprep.subr.mxu0 0.0
    %1481 = vmatpush1.msra.mxu0 0.0
    %1482 = vmatprep.subr.mxu0 0.0
    %1483 = vmatpush1.msra.mxu0 0.0
    %1484 = vmatprep.subr.mxu0 0.0
    %1485 = vmatpush1.msra.mxu0 0.0
    %1486 = vmatprep.subr.mxu0 0.0
    %1487 = vmatpush1.msra.mxu0 0.0
    %1488 = vmatprep.subr.mxu0 0.0
    %1489 = vmatpush1.msra.mxu0 0.0
    %1490 = vmatprep.subr.mxu0 0.0
    %1491 = vmatpush1.msra.mxu0 0.0
    %1492 = vmatprep.subr.mxu0 0.0
    %1493 = vmatpush1.msra.mxu0 0.0
    %1494 = vmatprep.mubr.f32.mxu0 0.0
    %1495 = vmatmul.mubr.f32.gmra.mrb[0].mxu0 %v1190
    %v1496 = vpop.f32.mrb[0].mxu0
    %v1497 = vadd.f32 0.0, %v1496
    %v1498 = vpop.f32.mrb[0].mxu0
    %v1499 = vadd.f32 0.0, %v1498
    %1500 = vdwg.mxu0
    %v1505 = vcombine.low %v1426, %v1428
    %v1506 = vcombine.low %v1497, %v1499
    %v1508 = vunpack.c.l.s4 1983009808
    %v1509 = vunpack.c.0.s8 %v1508
    %v1510 = vlaneseq
    %v1511 = vshrl.u32 %v1510, 7
    %v1512 = vsub.s32 %v1509, %v1511
    %v1513 = vrot.slane %v1505, %v1512
    %v1515 = vunpack.c.l.s4 1983009808
    %v1516 = vunpack.c.0.s8 %v1515
    %v1517 = vlaneseq
    %v1518 = vshrl.u32 %v1517, 7
    %v1519 = vsub.s32 %v1516, %v1518
    %v1520 = vrot.slane %v1506, %v1519
    %v1521 = vcombine.low %v1513, %v1520
    %v1523 = vadd.f32 %v1358, %v1521
    %v1524 = vxor.u32 %v1523, 2147483648
    %v1525 = vmul.f32 %v1524, 1.442695
    %v1526 = vpow.pop %v1525
    %v1527 = vadd.f32 %v1526, 1.0
    %v1528 = vrcp.pop %v1527
    %v1529 = vmul.f32 1.0, %v1528
    %v1531 = vrot.slane %v1523, 2
    %v1533 = vxor.u32 %v1531, 2147483648
    %v1534 = vmul.f32 %v1533, 1.442695
    %v1535 = vpow.pop %v1534
    %v1536 = vadd.f32 %v1535, 1.0
    %v1537 = vrcp.pop %v1536
    %v1538 = vmul.f32 1.0, %v1537
    %v1539 = vrot.slane %v1523, 4
    %v1541 = vtanh.pop %v1539
    %v1542 = vrot.slane %v1523, 6
    %v1544 = vxor.u32 %v1542, 2147483648
    %v1545 = vmul.f32 %v1544, 1.442695
    %v1546 = vpow.pop %v1545
    %v1547 = vadd.f32 %v1546, 1.0
    %v1548 = vrcp.pop %v1547
    %v1549 = vmul.f32 1.0, %v1548
    %v1550 = vmul.f32 %v1538, %v1188
    %v1551 = vmul.f32 %v1529, %v1541
    %v1552 = vadd.f32 %v1550, %v1551
    %v1553 = vtanh.pop %v1552
    %v1554 = vmul.f32 %v1549, %v1553
    %1555 = vmatprep.subr.mxu0 %v117
    %1556 = vmatpush1.msra.mxu0 %v116
    %1557 = vmatprep.subr.mxu0 %v121
    %1558 = vmatpush1.msra.mxu0 %v120
    %1559 = vmatprep.subr.mxu0 %v125
    %1560 = vmatpush1.msra.mxu0 %v124
    %1561 = vmatprep.subr.mxu0 %v129
    %1562 = vmatpush1.msra.mxu0 %v128
    %1563 = vmatprep.subr.mxu0 %v133
    %1564 = vmatpush1.msra.mxu0 %v132
    %1565 = vmatprep.subr.mxu0 %v137
    %1566 = vmatpush1.msra.mxu0 %v136
    %1567 = vmatprep.subr.mxu0 %v141
    %1568 = vmatpush1.msra.mxu0 %v140
    %1569 = vmatprep.subr.mxu0 %v145
    %1570 = vmatpush1.msra.mxu0 %v144
    %1571 = vmatprep.subr.mxu0 %v149
    %1572 = vmatpush1.msra.mxu0 %v148
    %1573 = vmatprep.subr.mxu0 %v153
    %1574 = vmatpush1.msra.mxu0 %v152
    %1575 = vmatprep.subr.mxu0 %v157
    %1576 = vmatpush1.msra.mxu0 %v156
    %1577 = vmatprep.subr.mxu0 %v161
    %1578 = vmatpush1.msra.mxu0 %v160
    %1579 = vmatprep.subr.mxu0 %v165
    %1580 = vmatpush1.msra.mxu0 %v164
    %1581 = vmatprep.subr.mxu0 %v169
    %1582 = vmatpush1.msra.mxu0 %v168
    %1583 = vmatprep.subr.mxu0 %v173
    %1584 = vmatpush1.msra.mxu0 %v172
    %1585 = vmatprep.subr.mxu0 %v177
    %1586 = vmatpush1.msra.mxu0 %v176
    %1587 = vmatprep.subr.mxu0 %v181
    %1588 = vmatpush1.msra.mxu0 %v180
    %1589 = vmatprep.subr.mxu0 %v185
    %1590 = vmatpush1.msra.mxu0 %v184
    %1591 = vmatprep.subr.mxu0 %v189
    %1592 = vmatpush1.msra.mxu0 %v188
    %1593 = vmatprep.subr.mxu0 %v193
    %1594 = vmatpush1.msra.mxu0 %v192
    %1595 = vmatprep.subr.mxu0 %v197
    %1596 = vmatpush1.msra.mxu0 %v196
    %1597 = vmatprep.subr.mxu0 %v201
    %1598 = vmatpush1.msra.mxu0 %v200
    %1599 = vmatprep.subr.mxu0 %v205
    %1600 = vmatpush1.msra.mxu0 %v204
    %1601 = vmatprep.subr.mxu0 %v209
    %1602 = vmatpush1.msra.mxu0 %v208
    %1603 = vmatprep.subr.mxu0 %v213
    %1604 = vmatpush1.msra.mxu0 %v212
    %1605 = vmatprep.subr.mxu0 %v217
    %1606 = vmatpush1.msra.mxu0 %v216
    %1607 = vmatprep.subr.mxu0 %v221
    %1608 = vmatpush1.msra.mxu0 %v220
    %1609 = vmatprep.subr.mxu0 %v225
    %1610 = vmatpush1.msra.mxu0 %v224
    %1611 = vmatprep.subr.mxu0 %v229
    %1612 = vmatpush1.msra.mxu0 %v228
    %1613 = vmatprep.subr.mxu0 %v233
    %1614 = vmatpush1.msra.mxu0 %v232
    %1615 = vmatprep.subr.mxu0 %v237
    %1616 = vmatpush1.msra.mxu0 %v236
    %1617 = vmatprep.subr.mxu0 %v241
    %1618 = vmatpush1.msra.mxu0 %v240
    %1619 = vmatprep.mubr.f32.mxu0 %v1356
    %1620 = vmatmul.mubr.f32.gmra.mrb[0].mxu0 %v1554
    %v1621 = vpop.f32.mrb[0].mxu0
    %v1622 = vadd.f32 %v249, %v1621
    %v1623 = vpop.f32.mrb[0].mxu0
    %v1624 = vadd.f32 %v253, %v1623
    %1625 = vdwg.mxu0
    %1626 = vmatprep.subr.mxu0 %v119
    %1627 = vmatpush1.msra.mxu0 %v118
    %1628 = vmatprep.subr.mxu0 %v123
    %1629 = vmatpush1.msra.mxu0 %v122
    %1630 = vmatprep.subr.mxu0 %v127
    %1631 = vmatpush1.msra.mxu0 %v126
    %1632 = vmatprep.subr.mxu0 %v131
    %1633 = vmatpush1.msra.mxu0 %v130
    %1634 = vmatprep.subr.mxu0 %v135
    %1635 = vmatpush1.msra.mxu0 %v134
    %1636 = vmatprep.subr.mxu0 %v139
    %1637 = vmatpush1.msra.mxu0 %v138
    %1638 = vmatprep.subr.mxu0 %v143
    %1639 = vmatpush1.msra.mxu0 %v142
    %1640 = vmatprep.subr.mxu0 %v147
    %1641 = vmatpush1.msra.mxu0 %v146
    %1642 = vmatprep.subr.mxu0 %v151
    %1643 = vmatpush1.msra.mxu0 %v150
    %1644 = vmatprep.subr.mxu0 %v155
    %1645 = vmatpush1.msra.mxu0 %v154
    %1646 = vmatprep.subr.mxu0 %v159
    %1647 = vmatpush1.msra.mxu0 %v158
    %1648 = vmatprep.subr.mxu0 %v163
    %1649 = vmatpush1.msra.mxu0 %v162
    %1650 = vmatprep.subr.mxu0 %v167
    %1651 = vmatpush1.msra.mxu0 %v166
    %1652 = vmatprep.subr.mxu0 %v171
    %1653 = vmatpush1.msra.mxu0 %v170
    %1654 = vmatprep.subr.mxu0 %v175
    %1655 = vmatpush1.msra.mxu0 %v174
    %1656 = vmatprep.subr.mxu0 %v179
    %1657 = vmatpush1.msra.mxu0 %v178
    %1658 = vmatprep.subr.mxu0 %v183
    %1659 = vmatpush1.msra.mxu0 %v182
    %1660 = vmatprep.subr.mxu0 %v187
    %1661 = vmatpush1.msra.mxu0 %v186
    %1662 = vmatprep.subr.mxu0 %v191
    %1663 = vmatpush1.msra.mxu0 %v190
    %1664 = vmatprep.subr.mxu0 %v195
    %1665 = vmatpush1.msra.mxu0 %v194
    %1666 = vmatprep.subr.mxu0 %v199
    %1667 = vmatpush1.msra.mxu0 %v198
    %1668 = vmatprep.subr.mxu0 %v203
    %1669 = vmatpush1.msra.mxu0 %v202
    %1670 = vmatprep.subr.mxu0 %v207
    %1671 = vmatpush1.msra.mxu0 %v206
    %1672 = vmatprep.subr.mxu0 %v211
    %1673 = vmatpush1.msra.mxu0 %v210
    %1674 = vmatprep.subr.mxu0 %v215
    %1675 = vmatpush1.msra.mxu0 %v214
    %1676 = vmatprep.subr.mxu0 %v219
    %1677 = vmatpush1.msra.mxu0 %v218
    %1678 = vmatprep.subr.mxu0 %v223
    %1679 = vmatpush1.msra.mxu0 %v222
    %1680 = vmatprep.subr.mxu0 %v227
    %1681 = vmatpush1.msra.mxu0 %v226
    %1682 = vmatprep.subr.mxu0 %v231
    %1683 = vmatpush1.msra.mxu0 %v230
    %1684 = vmatprep.subr.mxu0 %v235
    %1685 = vmatpush1.msra.mxu0 %v234
    %1686 = vmatprep.subr.mxu0 %v239
    %1687 = vmatpush1.msra.mxu0 %v238
    %1688 = vmatprep.subr.mxu0 %v243
    %1689 = vmatpush1.msra.mxu0 %v242
    %1690 = vmatprep.mubr.f32.mxu0 %v1356
    %1691 = vmatmul.mubr.f32.gmra.mrb[0].mxu0 %v1554
    %v1692 = vpop.f32.mrb[0].mxu0
    %v1693 = vadd.f32 %v257, %v1692
    %v1694 = vpop.f32.mrb[0].mxu0
    %v1695 = vadd.f32 %v261, %v1694
    %1696 = vdwg.mxu0
    %v1697 = vxor.u32 %v1622, 2147483648
    %v1698 = vmul.f32 %v1697, 1.442695
    %v1699 = vpow.pop %v1698
    %v1700 = vadd.f32 %v1699, 1.0
    %v1701 = vrcp.pop %v1700
    %v1702 = vmul.f32 1.0, %v1701
    %v1703 = vxor.u32 %v1624, 2147483648
    %v1704 = vmul.f32 %v1703, 1.442695
    %v1705 = vpow.pop %v1704
    %v1706 = vadd.f32 %v1705, 1.0
    %v1707 = vrcp.pop %v1706
    %v1708 = vmul.f32 1.0, %v1707
    %v1709 = vtanh.pop %v1693
    %v1710 = vxor.u32 %v1695, 2147483648
    %v1711 = vmul.f32 %v1710, 1.442695
    %v1712 = vpow.pop %v1711
    %v1713 = vadd.f32 %v1712, 1.0
    %v1714 = vrcp.pop %v1713
    %v1715 = vmul.f32 1.0, %v1714
    %v1716 = vmul.f32 %v1708, %v1354
    %v1717 = vmul.f32 %v1702, %v1709
    %v1718 = vadd.f32 %v1716, %v1717
    %v1719 = vtanh.pop %v1718
    %v1720 = vmul.f32 %v1715, %v1719
    %s1721 = scalar_lea.vmem %s0, 32
    %v1722 = vld [vmem:[%s1721] sm:$0xff]
    %1723 = vmatprep.subr.mxu0 %v53
    %1724 = vmatpush1.msra.mxu0 %v52
    %1725 = vmatprep.subr.mxu0 %v57
    %1726 = vmatpush1.msra.mxu0 %v56
    %1727 = vmatprep.subr.mxu0 %v61
    %1728 = vmatpush1.msra.mxu0 %v60
    %1729 = vmatprep.subr.mxu0 %v65
    %1730 = vmatpush1.msra.mxu0 %v64
    %1731 = vmatprep.subr.mxu0 %v69
    %1732 = vmatpush1.msra.mxu0 %v68
    %1733 = vmatprep.subr.mxu0 %v73
    %1734 = vmatpush1.msra.mxu0 %v72
    %1735 = vmatprep.subr.mxu0 %v77
    %1736 = vmatpush1.msra.mxu0 %v76
    %1737 = vmatprep.subr.mxu0 %v81
    %1738 = vmatpush1.msra.mxu0 %v80
    %1739 = vmatprep.subr.mxu0 %v85
    %1740 = vmatpush1.msra.mxu0 %v84
    %1741 = vmatprep.subr.mxu0 %v89
    %1742 = vmatpush1.msra.mxu0 %v88
    %1743 = vmatprep.subr.mxu0 %v93
    %1744 = vmatpush1.msra.mxu0 %v92
    %1745 = vmatprep.subr.mxu0 %v97
    %1746 = vmatpush1.msra.mxu0 %v96
    %1747 = vmatprep.subr.mxu0 %v101
    %1748 = vmatpush1.msra.mxu0 %v100
    %1749 = vmatprep.subr.mxu0 %v105
    %1750 = vmatpush1.msra.mxu0 %v104
    %1751 = vmatprep.subr.mxu0 %v109
    %1752 = vmatpush1.msra.mxu0 %v108
    %1753 = vmatprep.subr.mxu0 %v113
    %1754 = vmatpush1.msra.mxu0 %v112
    %1755 = vmatprep.subr.mxu0 0.0
    %1756 = vmatpush1.msra.mxu0 0.0
    %1757 = vmatprep.subr.mxu0 0.0
    %1758 = vmatpush1.msra.mxu0 0.0
    %1759 = vmatprep.subr.mxu0 0.0
    %1760 = vmatpush1.msra.mxu0 0.0
    %1761 = vmatprep.subr.mxu0 0.0
    %1762 = vmatpush1.msra.mxu0 0.0
    %1763 = vmatprep.subr.mxu0 0.0
    %1764 = vmatpush1.msra.mxu0 0.0
    %1765 = vmatprep.subr.mxu0 0.0
    %1766 = vmatpush1.msra.mxu0 0.0
    %1767 = vmatprep.subr.mxu0 0.0
    %1768 = vmatpush1.msra.mxu0 0.0
    %1769 = vmatprep.subr.mxu0 0.0
    %1770 = vmatpush1.msra.mxu0 0.0
    %1771 = vmatprep.subr.mxu0 0.0
    %1772 = vmatpush1.msra.mxu0 0.0
    %1773 = vmatprep.subr.mxu0 0.0
    %1774 = vmatpush1.msra.mxu0 0.0
    %1775 = vmatprep.subr.mxu0 0.0
    %1776 = vmatpush1.msra.mxu0 0.0
    %1777 = vmatprep.subr.mxu0 0.0
    %1778 = vmatpush1.msra.mxu0 0.0
    %1779 = vmatprep.subr.mxu0 0.0
    %1780 = vmatpush1.msra.mxu0 0.0
    %1781 = vmatprep.subr.mxu0 0.0
    %1782 = vmatpush1.msra.mxu0 0.0
    %1783 = vmatprep.subr.mxu0 0.0
    %1784 = vmatpush1.msra.mxu0 0.0
    %1785 = vmatprep.subr.mxu0 0.0
    %1786 = vmatpush1.msra.mxu0 0.0
    %1787 = vmatprep.mubr.f32.mxu0 0.0
    %1788 = vmatmul.mubr.f32.gmra.mrb[0].mxu0 %v1554
    %v1789 = vpop.f32.mrb[0].mxu0
    %v1790 = vadd.f32 0.0, %v1789
    %v1791 = vpop.f32.mrb[0].mxu0
    %v1792 = vadd.f32 0.0, %v1791
    %1793 = vdwg.mxu0
    %1794 = vmatprep.subr.mxu0 %v55
    %1795 = vmatpush1.msra.mxu0 %v54
    %1796 = vmatprep.subr.mxu0 %v59
    %1797 = vmatpush1.msra.mxu0 %v58
    %1798 = vmatprep.subr.mxu0 %v63
    %1799 = vmatpush1.msra.mxu0 %v62
    %1800 = vmatprep.subr.mxu0 %v67
    %1801 = vmatpush1.msra.mxu0 %v66
    %1802 = vmatprep.subr.mxu0 %v71
    %1803 = vmatpush1.msra.mxu0 %v70
    %1804 = vmatprep.subr.mxu0 %v75
    %1805 = vmatpush1.msra.mxu0 %v74
    %1806 = vmatprep.subr.mxu0 %v79
    %1807 = vmatpush1.msra.mxu0 %v78
    %1808 = vmatprep.subr.mxu0 %v83
    %1809 = vmatpush1.msra.mxu0 %v82
    %1810 = vmatprep.subr.mxu0 %v87
    %1811 = vmatpush1.msra.mxu0 %v86
    %1812 = vmatprep.subr.mxu0 %v91
    %1813 = vmatpush1.msra.mxu0 %v90
    %1814 = vmatprep.subr.mxu0 %v95
    %1815 = vmatpush1.msra.mxu0 %v94
    %1816 = vmatprep.subr.mxu0 %v99
    %1817 = vmatpush1.msra.mxu0 %v98
    %1818 = vmatprep.subr.mxu0 %v103
    %1819 = vmatpush1.msra.mxu0 %v102
    %1820 = vmatprep.subr.mxu0 %v107
    %1821 = vmatpush1.msra.mxu0 %v106
    %1822 = vmatprep.subr.mxu0 %v111
    %1823 = vmatpush1.msra.mxu0 %v110
    %1824 = vmatprep.subr.mxu0 %v115
    %1825 = vmatpush1.msra.mxu0 %v114
    %1826 = vmatprep.subr.mxu0 0.0
    %1827 = vmatpush1.msra.mxu0 0.0
    %1828 = vmatprep.subr.mxu0 0.0
    %1829 = vmatpush1.msra.mxu0 0.0
    %1830 = vmatprep.subr.mxu0 0.0
    %1831 = vmatpush1.msra.mxu0 0.0
    %1832 = vmatprep.subr.mxu0 0.0
    %1833 = vmatpush1.msra.mxu0 0.0
    %1834 = vmatprep.subr.mxu0 0.0
    %1835 = vmatpush1.msra.mxu0 0.0
    %1836 = vmatprep.subr.mxu0 0.0
    %1837 = vmatpush1.msra.mxu0 0.0
    %1838 = vmatprep.subr.mxu0 0.0
    %1839 = vmatpush1.msra.mxu0 0.0
    %1840 = vmatprep.subr.mxu0 0.0
    %1841 = vmatpush1.msra.mxu0 0.0
    %1842 = vmatprep.subr.mxu0 0.0
    %1843 = vmatpush1.msra.mxu0 0.0
    %1844 = vmatprep.subr.mxu0 0.0
    %1845 = vmatpush1.msra.mxu0 0.0
    %1846 = vmatprep.subr.mxu0 0.0
    %1847 = vmatpush1.msra.mxu0 0.0
    %1848 = vmatprep.subr.mxu0 0.0
    %1849 = vmatpush1.msra.mxu0 0.0
    %1850 = vmatprep.subr.mxu0 0.0
    %1851 = vmatpush1.msra.mxu0 0.0
    %1852 = vmatprep.subr.mxu0 0.0
    %1853 = vmatpush1.msra.mxu0 0.0
    %1854 = vmatprep.subr.mxu0 0.0
    %1855 = vmatpush1.msra.mxu0 0.0
    %1856 = vmatprep.subr.mxu0 0.0
    %1857 = vmatpush1.msra.mxu0 0.0
    %1858 = vmatprep.mubr.f32.mxu0 0.0
    %1859 = vmatmul.mubr.f32.gmra.mrb[0].mxu0 %v1554
    %v1860 = vpop.f32.mrb[0].mxu0
    %v1861 = vadd.f32 0.0, %v1860
    %v1862 = vpop.f32.mrb[0].mxu0
    %v1863 = vadd.f32 0.0, %v1862
    %1864 = vdwg.mxu0
    %v1869 = vcombine.low %v1790, %v1792
    %v1870 = vcombine.low %v1861, %v1863
    %v1872 = vunpack.c.l.s4 1983009808
    %v1873 = vunpack.c.0.s8 %v1872
    %v1874 = vlaneseq
    %v1875 = vshrl.u32 %v1874, 7
    %v1876 = vsub.s32 %v1873, %v1875
    %v1877 = vrot.slane %v1869, %v1876
    %v1879 = vunpack.c.l.s4 1983009808
    %v1880 = vunpack.c.0.s8 %v1879
    %v1881 = vlaneseq
    %v1882 = vshrl.u32 %v1881, 7
    %v1883 = vsub.s32 %v1880, %v1882
    %v1884 = vrot.slane %v1870, %v1883
    %v1885 = vcombine.low %v1877, %v1884
    %v1887 = vadd.f32 %v1722, %v1885
    %v1888 = vxor.u32 %v1887, 2147483648
    %v1889 = vmul.f32 %v1888, 1.442695
    %v1890 = vpow.pop %v1889
    %v1891 = vadd.f32 %v1890, 1.0
    %v1892 = vrcp.pop %v1891
    %v1893 = vmul.f32 1.0, %v1892
    %v1895 = vrot.slane %v1887, 2
    %v1897 = vxor.u32 %v1895, 2147483648
    %v1898 = vmul.f32 %v1897, 1.442695
    %v1899 = vpow.pop %v1898
    %v1900 = vadd.f32 %v1899, 1.0
    %v1901 = vrcp.pop %v1900
    %v1902 = vmul.f32 1.0, %v1901
    %v1903 = vrot.slane %v1887, 4
    %v1905 = vtanh.pop %v1903
    %v1906 = vrot.slane %v1887, 6
    %v1908 = vxor.u32 %v1906, 2147483648
    %v1909 = vmul.f32 %v1908, 1.442695
    %v1910 = vpow.pop %v1909
    %v1911 = vadd.f32 %v1910, 1.0
    %v1912 = vrcp.pop %v1911
    %v1913 = vmul.f32 1.0, %v1912
    %v1914 = vmul.f32 %v1902, %v1552
    %v1915 = vmul.f32 %v1893, %v1905
    %v1916 = vadd.f32 %v1914, %v1915
    %v1917 = vtanh.pop %v1916
    %v1918 = vmul.f32 %v1913, %v1917
    %1919 = vmatprep.subr.mxu0 %v117
    %1920 = vmatpush1.msra.mxu0 %v116
    %1921 = vmatprep.subr.mxu0 %v121
    %1922 = vmatpush1.msra.mxu0 %v120
    %1923 = vmatprep.subr.mxu0 %v125
    %1924 = vmatpush1.msra.mxu0 %v124
    %1925 = vmatprep.subr.mxu0 %v129
    %1926 = vmatpush1.msra.mxu0 %v128
    %1927 = vmatprep.subr.mxu0 %v133
    %1928 = vmatpush1.msra.mxu0 %v132
    %1929 = vmatprep.subr.mxu0 %v137
    %1930 = vmatpush1.msra.mxu0 %v136
    %1931 = vmatprep.subr.mxu0 %v141
    %1932 = vmatpush1.msra.mxu0 %v140
    %1933 = vmatprep.subr.mxu0 %v145
    %1934 = vmatpush1.msra.mxu0 %v144
    %1935 = vmatprep.subr.mxu0 %v149
    %1936 = vmatpush1.msra.mxu0 %v148
    %1937 = vmatprep.subr.mxu0 %v153
    %1938 = vmatpush1.msra.mxu0 %v152
    %1939 = vmatprep.subr.mxu0 %v157
    %1940 = vmatpush1.msra.mxu0 %v156
    %1941 = vmatprep.subr.mxu0 %v161
    %1942 = vmatpush1.msra.mxu0 %v160
    %1943 = vmatprep.subr.mxu0 %v165
    %1944 = vmatpush1.msra.mxu0 %v164
    %1945 = vmatprep.subr.mxu0 %v169
    %1946 = vmatpush1.msra.mxu0 %v168
    %1947 = vmatprep.subr.mxu0 %v173
    %1948 = vmatpush1.msra.mxu0 %v172
    %1949 = vmatprep.subr.mxu0 %v177
    %1950 = vmatpush1.msra.mxu0 %v176
    %1951 = vmatprep.subr.mxu0 %v181
    %1952 = vmatpush1.msra.mxu0 %v180
    %1953 = vmatprep.subr.mxu0 %v185
    %1954 = vmatpush1.msra.mxu0 %v184
    %1955 = vmatprep.subr.mxu0 %v189
    %1956 = vmatpush1.msra.mxu0 %v188
    %1957 = vmatprep.subr.mxu0 %v193
    %1958 = vmatpush1.msra.mxu0 %v192
    %1959 = vmatprep.subr.mxu0 %v197
    %1960 = vmatpush1.msra.mxu0 %v196
    %1961 = vmatprep.subr.mxu0 %v201
    %1962 = vmatpush1.msra.mxu0 %v200
    %1963 = vmatprep.subr.mxu0 %v205
    %1964 = vmatpush1.msra.mxu0 %v204
    %1965 = vmatprep.subr.mxu0 %v209
    %1966 = vmatpush1.msra.mxu0 %v208
    %1967 = vmatprep.subr.mxu0 %v213
    %1968 = vmatpush1.msra.mxu0 %v212
    %1969 = vmatprep.subr.mxu0 %v217
    %1970 = vmatpush1.msra.mxu0 %v216
    %1971 = vmatprep.subr.mxu0 %v221
    %1972 = vmatpush1.msra.mxu0 %v220
    %1973 = vmatprep.subr.mxu0 %v225
    %1974 = vmatpush1.msra.mxu0 %v224
    %1975 = vmatprep.subr.mxu0 %v229
    %1976 = vmatpush1.msra.mxu0 %v228
    %1977 = vmatprep.subr.mxu0 %v233
    %1978 = vmatpush1.msra.mxu0 %v232
    %1979 = vmatprep.subr.mxu0 %v237
    %1980 = vmatpush1.msra.mxu0 %v236
    %1981 = vmatprep.subr.mxu0 %v241
    %1982 = vmatpush1.msra.mxu0 %v240
    %1983 = vmatprep.mubr.f32.mxu0 %v1720
    %1984 = vmatmul.mubr.f32.gmra.mrb[0].mxu0 %v1918
    %v1985 = vpop.f32.mrb[0].mxu0
    %v1986 = vadd.f32 %v249, %v1985
    %v1987 = vpop.f32.mrb[0].mxu0
    %v1988 = vadd.f32 %v253, %v1987
    %1989 = vdwg.mxu0
    %1990 = vmatprep.subr.mxu0 %v119
    %1991 = vmatpush1.msra.mxu0 %v118
    %1992 = vmatprep.subr.mxu0 %v123
    %1993 = vmatpush1.msra.mxu0 %v122
    %1994 = vmatprep.subr.mxu0 %v127
    %1995 = vmatpush1.msra.mxu0 %v126
    %1996 = vmatprep.subr.mxu0 %v131
    %1997 = vmatpush1.msra.mxu0 %v130
    %1998 = vmatprep.subr.mxu0 %v135
    %1999 = vmatpush1.msra.mxu0 %v134
    %2000 = vmatprep.subr.mxu0 %v139
    %2001 = vmatpush1.msra.mxu0 %v138
    %2002 = vmatprep.subr.mxu0 %v143
    %2003 = vmatpush1.msra.mxu0 %v142
    %2004 = vmatprep.subr.mxu0 %v147
    %2005 = vmatpush1.msra.mxu0 %v146
    %2006 = vmatprep.subr.mxu0 %v151
    %2007 = vmatpush1.msra.mxu0 %v150
    %2008 = vmatprep.subr.mxu0 %v155
    %2009 = vmatpush1.msra.mxu0 %v154
    %2010 = vmatprep.subr.mxu0 %v159
    %2011 = vmatpush1.msra.mxu0 %v158
    %2012 = vmatprep.subr.mxu0 %v163
    %2013 = vmatpush1.msra.mxu0 %v162
    %2014 = vmatprep.subr.mxu0 %v167
    %2015 = vmatpush1.msra.mxu0 %v166
    %2016 = vmatprep.subr.mxu0 %v171
    %2017 = vmatpush1.msra.mxu0 %v170
    %2018 = vmatprep.subr.mxu0 %v175
    %2019 = vmatpush1.msra.mxu0 %v174
    %2020 = vmatprep.subr.mxu0 %v179
    %2021 = vmatpush1.msra.mxu0 %v178
    %2022 = vmatprep.subr.mxu0 %v183
    %2023 = vmatpush1.msra.mxu0 %v182
    %2024 = vmatprep.subr.mxu0 %v187
    %2025 = vmatpush1.msra.mxu0 %v186
    %2026 = vmatprep.subr.mxu0 %v191
    %2027 = vmatpush1.msra.mxu0 %v190
    %2028 = vmatprep.subr.mxu0 %v195
    %2029 = vmatpush1.msra.mxu0 %v194
    %2030 = vmatprep.subr.mxu0 %v199
    %2031 = vmatpush1.msra.mxu0 %v198
    %2032 = vmatprep.subr.mxu0 %v203
    %2033 = vmatpush1.msra.mxu0 %v202
    %2034 = vmatprep.subr.mxu0 %v207
    %2035 = vmatpush1.msra.mxu0 %v206
    %2036 = vmatprep.subr.mxu0 %v211
    %2037 = vmatpush1.msra.mxu0 %v210
    %2038 = vmatprep.subr.mxu0 %v215
    %2039 = vmatpush1.msra.mxu0 %v214
    %2040 = vmatprep.subr.mxu0 %v219
    %2041 = vmatpush1.msra.mxu0 %v218
    %2042 = vmatprep.subr.mxu0 %v223
    %2043 = vmatpush1.msra.mxu0 %v222
    %2044 = vmatprep.subr.mxu0 %v227
    %2045 = vmatpush1.msra.mxu0 %v226
    %2046 = vmatprep.subr.mxu0 %v231
    %2047 = vmatpush1.msra.mxu0 %v230
    %2048 = vmatprep.subr.mxu0 %v235
    %2049 = vmatpush1.msra.mxu0 %v234
    %2050 = vmatprep.subr.mxu0 %v239
    %2051 = vmatpush1.msra.mxu0 %v238
    %2052 = vmatprep.subr.mxu0 %v243
    %2053 = vmatpush1.msra.mxu0 %v242
    %2054 = vmatprep.mubr.f32.mxu0 %v1720
    %2055 = vmatmul.mubr.f32.gmra.mrb[0].mxu0 %v1918
    %v2056 = vpop.f32.mrb[0].mxu0
    %v2057 = vadd.f32 %v257, %v2056
    %v2058 = vpop.f32.mrb[0].mxu0
    %v2059 = vadd.f32 %v261, %v2058
    %2060 = vdwg.mxu0
    %v2061 = vxor.u32 %v1986, 2147483648
    %v2062 = vmul.f32 %v2061, 1.442695
    %v2063 = vpow.pop %v2062
    %v2064 = vadd.f32 %v2063, 1.0
    %v2065 = vrcp.pop %v2064
    %v2066 = vmul.f32 1.0, %v2065
    %v2067 = vxor.u32 %v1988, 2147483648
    %v2068 = vmul.f32 %v2067, 1.442695
    %v2069 = vpow.pop %v2068
    %v2070 = vadd.f32 %v2069, 1.0
    %v2071 = vrcp.pop %v2070
    %v2072 = vmul.f32 1.0, %v2071
    %v2073 = vtanh.pop %v2057
    %v2074 = vxor.u32 %v2059, 2147483648
    %v2075 = vmul.f32 %v2074, 1.442695
    %v2076 = vpow.pop %v2075
    %v2077 = vadd.f32 %v2076, 1.0
    %v2078 = vrcp.pop %v2077
    %v2079 = vmul.f32 1.0, %v2078
    %v2080 = vmul.f32 %v2072, %v1718
    %v2081 = vmul.f32 %v2066, %v2073
    %v2082 = vadd.f32 %v2080, %v2081
    %v2083 = vtanh.pop %v2082
    %v2084 = vmul.f32 %v2079, %v2083
    %s2085 = scalar_lea.vmem %s0, 40
    %v2086 = vld [vmem:[%s2085] sm:$0xff]
    %2087 = vmatprep.subr.mxu0 %v53
    %2088 = vmatpush1.msra.mxu0 %v52
    %2089 = vmatprep.subr.mxu0 %v57
    %2090 = vmatpush1.msra.mxu0 %v56
    %2091 = vmatprep.subr.mxu0 %v61
    %2092 = vmatpush1.msra.mxu0 %v60
    %2093 = vmatprep.subr.mxu0 %v65
    %2094 = vmatpush1.msra.mxu0 %v64
    %2095 = vmatprep.subr.mxu0 %v69
    %2096 = vmatpush1.msra.mxu0 %v68
    %2097 = vmatprep.subr.mxu0 %v73
    %2098 = vmatpush1.msra.mxu0 %v72
    %2099 = vmatprep.subr.mxu0 %v77
    %2100 = vmatpush1.msra.mxu0 %v76
    %2101 = vmatprep.subr.mxu0 %v81
    %2102 = vmatpush1.msra.mxu0 %v80
    %2103 = vmatprep.subr.mxu0 %v85
    %2104 = vmatpush1.msra.mxu0 %v84
    %2105 = vmatprep.subr.mxu0 %v89
    %2106 = vmatpush1.msra.mxu0 %v88
    %2107 = vmatprep.subr.mxu0 %v93
    %2108 = vmatpush1.msra.mxu0 %v92
    %2109 = vmatprep.subr.mxu0 %v97
    %2110 = vmatpush1.msra.mxu0 %v96
    %2111 = vmatprep.subr.mxu0 %v101
    %2112 = vmatpush1.msra.mxu0 %v100
    %2113 = vmatprep.subr.mxu0 %v105
    %2114 = vmatpush1.msra.mxu0 %v104
    %2115 = vmatprep.subr.mxu0 %v109
    %2116 = vmatpush1.msra.mxu0 %v108
    %2117 = vmatprep.subr.mxu0 %v113
    %2118 = vmatpush1.msra.mxu0 %v112
    %2119 = vmatprep.subr.mxu0 0.0
    %2120 = vmatpush1.msra.mxu0 0.0
    %2121 = vmatprep.subr.mxu0 0.0
    %2122 = vmatpush1.msra.mxu0 0.0
    %2123 = vmatprep.subr.mxu0 0.0
    %2124 = vmatpush1.msra.mxu0 0.0
    %2125 = vmatprep.subr.mxu0 0.0
    %2126 = vmatpush1.msra.mxu0 0.0
    %2127 = vmatprep.subr.mxu0 0.0
    %2128 = vmatpush1.msra.mxu0 0.0
    %2129 = vmatprep.subr.mxu0 0.0
    %2130 = vmatpush1.msra.mxu0 0.0
    %2131 = vmatprep.subr.mxu0 0.0
    %2132 = vmatpush1.msra.mxu0 0.0
    %2133 = vmatprep.subr.mxu0 0.0
    %2134 = vmatpush1.msra.mxu0 0.0
    %2135 = vmatprep.subr.mxu0 0.0
    %2136 = vmatpush1.msra.mxu0 0.0
    %2137 = vmatprep.subr.mxu0 0.0
    %2138 = vmatpush1.msra.mxu0 0.0
    %2139 = vmatprep.subr.mxu0 0.0
    %2140 = vmatpush1.msra.mxu0 0.0
    %2141 = vmatprep.subr.mxu0 0.0
    %2142 = vmatpush1.msra.mxu0 0.0
    %2143 = vmatprep.subr.mxu0 0.0
    %2144 = vmatpush1.msra.mxu0 0.0
    %2145 = vmatprep.subr.mxu0 0.0
    %2146 = vmatpush1.msra.mxu0 0.0
    %2147 = vmatprep.subr.mxu0 0.0
    %2148 = vmatpush1.msra.mxu0 0.0
    %2149 = vmatprep.subr.mxu0 0.0
    %2150 = vmatpush1.msra.mxu0 0.0
    %2151 = vmatprep.mubr.f32.mxu0 0.0
    %2152 = vmatmul.mubr.f32.gmra.mrb[0].mxu0 %v1918
    %v2153 = vpop.f32.mrb[0].mxu0
    %v2154 = vadd.f32 0.0, %v2153
    %v2155 = vpop.f32.mrb[0].mxu0
    %v2156 = vadd.f32 0.0, %v2155
    %2157 = vdwg.mxu0
    %2158 = vmatprep.subr.mxu0 %v55
    %2159 = vmatpush1.msra.mxu0 %v54
    %2160 = vmatprep.subr.mxu0 %v59
    %2161 = vmatpush1.msra.mxu0 %v58
    %2162 = vmatprep.subr.mxu0 %v63
    %2163 = vmatpush1.msra.mxu0 %v62
    %2164 = vmatprep.subr.mxu0 %v67
    %2165 = vmatpush1.msra.mxu0 %v66
    %2166 = vmatprep.subr.mxu0 %v71
    %2167 = vmatpush1.msra.mxu0 %v70
    %2168 = vmatprep.subr.mxu0 %v75
    %2169 = vmatpush1.msra.mxu0 %v74
    %2170 = vmatprep.subr.mxu0 %v79
    %2171 = vmatpush1.msra.mxu0 %v78
    %2172 = vmatprep.subr.mxu0 %v83
    %2173 = vmatpush1.msra.mxu0 %v82
    %2174 = vmatprep.subr.mxu0 %v87
    %2175 = vmatpush1.msra.mxu0 %v86
    %2176 = vmatprep.subr.mxu0 %v91
    %2177 = vmatpush1.msra.mxu0 %v90
    %2178 = vmatprep.subr.mxu0 %v95
    %2179 = vmatpush1.msra.mxu0 %v94
    %2180 = vmatprep.subr.mxu0 %v99
    %2181 = vmatpush1.msra.mxu0 %v98
    %2182 = vmatprep.subr.mxu0 %v103
    %2183 = vmatpush1.msra.mxu0 %v102
    %2184 = vmatprep.subr.mxu0 %v107
    %2185 = vmatpush1.msra.mxu0 %v106
    %2186 = vmatprep.subr.mxu0 %v111
    %2187 = vmatpush1.msra.mxu0 %v110
    %2188 = vmatprep.subr.mxu0 %v115
    %2189 = vmatpush1.msra.mxu0 %v114
    %2190 = vmatprep.subr.mxu0 0.0
    %2191 = vmatpush1.msra.mxu0 0.0
    %2192 = vmatprep.subr.mxu0 0.0
    %2193 = vmatpush1.msra.mxu0 0.0
    %2194 = vmatprep.subr.mxu0 0.0
    %2195 = vmatpush1.msra.mxu0 0.0
    %2196 = vmatprep.subr.mxu0 0.0
    %2197 = vmatpush1.msra.mxu0 0.0
    %2198 = vmatprep.subr.mxu0 0.0
    %2199 = vmatpush1.msra.mxu0 0.0
    %2200 = vmatprep.subr.mxu0 0.0
    %2201 = vmatpush1.msra.mxu0 0.0
    %2202 = vmatprep.subr.mxu0 0.0
    %2203 = vmatpush1.msra.mxu0 0.0
    %2204 = vmatprep.subr.mxu0 0.0
    %2205 = vmatpush1.msra.mxu0 0.0
    %2206 = vmatprep.subr.mxu0 0.0
    %2207 = vmatpush1.msra.mxu0 0.0
    %2208 = vmatprep.subr.mxu0 0.0
    %2209 = vmatpush1.msra.mxu0 0.0
    %2210 = vmatprep.subr.mxu0 0.0
    %2211 = vmatpush1.msra.mxu0 0.0
    %2212 = vmatprep.subr.mxu0 0.0
    %2213 = vmatpush1.msra.mxu0 0.0
    %2214 = vmatprep.subr.mxu0 0.0
    %2215 = vmatpush1.msra.mxu0 0.0
    %2216 = vmatprep.subr.mxu0 0.0
    %2217 = vmatpush1.msra.mxu0 0.0
    %2218 = vmatprep.subr.mxu0 0.0
    %2219 = vmatpush1.msra.mxu0 0.0
    %2220 = vmatprep.subr.mxu0 0.0
    %2221 = vmatpush1.msra.mxu0 0.0
    %2222 = vmatprep.mubr.f32.mxu0 0.0
    %2223 = vmatmul.mubr.f32.gmra.mrb[0].mxu0 %v1918
    %v2224 = vpop.f32.mrb[0].mxu0
    %v2225 = vadd.f32 0.0, %v2224
    %v2226 = vpop.f32.mrb[0].mxu0
    %v2227 = vadd.f32 0.0, %v2226
    %2228 = vdwg.mxu0
    %v2233 = vcombine.low %v2154, %v2156
    %v2234 = vcombine.low %v2225, %v2227
    %v2236 = vunpack.c.l.s4 1983009808
    %v2237 = vunpack.c.0.s8 %v2236
    %v2238 = vlaneseq
    %v2239 = vshrl.u32 %v2238, 7
    %v2240 = vsub.s32 %v2237, %v2239
    %v2241 = vrot.slane %v2233, %v2240
    %v2243 = vunpack.c.l.s4 1983009808
    %v2244 = vunpack.c.0.s8 %v2243
    %v2245 = vlaneseq
    %v2246 = vshrl.u32 %v2245, 7
    %v2247 = vsub.s32 %v2244, %v2246
    %v2248 = vrot.slane %v2234, %v2247
    %v2249 = vcombine.low %v2241, %v2248
    %v2251 = vadd.f32 %v2086, %v2249
    %v2252 = vxor.u32 %v2251, 2147483648
    %v2253 = vmul.f32 %v2252, 1.442695
    %v2254 = vpow.pop %v2253
    %v2255 = vadd.f32 %v2254, 1.0
    %v2256 = vrcp.pop %v2255
    %v2257 = vmul.f32 1.0, %v2256
    %v2259 = vrot.slane %v2251, 2
    %v2261 = vxor.u32 %v2259, 2147483648
    %v2262 = vmul.f32 %v2261, 1.442695
    %v2263 = vpow.pop %v2262
    %v2264 = vadd.f32 %v2263, 1.0
    %v2265 = vrcp.pop %v2264
    %v2266 = vmul.f32 1.0, %v2265
    %v2267 = vrot.slane %v2251, 4
    %v2269 = vtanh.pop %v2267
    %v2270 = vrot.slane %v2251, 6
    %v2272 = vxor.u32 %v2270, 2147483648
    %v2273 = vmul.f32 %v2272, 1.442695
    %v2274 = vpow.pop %v2273
    %v2275 = vadd.f32 %v2274, 1.0
    %v2276 = vrcp.pop %v2275
    %v2277 = vmul.f32 1.0, %v2276
    %v2278 = vmul.f32 %v2266, %v1916
    %v2279 = vmul.f32 %v2257, %v2269
    %v2280 = vadd.f32 %v2278, %v2279
    %v2281 = vtanh.pop %v2280
    %v2282 = vmul.f32 %v2277, %v2281
    %2283 = vmatprep.subr.mxu0 %v117
    %2284 = vmatpush1.msra.mxu0 %v116
    %2285 = vmatprep.subr.mxu0 %v121
    %2286 = vmatpush1.msra.mxu0 %v120
    %2287 = vmatprep.subr.mxu0 %v125
    %2288 = vmatpush1.msra.mxu0 %v124
    %2289 = vmatprep.subr.mxu0 %v129
    %2290 = vmatpush1.msra.mxu0 %v128
    %2291 = vmatprep.subr.mxu0 %v133
    %2292 = vmatpush1.msra.mxu0 %v132
    %2293 = vmatprep.subr.mxu0 %v137
    %2294 = vmatpush1.msra.mxu0 %v136
    %2295 = vmatprep.subr.mxu0 %v141
    %2296 = vmatpush1.msra.mxu0 %v140
    %2297 = vmatprep.subr.mxu0 %v145
    %2298 = vmatpush1.msra.mxu0 %v144
    %2299 = vmatprep.subr.mxu0 %v149
    %2300 = vmatpush1.msra.mxu0 %v148
    %2301 = vmatprep.subr.mxu0 %v153
    %2302 = vmatpush1.msra.mxu0 %v152
    %2303 = vmatprep.subr.mxu0 %v157
    %2304 = vmatpush1.msra.mxu0 %v156
    %2305 = vmatprep.subr.mxu0 %v161
    %2306 = vmatpush1.msra.mxu0 %v160
    %2307 = vmatprep.subr.mxu0 %v165
    %2308 = vmatpush1.msra.mxu0 %v164
    %2309 = vmatprep.subr.mxu0 %v169
    %2310 = vmatpush1.msra.mxu0 %v168
    %2311 = vmatprep.subr.mxu0 %v173
    %2312 = vmatpush1.msra.mxu0 %v172
    %2313 = vmatprep.subr.mxu0 %v177
    %2314 = vmatpush1.msra.mxu0 %v176
    %2315 = vmatprep.subr.mxu0 %v181
    %2316 = vmatpush1.msra.mxu0 %v180
    %2317 = vmatprep.subr.mxu0 %v185
    %2318 = vmatpush1.msra.mxu0 %v184
    %2319 = vmatprep.subr.mxu0 %v189
    %2320 = vmatpush1.msra.mxu0 %v188
    %2321 = vmatprep.subr.mxu0 %v193
    %2322 = vmatpush1.msra.mxu0 %v192
    %2323 = vmatprep.subr.mxu0 %v197
    %2324 = vmatpush1.msra.mxu0 %v196
    %2325 = vmatprep.subr.mxu0 %v201
    %2326 = vmatpush1.msra.mxu0 %v200
    %2327 = vmatprep.subr.mxu0 %v205
    %2328 = vmatpush1.msra.mxu0 %v204
    %2329 = vmatprep.subr.mxu0 %v209
    %2330 = vmatpush1.msra.mxu0 %v208
    %2331 = vmatprep.subr.mxu0 %v213
    %2332 = vmatpush1.msra.mxu0 %v212
    %2333 = vmatprep.subr.mxu0 %v217
    %2334 = vmatpush1.msra.mxu0 %v216
    %2335 = vmatprep.subr.mxu0 %v221
    %2336 = vmatpush1.msra.mxu0 %v220
    %2337 = vmatprep.subr.mxu0 %v225
    %2338 = vmatpush1.msra.mxu0 %v224
    %2339 = vmatprep.subr.mxu0 %v229
    %2340 = vmatpush1.msra.mxu0 %v228
    %2341 = vmatprep.subr.mxu0 %v233
    %2342 = vmatpush1.msra.mxu0 %v232
    %2343 = vmatprep.subr.mxu0 %v237
    %2344 = vmatpush1.msra.mxu0 %v236
    %2345 = vmatprep.subr.mxu0 %v241
    %2346 = vmatpush1.msra.mxu0 %v240
    %2347 = vmatprep.mubr.f32.mxu0 %v2084
    %2348 = vmatmul.mubr.f32.gmra.mrb[0].mxu0 %v2282
    %v2349 = vpop.f32.mrb[0].mxu0
    %v2350 = vadd.f32 %v249, %v2349
    %v2351 = vpop.f32.mrb[0].mxu0
    %v2352 = vadd.f32 %v253, %v2351
    %2353 = vdwg.mxu0
    %2354 = vmatprep.subr.mxu0 %v119
    %2355 = vmatpush1.msra.mxu0 %v118
    %2356 = vmatprep.subr.mxu0 %v123
    %2357 = vmatpush1.msra.mxu0 %v122
    %2358 = vmatprep.subr.mxu0 %v127
    %2359 = vmatpush1.msra.mxu0 %v126
    %2360 = vmatprep.subr.mxu0 %v131
    %2361 = vmatpush1.msra.mxu0 %v130
    %2362 = vmatprep.subr.mxu0 %v135
    %2363 = vmatpush1.msra.mxu0 %v134
    %2364 = vmatprep.subr.mxu0 %v139
    %2365 = vmatpush1.msra.mxu0 %v138
    %2366 = vmatprep.subr.mxu0 %v143
    %2367 = vmatpush1.msra.mxu0 %v142
    %2368 = vmatprep.subr.mxu0 %v147
    %2369 = vmatpush1.msra.mxu0 %v146
    %2370 = vmatprep.subr.mxu0 %v151
    %2371 = vmatpush1.msra.mxu0 %v150
    %2372 = vmatprep.subr.mxu0 %v155
    %2373 = vmatpush1.msra.mxu0 %v154
    %2374 = vmatprep.subr.mxu0 %v159
    %2375 = vmatpush1.msra.mxu0 %v158
    %2376 = vmatprep.subr.mxu0 %v163
    %2377 = vmatpush1.msra.mxu0 %v162
    %2378 = vmatprep.subr.mxu0 %v167
    %2379 = vmatpush1.msra.mxu0 %v166
    %2380 = vmatprep.subr.mxu0 %v171
    %2381 = vmatpush1.msra.mxu0 %v170
    %2382 = vmatprep.subr.mxu0 %v175
    %2383 = vmatpush1.msra.mxu0 %v174
    %2384 = vmatprep.subr.mxu0 %v179
    %2385 = vmatpush1.msra.mxu0 %v178
    %2386 = vmatprep.subr.mxu0 %v183
    %2387 = vmatpush1.msra.mxu0 %v182
    %2388 = vmatprep.subr.mxu0 %v187
    %2389 = vmatpush1.msra.mxu0 %v186
    %2390 = vmatprep.subr.mxu0 %v191
    %2391 = vmatpush1.msra.mxu0 %v190
    %2392 = vmatprep.subr.mxu0 %v195
    %2393 = vmatpush1.msra.mxu0 %v194
    %2394 = vmatprep.subr.mxu0 %v199
    %2395 = vmatpush1.msra.mxu0 %v198
    %2396 = vmatprep.subr.mxu0 %v203
    %2397 = vmatpush1.msra.mxu0 %v202
    %2398 = vmatprep.subr.mxu0 %v207
    %2399 = vmatpush1.msra.mxu0 %v206
    %2400 = vmatprep.subr.mxu0 %v211
    %2401 = vmatpush1.msra.mxu0 %v210
    %2402 = vmatprep.subr.mxu0 %v215
    %2403 = vmatpush1.msra.mxu0 %v214
    %2404 = vmatprep.subr.mxu0 %v219
    %2405 = vmatpush1.msra.mxu0 %v218
    %2406 = vmatprep.subr.mxu0 %v223
    %2407 = vmatpush1.msra.mxu0 %v222
    %2408 = vmatprep.subr.mxu0 %v227
    %2409 = vmatpush1.msra.mxu0 %v226
    %2410 = vmatprep.subr.mxu0 %v231
    %2411 = vmatpush1.msra.mxu0 %v230
    %2412 = vmatprep.subr.mxu0 %v235
    %2413 = vmatpush1.msra.mxu0 %v234
    %2414 = vmatprep.subr.mxu0 %v239
    %2415 = vmatpush1.msra.mxu0 %v238
    %2416 = vmatprep.subr.mxu0 %v243
    %2417 = vmatpush1.msra.mxu0 %v242
    %2418 = vmatprep.mubr.f32.mxu0 %v2084
    %2419 = vmatmul.mubr.f32.gmra.mrb[0].mxu0 %v2282
    %v2420 = vpop.f32.mrb[0].mxu0
    %v2421 = vadd.f32 %v257, %v2420
    %v2422 = vpop.f32.mrb[0].mxu0
    %v2423 = vadd.f32 %v261, %v2422
    %2424 = vdwg.mxu0
    %v2425 = vxor.u32 %v2350, 2147483648
    %v2426 = vmul.f32 %v2425, 1.442695
    %v2427 = vpow.pop %v2426
    %v2428 = vadd.f32 %v2427, 1.0
    %v2429 = vrcp.pop %v2428
    %v2430 = vmul.f32 1.0, %v2429
    %v2431 = vxor.u32 %v2352, 2147483648
    %v2432 = vmul.f32 %v2431, 1.442695
    %v2433 = vpow.pop %v2432
    %v2434 = vadd.f32 %v2433, 1.0
    %v2435 = vrcp.pop %v2434
    %v2436 = vmul.f32 1.0, %v2435
    %v2437 = vtanh.pop %v2421
    %v2438 = vxor.u32 %v2423, 2147483648
    %v2439 = vmul.f32 %v2438, 1.442695
    %v2440 = vpow.pop %v2439
    %v2441 = vadd.f32 %v2440, 1.0
    %v2442 = vrcp.pop %v2441
    %v2443 = vmul.f32 1.0, %v2442
    %v2444 = vmul.f32 %v2436, %v2082
    %v2445 = vmul.f32 %v2430, %v2437
    %v2446 = vadd.f32 %v2444, %v2445
    %v2447 = vtanh.pop %v2446
    %v2448 = vmul.f32 %v2443, %v2447
    %s2449 = scalar_lea.vmem %s0, 48
    %v2450 = vld [vmem:[%s2449] sm:$0xff]
    %2451 = vmatprep.subr.mxu0 %v53
    %2452 = vmatpush1.msra.mxu0 %v52
    %2453 = vmatprep.subr.mxu0 %v57
    %2454 = vmatpush1.msra.mxu0 %v56
    %2455 = vmatprep.subr.mxu0 %v61
    %2456 = vmatpush1.msra.mxu0 %v60
    %2457 = vmatprep.subr.mxu0 %v65
    %2458 = vmatpush1.msra.mxu0 %v64
    %2459 = vmatprep.subr.mxu0 %v69
    %2460 = vmatpush1.msra.mxu0 %v68
    %2461 = vmatprep.subr.mxu0 %v73
    %2462 = vmatpush1.msra.mxu0 %v72
    %2463 = vmatprep.subr.mxu0 %v77
    %2464 = vmatpush1.msra.mxu0 %v76
    %2465 = vmatprep.subr.mxu0 %v81
    %2466 = vmatpush1.msra.mxu0 %v80
    %2467 = vmatprep.subr.mxu0 %v85
    %2468 = vmatpush1.msra.mxu0 %v84
    %2469 = vmatprep.subr.mxu0 %v89
    %2470 = vmatpush1.msra.mxu0 %v88
    %2471 = vmatprep.subr.mxu0 %v93
    %2472 = vmatpush1.msra.mxu0 %v92
    %2473 = vmatprep.subr.mxu0 %v97
    %2474 = vmatpush1.msra.mxu0 %v96
    %2475 = vmatprep.subr.mxu0 %v101
    %2476 = vmatpush1.msra.mxu0 %v100
    %2477 = vmatprep.subr.mxu0 %v105
    %2478 = vmatpush1.msra.mxu0 %v104
    %2479 = vmatprep.subr.mxu0 %v109
    %2480 = vmatpush1.msra.mxu0 %v108
    %2481 = vmatprep.subr.mxu0 %v113
    %2482 = vmatpush1.msra.mxu0 %v112
    %2483 = vmatprep.subr.mxu0 0.0
    %2484 = vmatpush1.msra.mxu0 0.0
    %2485 = vmatprep.subr.mxu0 0.0
    %2486 = vmatpush1.msra.mxu0 0.0
    %2487 = vmatprep.subr.mxu0 0.0
    %2488 = vmatpush1.msra.mxu0 0.0
    %2489 = vmatprep.subr.mxu0 0.0
    %2490 = vmatpush1.msra.mxu0 0.0
    %2491 = vmatprep.subr.mxu0 0.0
    %2492 = vmatpush1.msra.mxu0 0.0
    %2493 = vmatprep.subr.mxu0 0.0
    %2494 = vmatpush1.msra.mxu0 0.0
    %2495 = vmatprep.subr.mxu0 0.0
    %2496 = vmatpush1.msra.mxu0 0.0
    %2497 = vmatprep.subr.mxu0 0.0
    %2498 = vmatpush1.msra.mxu0 0.0
    %2499 = vmatprep.subr.mxu0 0.0
    %2500 = vmatpush1.msra.mxu0 0.0
    %2501 = vmatprep.subr.mxu0 0.0
    %2502 = vmatpush1.msra.mxu0 0.0
    %2503 = vmatprep.subr.mxu0 0.0
    %2504 = vmatpush1.msra.mxu0 0.0
    %2505 = vmatprep.subr.mxu0 0.0
    %2506 = vmatpush1.msra.mxu0 0.0
    %2507 = vmatprep.subr.mxu0 0.0
    %2508 = vmatpush1.msra.mxu0 0.0
    %2509 = vmatprep.subr.mxu0 0.0
    %2510 = vmatpush1.msra.mxu0 0.0
    %2511 = vmatprep.subr.mxu0 0.0
    %2512 = vmatpush1.msra.mxu0 0.0
    %2513 = vmatprep.subr.mxu0 0.0
    %2514 = vmatpush1.msra.mxu0 0.0
    %2515 = vmatprep.mubr.f32.mxu0 0.0
    %2516 = vmatmul.mubr.f32.gmra.mrb[0].mxu0 %v2282
    %v2517 = vpop.f32.mrb[0].mxu0
    %v2518 = vadd.f32 0.0, %v2517
    %v2519 = vpop.f32.mrb[0].mxu0
    %v2520 = vadd.f32 0.0, %v2519
    %2521 = vdwg.mxu0
    %2522 = vmatprep.subr.mxu0 %v55
    %2523 = vmatpush1.msra.mxu0 %v54
    %2524 = vmatprep.subr.mxu0 %v59
    %2525 = vmatpush1.msra.mxu0 %v58
    %2526 = vmatprep.subr.mxu0 %v63
    %2527 = vmatpush1.msra.mxu0 %v62
    %2528 = vmatprep.subr.mxu0 %v67
    %2529 = vmatpush1.msra.mxu0 %v66
    %2530 = vmatprep.subr.mxu0 %v71
    %2531 = vmatpush1.msra.mxu0 %v70
    %2532 = vmatprep.subr.mxu0 %v75
    %2533 = vmatpush1.msra.mxu0 %v74
    %2534 = vmatprep.subr.mxu0 %v79
    %2535 = vmatpush1.msra.mxu0 %v78
    %2536 = vmatprep.subr.mxu0 %v83
    %2537 = vmatpush1.msra.mxu0 %v82
    %2538 = vmatprep.subr.mxu0 %v87
    %2539 = vmatpush1.msra.mxu0 %v86
    %2540 = vmatprep.subr.mxu0 %v91
    %2541 = vmatpush1.msra.mxu0 %v90
    %2542 = vmatprep.subr.mxu0 %v95
    %2543 = vmatpush1.msra.mxu0 %v94
    %2544 = vmatprep.subr.mxu0 %v99
    %2545 = vmatpush1.msra.mxu0 %v98
    %2546 = vmatprep.subr.mxu0 %v103
    %2547 = vmatpush1.msra.mxu0 %v102
    %2548 = vmatprep.subr.mxu0 %v107
    %2549 = vmatpush1.msra.mxu0 %v106
    %2550 = vmatprep.subr.mxu0 %v111
    %2551 = vmatpush1.msra.mxu0 %v110
    %2552 = vmatprep.subr.mxu0 %v115
    %2553 = vmatpush1.msra.mxu0 %v114
    %2554 = vmatprep.subr.mxu0 0.0
    %2555 = vmatpush1.msra.mxu0 0.0
    %2556 = vmatprep.subr.mxu0 0.0
    %2557 = vmatpush1.msra.mxu0 0.0
    %2558 = vmatprep.subr.mxu0 0.0
    %2559 = vmatpush1.msra.mxu0 0.0
    %2560 = vmatprep.subr.mxu0 0.0
    %2561 = vmatpush1.msra.mxu0 0.0
    %2562 = vmatprep.subr.mxu0 0.0
    %2563 = vmatpush1.msra.mxu0 0.0
    %2564 = vmatprep.subr.mxu0 0.0
    %2565 = vmatpush1.msra.mxu0 0.0
    %2566 = vmatprep.subr.mxu0 0.0
    %2567 = vmatpush1.msra.mxu0 0.0
    %2568 = vmatprep.subr.mxu0 0.0
    %2569 = vmatpush1.msra.mxu0 0.0
    %2570 = vmatprep.subr.mxu0 0.0
    %2571 = vmatpush1.msra.mxu0 0.0
    %2572 = vmatprep.subr.mxu0 0.0
    %2573 = vmatpush1.msra.mxu0 0.0
    %2574 = vmatprep.subr.mxu0 0.0
    %2575 = vmatpush1.msra.mxu0 0.0
    %2576 = vmatprep.subr.mxu0 0.0
    %2577 = vmatpush1.msra.mxu0 0.0
    %2578 = vmatprep.subr.mxu0 0.0
    %2579 = vmatpush1.msra.mxu0 0.0
    %2580 = vmatprep.subr.mxu0 0.0
    %2581 = vmatpush1.msra.mxu0 0.0
    %2582 = vmatprep.subr.mxu0 0.0
    %2583 = vmatpush1.msra.mxu0 0.0
    %2584 = vmatprep.subr.mxu0 0.0
    %2585 = vmatpush1.msra.mxu0 0.0
    %2586 = vmatprep.mubr.f32.mxu0 0.0
    %2587 = vmatmul.mubr.f32.gmra.mrb[0].mxu0 %v2282
    %v2588 = vpop.f32.mrb[0].mxu0
    %v2589 = vadd.f32 0.0, %v2588
    %v2590 = vpop.f32.mrb[0].mxu0
    %v2591 = vadd.f32 0.0, %v2590
    %2592 = vdwg.mxu0
    %v2597 = vcombine.low %v2518, %v2520
    %v2598 = vcombine.low %v2589, %v2591
    %v2600 = vunpack.c.l.s4 1983009808
    %v2601 = vunpack.c.0.s8 %v2600
    %v2602 = vlaneseq
    %v2603 = vshrl.u32 %v2602, 7
    %v2604 = vsub.s32 %v2601, %v2603
    %v2605 = vrot.slane %v2597, %v2604
    %v2607 = vunpack.c.l.s4 1983009808
    %v2608 = vunpack.c.0.s8 %v2607
    %v2609 = vlaneseq
    %v2610 = vshrl.u32 %v2609, 7
    %v2611 = vsub.s32 %v2608, %v2610
    %v2612 = vrot.slane %v2598, %v2611
    %v2613 = vcombine.low %v2605, %v2612
    %v2615 = vadd.f32 %v2450, %v2613
    %v2616 = vxor.u32 %v2615, 2147483648
    %v2617 = vmul.f32 %v2616, 1.442695
    %v2618 = vpow.pop %v2617
    %v2619 = vadd.f32 %v2618, 1.0
    %v2620 = vrcp.pop %v2619
    %v2621 = vmul.f32 1.0, %v2620
    %v2623 = vrot.slane %v2615, 2
    %v2625 = vxor.u32 %v2623, 2147483648
    %v2626 = vmul.f32 %v2625, 1.442695
    %v2627 = vpow.pop %v2626
    %v2628 = vadd.f32 %v2627, 1.0
    %v2629 = vrcp.pop %v2628
    %v2630 = vmul.f32 1.0, %v2629
    %v2631 = vrot.slane %v2615, 4
    %v2633 = vtanh.pop %v2631
    %v2634 = vrot.slane %v2615, 6
    %v2636 = vxor.u32 %v2634, 2147483648
    %v2637 = vmul.f32 %v2636, 1.442695
    %v2638 = vpow.pop %v2637
    %v2639 = vadd.f32 %v2638, 1.0
    %v2640 = vrcp.pop %v2639
    %v2641 = vmul.f32 1.0, %v2640
    %v2642 = vmul.f32 %v2630, %v2280
    %v2643 = vmul.f32 %v2621, %v2633
    %v2644 = vadd.f32 %v2642, %v2643
    %v2645 = vtanh.pop %v2644
    %v2646 = vmul.f32 %v2641, %v2645
    %2647 = vmatprep.subr.mxu0 %v117
    %2648 = vmatpush1.msra.mxu0 %v116
    %2649 = vmatprep.subr.mxu0 %v121
    %2650 = vmatpush1.msra.mxu0 %v120
    %2651 = vmatprep.subr.mxu0 %v125
    %2652 = vmatpush1.msra.mxu0 %v124
    %2653 = vmatprep.subr.mxu0 %v129
    %2654 = vmatpush1.msra.mxu0 %v128
    %2655 = vmatprep.subr.mxu0 %v133
    %2656 = vmatpush1.msra.mxu0 %v132
    %2657 = vmatprep.subr.mxu0 %v137
    %2658 = vmatpush1.msra.mxu0 %v136
    %2659 = vmatprep.subr.mxu0 %v141
    %2660 = vmatpush1.msra.mxu0 %v140
    %2661 = vmatprep.subr.mxu0 %v145
    %2662 = vmatpush1.msra.mxu0 %v144
    %2663 = vmatprep.subr.mxu0 %v149
    %2664 = vmatpush1.msra.mxu0 %v148
    %2665 = vmatprep.subr.mxu0 %v153
    %2666 = vmatpush1.msra.mxu0 %v152
    %2667 = vmatprep.subr.mxu0 %v157
    %2668 = vmatpush1.msra.mxu0 %v156
    %2669 = vmatprep.subr.mxu0 %v161
    %2670 = vmatpush1.msra.mxu0 %v160
    %2671 = vmatprep.subr.mxu0 %v165
    %2672 = vmatpush1.msra.mxu0 %v164
    %2673 = vmatprep.subr.mxu0 %v169
    %2674 = vmatpush1.msra.mxu0 %v168
    %2675 = vmatprep.subr.mxu0 %v173
    %2676 = vmatpush1.msra.mxu0 %v172
    %2677 = vmatprep.subr.mxu0 %v177
    %2678 = vmatpush1.msra.mxu0 %v176
    %2679 = vmatprep.subr.mxu0 %v181
    %2680 = vmatpush1.msra.mxu0 %v180
    %2681 = vmatprep.subr.mxu0 %v185
    %2682 = vmatpush1.msra.mxu0 %v184
    %2683 = vmatprep.subr.mxu0 %v189
    %2684 = vmatpush1.msra.mxu0 %v188
    %2685 = vmatprep.subr.mxu0 %v193
    %2686 = vmatpush1.msra.mxu0 %v192
    %2687 = vmatprep.subr.mxu0 %v197
    %2688 = vmatpush1.msra.mxu0 %v196
    %2689 = vmatprep.subr.mxu0 %v201
    %2690 = vmatpush1.msra.mxu0 %v200
    %2691 = vmatprep.subr.mxu0 %v205
    %2692 = vmatpush1.msra.mxu0 %v204
    %2693 = vmatprep.subr.mxu0 %v209
    %2694 = vmatpush1.msra.mxu0 %v208
    %2695 = vmatprep.subr.mxu0 %v213
    %2696 = vmatpush1.msra.mxu0 %v212
    %2697 = vmatprep.subr.mxu0 %v217
    %2698 = vmatpush1.msra.mxu0 %v216
    %2699 = vmatprep.subr.mxu0 %v221
    %2700 = vmatpush1.msra.mxu0 %v220
    %2701 = vmatprep.subr.mxu0 %v225
    %2702 = vmatpush1.msra.mxu0 %v224
    %2703 = vmatprep.subr.mxu0 %v229
    %2704 = vmatpush1.msra.mxu0 %v228
    %2705 = vmatprep.subr.mxu0 %v233
    %2706 = vmatpush1.msra.mxu0 %v232
    %2707 = vmatprep.subr.mxu0 %v237
    %2708 = vmatpush1.msra.mxu0 %v236
    %2709 = vmatprep.subr.mxu0 %v241
    %2710 = vmatpush1.msra.mxu0 %v240
    %2711 = vmatprep.mubr.f32.mxu0 %v2448
    %2712 = vmatmul.mubr.f32.gmra.mrb[0].mxu0 %v2646
    %v2713 = vpop.f32.mrb[0].mxu0
    %v2714 = vadd.f32 %v249, %v2713
    %v2715 = vpop.f32.mrb[0].mxu0
    %v2716 = vadd.f32 %v253, %v2715
    %2717 = vdwg.mxu0
    %2718 = vmatprep.subr.mxu0 %v119
    %2719 = vmatpush1.msra.mxu0 %v118
    %2720 = vmatprep.subr.mxu0 %v123
    %2721 = vmatpush1.msra.mxu0 %v122
    %2722 = vmatprep.subr.mxu0 %v127
    %2723 = vmatpush1.msra.mxu0 %v126
    %2724 = vmatprep.subr.mxu0 %v131
    %2725 = vmatpush1.msra.mxu0 %v130
    %2726 = vmatprep.subr.mxu0 %v135
    %2727 = vmatpush1.msra.mxu0 %v134
    %2728 = vmatprep.subr.mxu0 %v139
    %2729 = vmatpush1.msra.mxu0 %v138
    %2730 = vmatprep.subr.mxu0 %v143
    %2731 = vmatpush1.msra.mxu0 %v142
    %2732 = vmatprep.subr.mxu0 %v147
    %2733 = vmatpush1.msra.mxu0 %v146
    %2734 = vmatprep.subr.mxu0 %v151
    %2735 = vmatpush1.msra.mxu0 %v150
    %2736 = vmatprep.subr.mxu0 %v155
    %2737 = vmatpush1.msra.mxu0 %v154
    %2738 = vmatprep.subr.mxu0 %v159
    %2739 = vmatpush1.msra.mxu0 %v158
    %2740 = vmatprep.subr.mxu0 %v163
    %2741 = vmatpush1.msra.mxu0 %v162
    %2742 = vmatprep.subr.mxu0 %v167
    %2743 = vmatpush1.msra.mxu0 %v166
    %2744 = vmatprep.subr.mxu0 %v171
    %2745 = vmatpush1.msra.mxu0 %v170
    %2746 = vmatprep.subr.mxu0 %v175
    %2747 = vmatpush1.msra.mxu0 %v174
    %2748 = vmatprep.subr.mxu0 %v179
    %2749 = vmatpush1.msra.mxu0 %v178
    %2750 = vmatprep.subr.mxu0 %v183
    %2751 = vmatpush1.msra.mxu0 %v182
    %2752 = vmatprep.subr.mxu0 %v187
    %2753 = vmatpush1.msra.mxu0 %v186
    %2754 = vmatprep.subr.mxu0 %v191
    %2755 = vmatpush1.msra.mxu0 %v190
    %2756 = vmatprep.subr.mxu0 %v195
    %2757 = vmatpush1.msra.mxu0 %v194
    %2758 = vmatprep.subr.mxu0 %v199
    %2759 = vmatpush1.msra.mxu0 %v198
    %2760 = vmatprep.subr.mxu0 %v203
    %2761 = vmatpush1.msra.mxu0 %v202
    %2762 = vmatprep.subr.mxu0 %v207
    %2763 = vmatpush1.msra.mxu0 %v206
    %2764 = vmatprep.subr.mxu0 %v211
    %2765 = vmatpush1.msra.mxu0 %v210
    %2766 = vmatprep.subr.mxu0 %v215
    %2767 = vmatpush1.msra.mxu0 %v214
    %2768 = vmatprep.subr.mxu0 %v219
    %2769 = vmatpush1.msra.mxu0 %v218
    %2770 = vmatprep.subr.mxu0 %v223
    %2771 = vmatpush1.msra.mxu0 %v222
    %2772 = vmatprep.subr.mxu0 %v227
    %2773 = vmatpush1.msra.mxu0 %v226
    %2774 = vmatprep.subr.mxu0 %v231
    %2775 = vmatpush1.msra.mxu0 %v230
    %2776 = vmatprep.subr.mxu0 %v235
    %2777 = vmatpush1.msra.mxu0 %v234
    %2778 = vmatprep.subr.mxu0 %v239
    %2779 = vmatpush1.msra.mxu0 %v238
    %2780 = vmatprep.subr.mxu0 %v243
    %2781 = vmatpush1.msra.mxu0 %v242
    %2782 = vmatprep.mubr.f32.mxu0 %v2448
    %2783 = vmatmul.mubr.f32.gmra.mrb[0].mxu0 %v2646
    %v2784 = vpop.f32.mrb[0].mxu0
    %v2785 = vadd.f32 %v257, %v2784
    %v2786 = vpop.f32.mrb[0].mxu0
    %v2787 = vadd.f32 %v261, %v2786
    %2788 = vdwg.mxu0
    %v2789 = vxor.u32 %v2714, 2147483648
    %v2790 = vmul.f32 %v2789, 1.442695
    %v2791 = vpow.pop %v2790
    %v2792 = vadd.f32 %v2791, 1.0
    %v2793 = vrcp.pop %v2792
    %v2794 = vmul.f32 1.0, %v2793
    %v2795 = vxor.u32 %v2716, 2147483648
    %v2796 = vmul.f32 %v2795, 1.442695
    %v2797 = vpow.pop %v2796
    %v2798 = vadd.f32 %v2797, 1.0
    %v2799 = vrcp.pop %v2798
    %v2800 = vmul.f32 1.0, %v2799
    %v2801 = vtanh.pop %v2785
    %v2802 = vxor.u32 %v2787, 2147483648
    %v2803 = vmul.f32 %v2802, 1.442695
    %v2804 = vpow.pop %v2803
    %v2805 = vadd.f32 %v2804, 1.0
    %v2806 = vrcp.pop %v2805
    %v2807 = vmul.f32 1.0, %v2806
    %v2808 = vmul.f32 %v2800, %v2446
    %v2809 = vmul.f32 %v2794, %v2801
    %v2810 = vadd.f32 %v2808, %v2809
    %v2811 = vtanh.pop %v2810
    %v2812 = vmul.f32 %v2807, %v2811
    %s2813 = scalar_lea.vmem %s0, 56
    %v2814 = vld [vmem:[%s2813] sm:$0xff]
    %2815 = vmatprep.subr.mxu0 %v53
    %2816 = vmatpush1.msra.mxu0 %v52
    %2817 = vmatprep.subr.mxu0 %v57
    %2818 = vmatpush1.msra.mxu0 %v56
    %2819 = vmatprep.subr.mxu0 %v61
    %2820 = vmatpush1.msra.mxu0 %v60
    %2821 = vmatprep.subr.mxu0 %v65
    %2822 = vmatpush1.msra.mxu0 %v64
    %2823 = vmatprep.subr.mxu0 %v69
    %2824 = vmatpush1.msra.mxu0 %v68
    %2825 = vmatprep.subr.mxu0 %v73
    %2826 = vmatpush1.msra.mxu0 %v72
    %2827 = vmatprep.subr.mxu0 %v77
    %2828 = vmatpush1.msra.mxu0 %v76
    %2829 = vmatprep.subr.mxu0 %v81
    %2830 = vmatpush1.msra.mxu0 %v80
    %2831 = vmatprep.subr.mxu0 %v85
    %2832 = vmatpush1.msra.mxu0 %v84
    %2833 = vmatprep.subr.mxu0 %v89
    %2834 = vmatpush1.msra.mxu0 %v88
    %2835 = vmatprep.subr.mxu0 %v93
    %2836 = vmatpush1.msra.mxu0 %v92
    %2837 = vmatprep.subr.mxu0 %v97
    %2838 = vmatpush1.msra.mxu0 %v96
    %2839 = vmatprep.subr.mxu0 %v101
    %2840 = vmatpush1.msra.mxu0 %v100
    %2841 = vmatprep.subr.mxu0 %v105
    %2842 = vmatpush1.msra.mxu0 %v104
    %2843 = vmatprep.subr.mxu0 %v109
    %2844 = vmatpush1.msra.mxu0 %v108
    %2845 = vmatprep.subr.mxu0 %v113
    %2846 = vmatpush1.msra.mxu0 %v112
    %2847 = vmatprep.subr.mxu0 0.0
    %2848 = vmatpush1.msra.mxu0 0.0
    %2849 = vmatprep.subr.mxu0 0.0
    %2850 = vmatpush1.msra.mxu0 0.0
    %2851 = vmatprep.subr.mxu0 0.0
    %2852 = vmatpush1.msra.mxu0 0.0
    %2853 = vmatprep.subr.mxu0 0.0
    %2854 = vmatpush1.msra.mxu0 0.0
    %2855 = vmatprep.subr.mxu0 0.0
    %2856 = vmatpush1.msra.mxu0 0.0
    %2857 = vmatprep.subr.mxu0 0.0
    %2858 = vmatpush1.msra.mxu0 0.0
    %2859 = vmatprep.subr.mxu0 0.0
    %2860 = vmatpush1.msra.mxu0 0.0
    %2861 = vmatprep.subr.mxu0 0.0
    %2862 = vmatpush1.msra.mxu0 0.0
    %2863 = vmatprep.subr.mxu0 0.0
    %2864 = vmatpush1.msra.mxu0 0.0
    %2865 = vmatprep.subr.mxu0 0.0
    %2866 = vmatpush1.msra.mxu0 0.0
    %2867 = vmatprep.subr.mxu0 0.0
    %2868 = vmatpush1.msra.mxu0 0.0
    %2869 = vmatprep.subr.mxu0 0.0
    %2870 = vmatpush1.msra.mxu0 0.0
    %2871 = vmatprep.subr.mxu0 0.0
    %2872 = vmatpush1.msra.mxu0 0.0
    %2873 = vmatprep.subr.mxu0 0.0
    %2874 = vmatpush1.msra.mxu0 0.0
    %2875 = vmatprep.subr.mxu0 0.0
    %2876 = vmatpush1.msra.mxu0 0.0
    %2877 = vmatprep.subr.mxu0 0.0
    %2878 = vmatpush1.msra.mxu0 0.0
    %2879 = vmatprep.mubr.f32.mxu0 0.0
    %2880 = vmatmul.mubr.f32.gmra.mrb[0].mxu0 %v2646
    %v2881 = vpop.f32.mrb[0].mxu0
    %v2882 = vadd.f32 0.0, %v2881
    %v2883 = vpop.f32.mrb[0].mxu0
    %v2884 = vadd.f32 0.0, %v2883
    %2885 = vdwg.mxu0
    %2886 = vmatprep.subr.mxu0 %v55
    %2887 = vmatpush1.msra.mxu0 %v54
    %2888 = vmatprep.subr.mxu0 %v59
    %2889 = vmatpush1.msra.mxu0 %v58
    %2890 = vmatprep.subr.mxu0 %v63
    %2891 = vmatpush1.msra.mxu0 %v62
    %2892 = vmatprep.subr.mxu0 %v67
    %2893 = vmatpush1.msra.mxu0 %v66
    %2894 = vmatprep.subr.mxu0 %v71
    %2895 = vmatpush1.msra.mxu0 %v70
    %2896 = vmatprep.subr.mxu0 %v75
    %2897 = vmatpush1.msra.mxu0 %v74
    %2898 = vmatprep.subr.mxu0 %v79
    %2899 = vmatpush1.msra.mxu0 %v78
    %2900 = vmatprep.subr.mxu0 %v83
    %2901 = vmatpush1.msra.mxu0 %v82
    %2902 = vmatprep.subr.mxu0 %v87
    %2903 = vmatpush1.msra.mxu0 %v86
    %2904 = vmatprep.subr.mxu0 %v91
    %2905 = vmatpush1.msra.mxu0 %v90
    %2906 = vmatprep.subr.mxu0 %v95
    %2907 = vmatpush1.msra.mxu0 %v94
    %2908 = vmatprep.subr.mxu0 %v99
    %2909 = vmatpush1.msra.mxu0 %v98
    %2910 = vmatprep.subr.mxu0 %v103
    %2911 = vmatpush1.msra.mxu0 %v102
    %2912 = vmatprep.subr.mxu0 %v107
    %2913 = vmatpush1.msra.mxu0 %v106
    %2914 = vmatprep.subr.mxu0 %v111
    %2915 = vmatpush1.msra.mxu0 %v110
    %2916 = vmatprep.subr.mxu0 %v115
    %2917 = vmatpush1.msra.mxu0 %v114
    %2918 = vmatprep.subr.mxu0 0.0
    %2919 = vmatpush1.msra.mxu0 0.0
    %2920 = vmatprep.subr.mxu0 0.0
    %2921 = vmatpush1.msra.mxu0 0.0
    %2922 = vmatprep.subr.mxu0 0.0
    %2923 = vmatpush1.msra.mxu0 0.0
    %2924 = vmatprep.subr.mxu0 0.0
    %2925 = vmatpush1.msra.mxu0 0.0
    %2926 = vmatprep.subr.mxu0 0.0
    %2927 = vmatpush1.msra.mxu0 0.0
    %2928 = vmatprep.subr.mxu0 0.0
    %2929 = vmatpush1.msra.mxu0 0.0
    %2930 = vmatprep.subr.mxu0 0.0
    %2931 = vmatpush1.msra.mxu0 0.0
    %2932 = vmatprep.subr.mxu0 0.0
    %2933 = vmatpush1.msra.mxu0 0.0
    %2934 = vmatprep.subr.mxu0 0.0
    %2935 = vmatpush1.msra.mxu0 0.0
    %2936 = vmatprep.subr.mxu0 0.0
    %2937 = vmatpush1.msra.mxu0 0.0
    %2938 = vmatprep.subr.mxu0 0.0
    %2939 = vmatpush1.msra.mxu0 0.0
    %2940 = vmatprep.subr.mxu0 0.0
    %2941 = vmatpush1.msra.mxu0 0.0
    %2942 = vmatprep.subr.mxu0 0.0
    %2943 = vmatpush1.msra.mxu0 0.0
    %2944 = vmatprep.subr.mxu0 0.0
    %2945 = vmatpush1.msra.mxu0 0.0
    %2946 = vmatprep.subr.mxu0 0.0
    %2947 = vmatpush1.msra.mxu0 0.0
    %2948 = vmatprep.subr.mxu0 0.0
    %2949 = vmatpush1.msra.mxu0 0.0
    %2950 = vmatprep.mubr.f32.mxu0 0.0
    %2951 = vmatmul.mubr.f32.gmra.mrb[0].mxu0 %v2646
    %v2952 = vpop.f32.mrb[0].mxu0
    %v2953 = vadd.f32 0.0, %v2952
    %v2954 = vpop.f32.mrb[0].mxu0
    %v2955 = vadd.f32 0.0, %v2954
    %2956 = vdwg.mxu0
    %v2961 = vcombine.low %v2882, %v2884
    %v2962 = vcombine.low %v2953, %v2955
    %v2964 = vunpack.c.l.s4 1983009808
    %v2965 = vunpack.c.0.s8 %v2964
    %v2966 = vlaneseq
    %v2967 = vshrl.u32 %v2966, 7
    %v2968 = vsub.s32 %v2965, %v2967
    %v2969 = vrot.slane %v2961, %v2968
    %v2971 = vunpack.c.l.s4 1983009808
    %v2972 = vunpack.c.0.s8 %v2971
    %v2973 = vlaneseq
    %v2974 = vshrl.u32 %v2973, 7
    %v2975 = vsub.s32 %v2972, %v2974
    %v2976 = vrot.slane %v2962, %v2975
    %v2977 = vcombine.low %v2969, %v2976
    %v2979 = vadd.f32 %v2814, %v2977
    %v2980 = vxor.u32 %v2979, 2147483648
    %v2981 = vmul.f32 %v2980, 1.442695
    %v2982 = vpow.pop %v2981
    %v2983 = vadd.f32 %v2982, 1.0
    %v2984 = vrcp.pop %v2983
    %v2985 = vmul.f32 1.0, %v2984
    %v2987 = vrot.slane %v2979, 2
    %v2989 = vxor.u32 %v2987, 2147483648
    %v2990 = vmul.f32 %v2989, 1.442695
    %v2991 = vpow.pop %v2990
    %v2992 = vadd.f32 %v2991, 1.0
    %v2993 = vrcp.pop %v2992
    %v2994 = vmul.f32 1.0, %v2993
    %v2995 = vrot.slane %v2979, 4
    %v2997 = vtanh.pop %v2995
    %v2998 = vrot.slane %v2979, 6
    %v3000 = vxor.u32 %v2998, 2147483648
    %v3001 = vmul.f32 %v3000, 1.442695
    %v3002 = vpow.pop %v3001
    %v3003 = vadd.f32 %v3002, 1.0
    %v3004 = vrcp.pop %v3003
    %v3005 = vmul.f32 1.0, %v3004
    %v3006 = vmul.f32 %v2994, %v2644
    %v3007 = vmul.f32 %v2985, %v2997
    %v3008 = vadd.f32 %v3006, %v3007
    %v3009 = vtanh.pop %v3008
    %v3010 = vmul.f32 %v3005, %v3009
    %3011 = vmatprep.subr.mxu0 %v117
    %3012 = vmatpush1.msra.mxu0 %v116
    %3013 = vmatprep.subr.mxu0 %v121
    %3014 = vmatpush1.msra.mxu0 %v120
    %3015 = vmatprep.subr.mxu0 %v125
    %3016 = vmatpush1.msra.mxu0 %v124
    %3017 = vmatprep.subr.mxu0 %v129
    %3018 = vmatpush1.msra.mxu0 %v128
    %3019 = vmatprep.subr.mxu0 %v133
    %3020 = vmatpush1.msra.mxu0 %v132
    %3021 = vmatprep.subr.mxu0 %v137
    %3022 = vmatpush1.msra.mxu0 %v136
    %3023 = vmatprep.subr.mxu0 %v141
    %3024 = vmatpush1.msra.mxu0 %v140
    %3025 = vmatprep.subr.mxu0 %v145
    %3026 = vmatpush1.msra.mxu0 %v144
    %3027 = vmatprep.subr.mxu0 %v149
    %3028 = vmatpush1.msra.mxu0 %v148
    %3029 = vmatprep.subr.mxu0 %v153
    %3030 = vmatpush1.msra.mxu0 %v152
    %3031 = vmatprep.subr.mxu0 %v157
    %3032 = vmatpush1.msra.mxu0 %v156
    %3033 = vmatprep.subr.mxu0 %v161
    %3034 = vmatpush1.msra.mxu0 %v160
    %3035 = vmatprep.subr.mxu0 %v165
    %3036 = vmatpush1.msra.mxu0 %v164
    %3037 = vmatprep.subr.mxu0 %v169
    %3038 = vmatpush1.msra.mxu0 %v168
    %3039 = vmatprep.subr.mxu0 %v173
    %3040 = vmatpush1.msra.mxu0 %v172
    %3041 = vmatprep.subr.mxu0 %v177
    %3042 = vmatpush1.msra.mxu0 %v176
    %3043 = vmatprep.subr.mxu0 %v181
    %3044 = vmatpush1.msra.mxu0 %v180
    %3045 = vmatprep.subr.mxu0 %v185
    %3046 = vmatpush1.msra.mxu0 %v184
    %3047 = vmatprep.subr.mxu0 %v189
    %3048 = vmatpush1.msra.mxu0 %v188
    %3049 = vmatprep.subr.mxu0 %v193
    %3050 = vmatpush1.msra.mxu0 %v192
    %3051 = vmatprep.subr.mxu0 %v197
    %3052 = vmatpush1.msra.mxu0 %v196
    %3053 = vmatprep.subr.mxu0 %v201
    %3054 = vmatpush1.msra.mxu0 %v200
    %3055 = vmatprep.subr.mxu0 %v205
    %3056 = vmatpush1.msra.mxu0 %v204
    %3057 = vmatprep.subr.mxu0 %v209
    %3058 = vmatpush1.msra.mxu0 %v208
    %3059 = vmatprep.subr.mxu0 %v213
    %3060 = vmatpush1.msra.mxu0 %v212
    %3061 = vmatprep.subr.mxu0 %v217
    %3062 = vmatpush1.msra.mxu0 %v216
    %3063 = vmatprep.subr.mxu0 %v221
    %3064 = vmatpush1.msra.mxu0 %v220
    %3065 = vmatprep.subr.mxu0 %v225
    %3066 = vmatpush1.msra.mxu0 %v224
    %3067 = vmatprep.subr.mxu0 %v229
    %3068 = vmatpush1.msra.mxu0 %v228
    %3069 = vmatprep.subr.mxu0 %v233
    %3070 = vmatpush1.msra.mxu0 %v232
    %3071 = vmatprep.subr.mxu0 %v237
    %3072 = vmatpush1.msra.mxu0 %v236
    %3073 = vmatprep.subr.mxu0 %v241
    %3074 = vmatpush1.msra.mxu0 %v240
    %3075 = vmatprep.mubr.f32.mxu0 %v2812
    %3076 = vmatmul.mubr.f32.gmra.mrb[0].mxu0 %v3010
    %v3077 = vpop.f32.mrb[0].mxu0
    %v3078 = vadd.f32 %v249, %v3077
    %v3079 = vpop.f32.mrb[0].mxu0
    %v3080 = vadd.f32 %v253, %v3079
    %3081 = vdwg.mxu0
    %3082 = vmatprep.subr.mxu0 %v119
    %3083 = vmatpush1.msra.mxu0 %v118
    %3084 = vmatprep.subr.mxu0 %v123
    %3085 = vmatpush1.msra.mxu0 %v122
    %3086 = vmatprep.subr.mxu0 %v127
    %3087 = vmatpush1.msra.mxu0 %v126
    %3088 = vmatprep.subr.mxu0 %v131
    %3089 = vmatpush1.msra.mxu0 %v130
    %3090 = vmatprep.subr.mxu0 %v135
    %3091 = vmatpush1.msra.mxu0 %v134
    %3092 = vmatprep.subr.mxu0 %v139
    %3093 = vmatpush1.msra.mxu0 %v138
    %3094 = vmatprep.subr.mxu0 %v143
    %3095 = vmatpush1.msra.mxu0 %v142
    %3096 = vmatprep.subr.mxu0 %v147
    %3097 = vmatpush1.msra.mxu0 %v146
    %3098 = vmatprep.subr.mxu0 %v151
    %3099 = vmatpush1.msra.mxu0 %v150
    %3100 = vmatprep.subr.mxu0 %v155
    %3101 = vmatpush1.msra.mxu0 %v154
    %3102 = vmatprep.subr.mxu0 %v159
    %3103 = vmatpush1.msra.mxu0 %v158
    %3104 = vmatprep.subr.mxu0 %v163
    %3105 = vmatpush1.msra.mxu0 %v162
    %3106 = vmatprep.subr.mxu0 %v167
    %3107 = vmatpush1.msra.mxu0 %v166
    %3108 = vmatprep.subr.mxu0 %v171
    %3109 = vmatpush1.msra.mxu0 %v170
    %3110 = vmatprep.subr.mxu0 %v175
    %3111 = vmatpush1.msra.mxu0 %v174
    %3112 = vmatprep.subr.mxu0 %v179
    %3113 = vmatpush1.msra.mxu0 %v178
    %3114 = vmatprep.subr.mxu0 %v183
    %3115 = vmatpush1.msra.mxu0 %v182
    %3116 = vmatprep.subr.mxu0 %v187
    %3117 = vmatpush1.msra.mxu0 %v186
    %3118 = vmatprep.subr.mxu0 %v191
    %3119 = vmatpush1.msra.mxu0 %v190
    %3120 = vmatprep.subr.mxu0 %v195
    %3121 = vmatpush1.msra.mxu0 %v194
    %3122 = vmatprep.subr.mxu0 %v199
    %3123 = vmatpush1.msra.mxu0 %v198
    %3124 = vmatprep.subr.mxu0 %v203
    %3125 = vmatpush1.msra.mxu0 %v202
    %3126 = vmatprep.subr.mxu0 %v207
    %3127 = vmatpush1.msra.mxu0 %v206
    %3128 = vmatprep.subr.mxu0 %v211
    %3129 = vmatpush1.msra.mxu0 %v210
    %3130 = vmatprep.subr.mxu0 %v215
    %3131 = vmatpush1.msra.mxu0 %v214
    %3132 = vmatprep.subr.mxu0 %v219
    %3133 = vmatpush1.msra.mxu0 %v218
    %3134 = vmatprep.subr.mxu0 %v223
    %3135 = vmatpush1.msra.mxu0 %v222
    %3136 = vmatprep.subr.mxu0 %v227
    %3137 = vmatpush1.msra.mxu0 %v226
    %3138 = vmatprep.subr.mxu0 %v231
    %3139 = vmatpush1.msra.mxu0 %v230
    %3140 = vmatprep.subr.mxu0 %v235
    %3141 = vmatpush1.msra.mxu0 %v234
    %3142 = vmatprep.subr.mxu0 %v239
    %3143 = vmatpush1.msra.mxu0 %v238
    %3144 = vmatprep.subr.mxu0 %v243
    %3145 = vmatpush1.msra.mxu0 %v242
    %3146 = vmatprep.mubr.f32.mxu0 %v2812
    %3147 = vmatmul.mubr.f32.gmra.mrb[0].mxu0 %v3010
    %v3148 = vpop.f32.mrb[0].mxu0
    %v3149 = vadd.f32 %v257, %v3148
    %v3150 = vpop.f32.mrb[0].mxu0
    %v3151 = vadd.f32 %v261, %v3150
    %3152 = vdwg.mxu0
    %v3153 = vxor.u32 %v3078, 2147483648
    %v3154 = vmul.f32 %v3153, 1.442695
    %v3155 = vpow.pop %v3154
    %v3156 = vadd.f32 %v3155, 1.0
    %v3157 = vrcp.pop %v3156
    %v3158 = vmul.f32 1.0, %v3157
    %v3159 = vxor.u32 %v3080, 2147483648
    %v3160 = vmul.f32 %v3159, 1.442695
    %v3161 = vpow.pop %v3160
    %v3162 = vadd.f32 %v3161, 1.0
    %v3163 = vrcp.pop %v3162
    %v3164 = vmul.f32 1.0, %v3163
    %v3165 = vtanh.pop %v3149
    %v3166 = vxor.u32 %v3151, 2147483648
    %v3167 = vmul.f32 %v3166, 1.442695
    %v3168 = vpow.pop %v3167
    %v3169 = vadd.f32 %v3168, 1.0
    %v3170 = vrcp.pop %v3169
    %v3171 = vmul.f32 1.0, %v3170
    %v3172 = vmul.f32 %v3164, %v2810
    %v3173 = vmul.f32 %v3158, %v3165
    %v3174 = vadd.f32 %v3172, %v3173
    %v3175 = vtanh.pop %v3174
    %v3176 = vmul.f32 %v3171, %v3175
    %v3177 = vld [vmem:[%s4] sm:$0xff]
    %v3178 = vld [vmem:[%s4 + $0x8] sm:$0xff]
    %v3179 = vld [vmem:[%s4 + $0x10] sm:$0xff]
    %v3180 = vld [vmem:[%s4 + $0x18] sm:$0xff]
    %v3181 = vld [vmem:[%s4 + $0x20] sm:$0xff]
    %v3182 = vld [vmem:[%s4 + $0x28] sm:$0xff]
    %v3183 = vld [vmem:[%s4 + $0x30] sm:$0xff]
    %v3184 = vld [vmem:[%s4 + $0x38] sm:$0xff]
    %v3185 = vld [vmem:[%s4 + $0x40] sm:$0xff]
    %v3186 = vld [vmem:[%s4 + $0x48] sm:$0xff]
    %v3187 = vld [vmem:[%s4 + $0x50] sm:$0xff]
    %v3188 = vld [vmem:[%s4 + $0x58] sm:$0xff]
    %v3189 = vld [vmem:[%s4 + $0x60] sm:$0xff]
    %v3190 = vld [vmem:[%s4 + $0x68] sm:$0xff]
    %v3191 = vld [vmem:[%s4 + $0x70] sm:$0xff]
    %v3192 = vld [vmem:[%s4 + $0x78] sm:$0xff]
    %v3193 = vld [vmem:[%s5] sm:$0x1]
    %v3195 = vlaneseq
    %v3196 = vshrl.u32 %v3195, 7
    %v3197 = vsub.s32 0, %v3196
    %v3198 = vrot.slane %v3193, %v3197
    %3200 = vmatprep.subr.mxu0 0.0
    %3201 = vmatpush1.msra.mxu0 %v3177
    %3202 = vmatprep.subr.mxu0 0.0
    %3203 = vmatpush1.msra.mxu0 %v3178
    %3204 = vmatprep.subr.mxu0 0.0
    %3205 = vmatpush1.msra.mxu0 %v3179
    %3206 = vmatprep.subr.mxu0 0.0
    %3207 = vmatpush1.msra.mxu0 %v3180
    %3208 = vmatprep.subr.mxu0 0.0
    %3209 = vmatpush1.msra.mxu0 %v3181
    %3210 = vmatprep.subr.mxu0 0.0
    %3211 = vmatpush1.msra.mxu0 %v3182
    %3212 = vmatprep.subr.mxu0 0.0
    %3213 = vmatpush1.msra.mxu0 %v3183
    %3214 = vmatprep.subr.mxu0 0.0
    %3215 = vmatpush1.msra.mxu0 %v3184
    %3216 = vmatprep.subr.mxu0 0.0
    %3217 = vmatpush1.msra.mxu0 %v3185
    %3218 = vmatprep.subr.mxu0 0.0
    %3219 = vmatpush1.msra.mxu0 %v3186
    %3220 = vmatprep.subr.mxu0 0.0
    %3221 = vmatpush1.msra.mxu0 %v3187
    %3222 = vmatprep.subr.mxu0 0.0
    %3223 = vmatpush1.msra.mxu0 %v3188
    %3224 = vmatprep.subr.mxu0 0.0
    %3225 = vmatpush1.msra.mxu0 %v3189
    %3226 = vmatprep.subr.mxu0 0.0
    %3227 = vmatpush1.msra.mxu0 %v3190
    %3228 = vmatprep.subr.mxu0 0.0
    %3229 = vmatpush1.msra.mxu0 %v3191
    %3230 = vmatprep.subr.mxu0 0.0
    %3231 = vmatpush1.msra.mxu0 %v3192
    %3232 = vmatprep.subr.mxu0 0.0
    %3233 = vmatpush1.msra.mxu0 0.0
    %3234 = vmatprep.subr.mxu0 0.0
    %3235 = vmatpush1.msra.mxu0 0.0
    %3236 = vmatprep.subr.mxu0 0.0
    %3237 = vmatpush1.msra.mxu0 0.0
    %3238 = vmatprep.subr.mxu0 0.0
    %3239 = vmatpush1.msra.mxu0 0.0
    %3240 = vmatprep.subr.mxu0 0.0
    %3241 = vmatpush1.msra.mxu0 0.0
    %3242 = vmatprep.subr.mxu0 0.0
    %3243 = vmatpush1.msra.mxu0 0.0
    %3244 = vmatprep.subr.mxu0 0.0
    %3245 = vmatpush1.msra.mxu0 0.0
    %3246 = vmatprep.subr.mxu0 0.0
    %3247 = vmatpush1.msra.mxu0 0.0
    %3248 = vmatprep.subr.mxu0 0.0
    %3249 = vmatpush1.msra.mxu0 0.0
    %3250 = vmatprep.subr.mxu0 0.0
    %3251 = vmatpush1.msra.mxu0 0.0
    %3252 = vmatprep.subr.mxu0 0.0
    %3253 = vmatpush1.msra.mxu0 0.0
    %3254 = vmatprep.subr.mxu0 0.0
    %3255 = vmatpush1.msra.mxu0 0.0
    %3256 = vmatprep.subr.mxu0 0.0
    %3257 = vmatpush1.msra.mxu0 0.0
    %3258 = vmatprep.subr.mxu0 0.0
    %3259 = vmatpush1.msra.mxu0 0.0
    %3260 = vmatprep.subr.mxu0 0.0
    %3261 = vmatpush1.msra.mxu0 0.0
    %3262 = vmatprep.subr.mxu0 0.0
    %3263 = vmatpush1.msra.mxu0 0.0
    %3264 = vmatprep.mubr.f32.mxu0 0.0
    %3265 = vmatmul.mubr.f32.gmra.mrb[0].mxu0 %v3176
    %v3266 = vpop.f32.mrb[0].mxu0
    %v3267 = vadd.f32 %v3198, %v3266
    %v3268 = vpop.f32.mrb[0].mxu0
    %3269 = vdwg.mxu0
    %vm3270 = vcmask 25600
    %3271 = vst.msk [vmem:[#allocation7] sm:$0x3] %vm3270, %v3267
    // Predicated region
    $region34: #{tpu_custom_call.1} parent=1 // pred_check
      _
    $region35: #{tpu_custom_call.1} parent=1 // pred_check_branch
      %3273 = sbr.rel (0) target = $region37
    $region36: #{tpu_custom_call.1} parent=1 // pred_region
      %s3275 = ssub.s32 32, 32
      %3276 = vsyncadd [#allocation4], %s3275
      %s3278 = sshll.u32 [#allocation7], 4
      %s3279 = int_to_ptr.vmem [resolvable:$true] %s3278
      %3281 = dma.vmem_to_hbm [thread:$0]  %s3279, 32, %s6, [#allocation4]
    $region37: #{tpu_custom_call.1} parent=1 // pred_fallthru
      _
    // Predicated region
    $region38: #{tpu_custom_call.1} parent=1 // pred_check
      _
    $region39: #{tpu_custom_call.1} parent=1 // pred_check_branch
      %3283 = sbr.rel (0) target = $region41
    $region40: #{tpu_custom_call.1} parent=1 // pred_region
      %3284 = dma.done [#allocation4], 32
    $region41: #{tpu_custom_call.1} parent=1 // pred_fallthru
      _
    %3285 = vsyncpa [#allocation3], 1
    %3286 = vsyncpa [#allocation6], 1
    %3287 = vsyncpa [#allocation4], 1

</llo_original>
